<compile_context>
chip_gen: v7x
topology: tpu7x:2x2x1
jax: 0.10.0
libtpu: 0.0.40
codegen_flags: <defaults>
</compile_context>

<pallas_src>
import functools

import jax
import jax.numpy as jnp
from jax.experimental import pallas as pl
from jax.experimental.pallas import tpu as pltpu

BN_EPS = 1e-5
LANE = 128


def fold_bn(gamma, beta, rmean, rvar, eps=BN_EPS):
    scale = gamma / jnp.sqrt(rvar + eps)
    shift = beta - rmean * scale
    return scale, shift


def _vmem_limit_bytes():
    # v5e/v6e: 128 MiB physical VMEM per core; v7x: 64 MiB.  Size the scoped limit
    # per generation instead of hard-coding 32 MiB.
    cap = 128 * 1024 * 1024
    try:
        cap = int(pltpu.get_tpu_info().vmem_capacity_bytes)
    except Exception:
        pass
    return int(min(96 * 1024 * 1024, (cap * 3) // 4))


def _se_res2net_kernel(x_ref, wA_ref, wr_ref, w2s_ref, wse1_ref, wse2_ref,
                       colC_ref, colR_ref, out_ref,
                       *, has_shortcut: bool, scale: int, true_l: int):
    f32 = jnp.float32
    bf16 = jnp.bfloat16

    _, C, Cg = w2s_ref.shape
    Cse = wse1_ref.shape[0]

    xb = x_ref[0]                     # [C_in, Lp] bf16 (channels=sublanes, time=lanes)
    Lp = xb.shape[1]

    # Packed per-channel columns: b1, b_sc, bn1 scale/shift, b2, bn2 scale/shift,
    # bse2, bse1(padded to C).
    cols = colC_ref[...]              # [C, 9] f32
    b1, b_sc = cols[:, 0:1], cols[:, 1:2]
    bn1s, bn1t = cols[:, 2:3], cols[:, 3:4]
    b2, bn2s, bn2t = cols[:, 4:5], cols[:, 5:6], cols[:, 6:7]
    bse2 = cols[:, 7:8]
    bse1 = cols[:Cse, 8:9]

    # ---- tdnn1 conv (+ fused shortcut conv): single bf16 MXU pass over x ----
    hA = jnp.dot(wA_ref[...], xb, preferred_element_type=f32)     # [C or 2C, Lp]
    if has_shortcut:
        pre1 = hA[:C] + b1
        residual = hA[C:] + b_sc
    else:
        pre1 = hA + b1
        residual = xb.astype(f32)
    h1 = jnp.maximum(pre1, 0.0) * bn1s + bn1t                     # ReLU -> folded BN

    # ---- Res2Net chain with tdnn2 accumulated group-by-group ----
    acc = None
    y_prev = None
    for i in range(scale):
        xi = h1[i * Cg:(i + 1) * Cg, :]                           # [Cg, Lp]
        if i == 0:
            yi = xi
        else:
            rc = colR_ref[i - 1]                                  # [Cg, 3]: bias, bn scale, bn shift
            inp = xi if i == 1 else xi + y_prev
            h = jnp.dot(wr_ref[i - 1], inp.astype(bf16),
                        preferred_element_type=f32) + rc[:, 0:1]
            yi = jnp.maximum(h, 0.0) * rc[:, 1:2] + rc[:, 2:3]
        y_prev = yi
        part = jnp.dot(w2s_ref[i], yi.astype(bf16), preferred_element_type=f32)
        acc = part if acc is None else acc + part                 # tdnn2 partial sums

    h3 = jnp.maximum(acc + b2, 0.0) * bn2s + bn2t                 # [C, Lp]

    # ---- SE block (lengths=None: mean over the true, unpadded time extent) ----
    if Lp != true_l:
        lane = jax.lax.broadcasted_iota(jnp.int32, (1, Lp), 1)
        h3m = h3 * (lane < true_l).astype(f32)
    else:
        h3m = h3
    s = jnp.sum(h3m, axis=1, keepdims=True) * (1.0 / true_l)      # [C, 1]
    s = jnp.maximum(
        jnp.dot(wse1_ref[...], s.astype(bf16), preferred_element_type=f32) + bse1,
        0.0)                                                      # [Cse, 1]
    g = jax.nn.sigmoid(
        jnp.dot(wse2_ref[...], s.astype(bf16), preferred_element_type=f32) + bse2)  # [C, 1]

    out_ref[0, :, :] = (g * h3 + residual).astype(out_ref.dtype)


def se_res2net_block(x, p, *, scale):
    """x: [N, C_in, L] (PyTorch NCL layout). Returns [N, C_out, L] float32."""
    N, C_in, L = x.shape
    C = p["w2"].shape[0]
    Cg = C // scale
    Cse = p["wse1"].shape[0]
    has_shortcut = "w_sc" in p
    if not has_shortcut:
        assert C_in == C, "identity residual path requires in_channels == out_channels"
    assert scale >= 2 and C % scale == 0

    # ---- fold BN (inference) and pack per-channel vectors into two small arrays ----
    bn1s, bn1t = fold_bn(p["gamma1"], p["beta1"], p["rmean1"], p["rvar1"])
    bnrs, bnrt = fold_bn(p["gamma_r"], p["beta_r"], p["rmean_r"], p["rvar_r"])
    bn2s, bn2t = fold_bn(p["gamma2"], p["beta2"], p["rmean2"], p["rvar2"])

    b_sc = p["b_sc"] if has_shortcut else jnp.zeros((C,), jnp.float32)
    bse1_pad = jnp.zeros((C,), jnp.float32).at[:Cse].set(p["bse1"])
    colC = jnp.stack([p["b1"], b_sc, bn1s, bn1t, p["b2"], bn2s, bn2t,
                      p["bse2"], bse1_pad], axis=1).astype(jnp.float32)      # [C, 9]
    colR = jnp.stack([p["br"], bnrs, bnrt], axis=2).astype(jnp.float32)      # [scale-1, Cg, 3]

    # ---- bf16 MXU operands ----
    wA = jnp.concatenate([p["w1"], p["w_sc"]], axis=0) if has_shortcut else p["w1"]
    wA = wA.astype(jnp.bfloat16)                                             # [C or 2C, C_in]
    wr = p["wr"].astype(jnp.bfloat16)                                        # [scale-1, Cg, Cg]
    w2s = p["w2"].reshape(C, scale, Cg).transpose(1, 0, 2).astype(jnp.bfloat16)  # [scale, C, Cg]
    wse1 = p["wse1"].astype(jnp.bfloat16)
    wse2 = p["wse2"].astype(jnp.bfloat16)

    # ---- lane-dense time axis: pad L up to a multiple of 128 ----
    Lp = ((L + LANE - 1) // LANE) * LANE
    xb = x.astype(jnp.bfloat16)
    if Lp != L:
        xb = jnp.pad(xb, ((0, 0), (0, 0), (0, Lp - L)))

    args = [xb, wA, wr, w2s, wse1, wse2, colC, colR]
    kernel = functools.partial(_se_res2net_kernel, has_shortcut=has_shortcut,
                               scale=scale, true_l=L)

    def run(single_buffer_consts):
        def const_spec(a):
            nd = a.ndim
            kw = {}
            if single_buffer_consts:
                # Grid-invariant operand: no need for double buffering.
                kw["pipeline_mode"] = pl.Buffered(1)
            return pl.BlockSpec(a.shape, lambda b, _nd=nd: (0,) * _nd, **kw)

        in_specs = ([pl.BlockSpec((1, C_in, Lp), lambda b: (b, 0, 0))]
                    + [const_spec(a) for a in args[1:]])

        out = pl.pallas_call(
            kernel,
            out_shape=jax.ShapeDtypeStruct((N, C, Lp), jnp.float32),
            grid=(N,),
            in_specs=in_specs,
            out_specs=pl.BlockSpec((1, C, Lp), lambda b: (b, 0, 0)),
            compiler_params=pltpu.CompilerParams(
                dimension_semantics=("parallel",),
                vmem_limit_bytes=_vmem_limit_bytes()),
        )(*args)
        return out[..., :L]

    try:
        return run(True)
    except Exception:
        # Fallback if this jax version rejects pl.Buffered(1) for the main pipeline.
        return run(False)


# ------------- pure-JAX reference (same math, same bf16 MXU cast points) -------------
def ref_forward(x, p, *, scale):
    bf16 = jnp.bfloat16

    def pconv(w, b, y):  # kernel_size=1 conv in NCL, bf16 operands, f32 accumulation
        return (jnp.einsum("oc,ncl->nol", w.astype(bf16), y.astype(bf16),
                           preferred_element_type=jnp.float32)
                + b[None, :, None])

    def tdnn(y, w, b, g, be, rm, rv):
        s, t = fold_bn(g, be, rm, rv)
        return jnp.maximum(pconv(w, b, y), 0.0) * s[None, :, None] + t[None, :, None]

    if "w_sc" in p:
        residual = pconv(p["w_sc"], p["b_sc"], x)
    else:
        residual = x.astype(bf16).astype(jnp.float32)   # kernel consumes x in bf16

    h = tdnn(x, p["w1"], p["b1"], p["gamma1"], p["beta1"], p["rmean1"], p["rvar1"])

    chunks = jnp.split(h, scale, axis=1)
    ys, y_prev = [], None
    for i in range(scale):
        if i == 0:
            yi = chunks[0]
        else:
            inp = chunks[i] if i == 1 else chunks[i] + y_prev
            yi = tdnn(inp, p["wr"][i - 1], p["br"][i - 1],
                      p["gamma_r"][i - 1], p["beta_r"][i - 1],
                      p["rmean_r"][i - 1], p["rvar_r"][i - 1])
        y_prev = yi
        ys.append(yi)
    h = jnp.concatenate(ys, axis=1)

    h = tdnn(h, p["w2"], p["b2"], p["gamma2"], p["beta2"], p["rmean2"], p["rvar2"])

    s = h.mean(axis=2, keepdims=True)
    s = jnp.maximum(pconv(p["wse1"], p["bse1"], s), 0.0)
    g = jax.nn.sigmoid(pconv(p["wse2"], p["bse2"], s))
    return g * h + residual


def init_params(key, C_in, C, scale, Cse):
    Cg = C // scale
    ks = iter(jax.random.split(key, 48))

    def n(shape, sc=0.1):
        return sc * jax.random.normal(next(ks), shape, jnp.float32)

    def rv(shape):
        return jax.random.uniform(next(ks), shape, jnp.float32, 0.5, 1.5)

    p = {}
    p["w1"], p["b1"] = n((C, C_in)), n((C,))
    p["gamma1"], p["beta1"] = 1.0 + n((C,)), n((C,))
    p["rmean1"], p["rvar1"] = n((C,)), rv((C,))

    p["wr"], p["br"] = n((scale - 1, Cg, Cg)), n((scale - 1, Cg))
    p["gamma_r"], p["beta_r"] = 1.0 + n((scale - 1, Cg)), n((scale - 1, Cg))
    p["rmean_r"], p["rvar_r"] = n((scale - 1, Cg)), rv((scale - 1, Cg))

    p["w2"], p["b2"] = n((C, C)), n((C,))
    p["gamma2"], p["beta2"] = 1.0 + n((C,)), n((C,))
    p["rmean2"], p["rvar2"] = n((C,)), rv((C,))

    p["wse1"], p["bse1"] = n((Cse, C)), n((Cse,))
    p["wse2"], p["bse2"] = n((C, Cse)), n((C,))

    if C_in != C:
        p["w_sc"], p["b_sc"] = n((C, C_in)), n((C,))
    return p


if __name__ == "__main__":
    key = jax.random.PRNGKey(0)
    configs = [
        # (C_in, C_out, res2net_scale, se_channels, N, L)
        (32, 64, 4, 16, 2, 128),   # shortcut conv path, lane-exact L
        (64, 64, 4, 16, 2, 200),   # identity residual path, L padded to 256 (masked SE mean)
    ]
    for (C_in, C, scale_, Cse, N, L) in configs:
        kx, kp, key = jax.random.split(key, 3)
        x = jax.random.normal(kx, (N, C_in, L), jnp.float32)   # [N, C, L] like PyTorch
        params = init_params(kp, C_in, C, scale_, Cse)

        out = jax.block_until_ready(se_res2net_block(x, params, scale=scale_))
        assert out.shape == (N, C, L), out.shape

        ref = ref_forward(x, params, scale=scale_)
        err = float(jnp.max(jnp.abs(out - ref)))
        assert jnp.allclose(out, ref, atol=2e-2, rtol=2e-2), err

    print("KERNEL_OK")
</pallas_src>

<mosaic_0001>
module attributes {stable_mosaic.version = 11 : i64} {
  func.func @_se_res2net_kernel(%arg0: i32, %arg1: memref<1x32x128xbf16, #tpu.memory_space<vmem>>, %arg2: memref<128x32xbf16, #tpu.memory_space<vmem>>, %arg3: memref<3x16x16xbf16, #tpu.memory_space<vmem>>, %arg4: memref<4x64x16xbf16, #tpu.memory_space<vmem>>, %arg5: memref<16x64xbf16, #tpu.memory_space<vmem>>, %arg6: memref<64x16xbf16, #tpu.memory_space<vmem>>, %arg7: memref<64x9xf32, #tpu.memory_space<vmem>>, %arg8: memref<3x16x3xf32, #tpu.memory_space<vmem>>, %arg9: memref<1x64x128xf32, #tpu.memory_space<vmem>>) attributes {dimension_semantics = [#tpu.dimension_semantics<parallel>], iteration_bounds = array<i64: 2>, scalar_prefetch = 0 : i64, scratch_operands = 0 : i64, tpu.core_type = #tpu.core_type<tc>, window_params = [{transform_indices = @transform_0, window_bounds = array<i64: 1, 32, 128>}, {pipeline_mode = #tpu.pipeline_mode<synchronous>, transform_indices = @transform_1, window_bounds = array<i64: 128, 32>}, {pipeline_mode = #tpu.pipeline_mode<synchronous>, transform_indices = @transform_2, window_bounds = array<i64: 3, 16, 16>}, {pipeline_mode = #tpu.pipeline_mode<synchronous>, transform_indices = @transform_3, window_bounds = array<i64: 4, 64, 16>}, {pipeline_mode = #tpu.pipeline_mode<synchronous>, transform_indices = @transform_4, window_bounds = array<i64: 16, 64>}, {pipeline_mode = #tpu.pipeline_mode<synchronous>, transform_indices = @transform_5, window_bounds = array<i64: 64, 16>}, {pipeline_mode = #tpu.pipeline_mode<synchronous>, transform_indices = @transform_6, window_bounds = array<i64: 64, 9>}, {pipeline_mode = #tpu.pipeline_mode<synchronous>, transform_indices = @transform_7, window_bounds = array<i64: 3, 16, 3>}, {transform_indices = @transform_8, window_bounds = array<i64: 1, 64, 128>}]} {
    %c0 = arith.constant 0 : index
    %c0_0 = arith.constant 0 : index
    %c0_1 = arith.constant 0 : index
    %0 = vector.load %arg1[%c0, %c0_0, %c0_1] : memref<1x32x128xbf16, #tpu.memory_space<vmem>>, vector<1x32x128xbf16>
    %1 = vector.shape_cast %0 : vector<1x32x128xbf16> to vector<32x128xbf16>
    %c0_2 = arith.constant 0 : index
    %c0_3 = arith.constant 0 : index
    %2 = vector.load %arg7[%c0_2, %c0_3] : memref<64x9xf32, #tpu.memory_space<vmem>>, vector<64x9xf32>
    %3 = vector.extract_strided_slice %2 {offsets = [0, 0], sizes = [64, 1], strides = [1, 1]} : vector<64x9xf32> to vector<64x1xf32>
    %4 = vector.extract_strided_slice %2 {offsets = [0, 1], sizes = [64, 1], strides = [1, 1]} : vector<64x9xf32> to vector<64x1xf32>
    %5 = vector.extract_strided_slice %2 {offsets = [0, 2], sizes = [64, 1], strides = [1, 1]} : vector<64x9xf32> to vector<64x1xf32>
    %6 = vector.extract_strided_slice %2 {offsets = [0, 3], sizes = [64, 1], strides = [1, 1]} : vector<64x9xf32> to vector<64x1xf32>
    %7 = vector.extract_strided_slice %2 {offsets = [0, 4], sizes = [64, 1], strides = [1, 1]} : vector<64x9xf32> to vector<64x1xf32>
    %8 = vector.extract_strided_slice %2 {offsets = [0, 5], sizes = [64, 1], strides = [1, 1]} : vector<64x9xf32> to vector<64x1xf32>
    %9 = vector.extract_strided_slice %2 {offsets = [0, 6], sizes = [64, 1], strides = [1, 1]} : vector<64x9xf32> to vector<64x1xf32>
    %10 = vector.extract_strided_slice %2 {offsets = [0, 7], sizes = [64, 1], strides = [1, 1]} : vector<64x9xf32> to vector<64x1xf32>
    %11 = vector.extract_strided_slice %2 {offsets = [0, 8], sizes = [16, 1], strides = [1, 1]} : vector<64x9xf32> to vector<16x1xf32>
    %c0_4 = arith.constant 0 : index
    %c0_5 = arith.constant 0 : index
    %12 = vector.load %arg2[%c0_4, %c0_5] : memref<128x32xbf16, #tpu.memory_space<vmem>>, vector<128x32xbf16>
    %cst = arith.constant dense<0.000000e+00> : vector<128x128xf32>
    %13 = tpu.matmul %12, %1, %cst {dimension_numbers = #tpu.dot_dimension_numbers<[1], [0], [0], [1], [0, 0, 1, 1], [], []>} : vector<128x32xbf16>, vector<32x128xbf16>, vector<128x128xf32> -> vector<128x128xf32>
    %14 = vector.extract_strided_slice %13 {offsets = [0, 0], sizes = [64, 128], strides = [1, 1]} : vector<128x128xf32> to vector<64x128xf32>
    %15 = vector.broadcast %3 : vector<64x1xf32> to vector<64x128xf32>
    %16 = arith.addf %14, %15 : vector<64x128xf32>
    %17 = vector.extract_strided_slice %13 {offsets = [64, 0], sizes = [64, 128], strides = [1, 1]} : vector<128x128xf32> to vector<64x128xf32>
    %18 = vector.broadcast %4 : vector<64x1xf32> to vector<64x128xf32>
    %19 = arith.addf %17, %18 : vector<64x128xf32>
    %cst_6 = arith.constant 0.000000e+00 : f32
    %20 = vector.broadcast %cst_6 : f32 to vector<64x128xf32>
    %21 = arith.maximumf %16, %20 : vector<64x128xf32>
    %22 = vector.broadcast %5 : vector<64x1xf32> to vector<64x128xf32>
    %23 = arith.mulf %21, %22 : vector<64x128xf32>
    %24 = vector.broadcast %6 : vector<64x1xf32> to vector<64x128xf32>
    %25 = arith.addf %23, %24 : vector<64x128xf32>
    %26 = vector.extract_strided_slice %25 {offsets = [0, 0], sizes = [16, 128], strides = [1, 1]} : vector<64x128xf32> to vector<16x128xf32>
    %c0_7 = arith.constant 0 : index
    %c0_8 = arith.constant 0 : index
    %c0_9 = arith.constant 0 : index
    %27 = vector.load %arg4[%c0_7, %c0_8, %c0_9] : memref<4x64x16xbf16, #tpu.memory_space<vmem>>, vector<1x64x16xbf16>
    %28 = vector.shape_cast %27 : vector<1x64x16xbf16> to vector<64x16xbf16>
    %29 = arith.truncf %26 : vector<16x128xf32> to vector<16x128xbf16>
    %cst_10 = arith.constant dense<0.000000e+00> : vector<64x128xf32>
    %30 = tpu.matmul %28, %29, %cst_10 {dimension_numbers = #tpu.dot_dimension_numbers<[1], [0], [0], [1], [0, 0, 1, 1], [], []>} : vector<64x16xbf16>, vector<16x128xbf16>, vector<64x128xf32> -> vector<64x128xf32>
    %31 = vector.extract_strided_slice %25 {offsets = [16, 0], sizes = [16, 128], strides = [1, 1]} : vector<64x128xf32> to vector<16x128xf32>
    %c0_11 = arith.constant 0 : index
    %c0_12 = arith.constant 0 : index
    %c0_13 = arith.constant 0 : index
    %32 = vector.load %arg8[%c0_11, %c0_12, %c0_13] : memref<3x16x3xf32, #tpu.memory_space<vmem>>, vector<1x16x3xf32>
    %33 = vector.shape_cast %32 : vector<1x16x3xf32> to vector<16x3xf32>
    %c0_14 = arith.constant 0 : index
    %c0_15 = arith.constant 0 : index
    %c0_16 = arith.constant 0 : index
    %34 = vector.load %arg3[%c0_14, %c0_15, %c0_16] : memref<3x16x16xbf16, #tpu.memory_space<vmem>>, vector<1x16x16xbf16>
    %35 = vector.shape_cast %34 : vector<1x16x16xbf16> to vector<16x16xbf16>
    %36 = arith.truncf %31 : vector<16x128xf32> to vector<16x128xbf16>
    %cst_17 = arith.constant dense<0.000000e+00> : vector<16x128xf32>
    %37 = tpu.matmul %35, %36, %cst_17 {dimension_numbers = #tpu.dot_dimension_numbers<[1], [0], [0], [1], [0, 0, 1, 1], [], []>} : vector<16x16xbf16>, vector<16x128xbf16>, vector<16x128xf32> -> vector<16x128xf32>
    %38 = vector.extract_strided_slice %33 {offsets = [0, 0], sizes = [16, 1], strides = [1, 1]} : vector<16x3xf32> to vector<16x1xf32>
    %39 = vector.broadcast %38 : vector<16x1xf32> to vector<16x128xf32>
    %40 = arith.addf %37, %39 : vector<16x128xf32>
    %cst_18 = arith.constant 0.000000e+00 : f32
    %41 = vector.broadcast %cst_18 : f32 to vector<16x128xf32>
    %42 = arith.maximumf %40, %41 : vector<16x128xf32>
    %43 = vector.extract_strided_slice %33 {offsets = [0, 1], sizes = [16, 1], strides = [1, 1]} : vector<16x3xf32> to vector<16x1xf32>
    %44 = vector.broadcast %43 : vector<16x1xf32> to vector<16x128xf32>
    %45 = arith.mulf %42, %44 : vector<16x128xf32>
    %46 = vector.extract_strided_slice %33 {offsets = [0, 2], sizes = [16, 1], strides = [1, 1]} : vector<16x3xf32> to vector<16x1xf32>
    %47 = vector.broadcast %46 : vector<16x1xf32> to vector<16x128xf32>
    %48 = arith.addf %45, %47 : vector<16x128xf32>
    %c1 = arith.constant 1 : index
    %c0_19 = arith.constant 0 : index
    %c0_20 = arith.constant 0 : index
    %49 = vector.load %arg4[%c1, %c0_19, %c0_20] : memref<4x64x16xbf16, #tpu.memory_space<vmem>>, vector<1x64x16xbf16>
    %50 = vector.shape_cast %49 : vector<1x64x16xbf16> to vector<64x16xbf16>
    %51 = arith.truncf %48 : vector<16x128xf32> to vector<16x128xbf16>
    %cst_21 = arith.constant dense<0.000000e+00> : vector<64x128xf32>
    %52 = tpu.matmul %50, %51, %cst_21 {dimension_numbers = #tpu.dot_dimension_numbers<[1], [0], [0], [1], [0, 0, 1, 1], [], []>} : vector<64x16xbf16>, vector<16x128xbf16>, vector<64x128xf32> -> vector<64x128xf32>
    %53 = arith.addf %30, %52 : vector<64x128xf32>
    %54 = vector.extract_strided_slice %25 {offsets = [32, 0], sizes = [16, 128], strides = [1, 1]} : vector<64x128xf32> to vector<16x128xf32>
    %c1_22 = arith.constant 1 : index
    %c0_23 = arith.constant 0 : index
    %c0_24 = arith.constant 0 : index
    %55 = vector.load %arg8[%c1_22, %c0_23, %c0_24] : memref<3x16x3xf32, #tpu.memory_space<vmem>>, vector<1x16x3xf32>
    %56 = vector.shape_cast %55 : vector<1x16x3xf32> to vector<16x3xf32>
    %57 = arith.addf %54, %48 : vector<16x128xf32>
    %c1_25 = arith.constant 1 : index
    %c0_26 = arith.constant 0 : index
    %c0_27 = arith.constant 0 : index
    %58 = vector.load %arg3[%c1_25, %c0_26, %c0_27] : memref<3x16x16xbf16, #tpu.memory_space<vmem>>, vector<1x16x16xbf16>
    %59 = vector.shape_cast %58 : vector<1x16x16xbf16> to vector<16x16xbf16>
    %60 = arith.truncf %57 : vector<16x128xf32> to vector<16x128xbf16>
    %cst_28 = arith.constant dense<0.000000e+00> : vector<16x128xf32>
    %61 = tpu.matmul %59, %60, %cst_28 {dimension_numbers = #tpu.dot_dimension_numbers<[1], [0], [0], [1], [0, 0, 1, 1], [], []>} : vector<16x16xbf16>, vector<16x128xbf16>, vector<16x128xf32> -> vector<16x128xf32>
    %62 = vector.extract_strided_slice %56 {offsets = [0, 0], sizes = [16, 1], strides = [1, 1]} : vector<16x3xf32> to vector<16x1xf32>
    %63 = vector.broadcast %62 : vector<16x1xf32> to vector<16x128xf32>
    %64 = arith.addf %61, %63 : vector<16x128xf32>
    %cst_29 = arith.constant 0.000000e+00 : f32
    %65 = vector.broadcast %cst_29 : f32 to vector<16x128xf32>
    %66 = arith.maximumf %64, %65 : vector<16x128xf32>
    %67 = vector.extract_strided_slice %56 {offsets = [0, 1], sizes = [16, 1], strides = [1, 1]} : vector<16x3xf32> to vector<16x1xf32>
    %68 = vector.broadcast %67 : vector<16x1xf32> to vector<16x128xf32>
    %69 = arith.mulf %66, %68 : vector<16x128xf32>
    %70 = vector.extract_strided_slice %56 {offsets = [0, 2], sizes = [16, 1], strides = [1, 1]} : vector<16x3xf32> to vector<16x1xf32>
    %71 = vector.broadcast %70 : vector<16x1xf32> to vector<16x128xf32>
    %72 = arith.addf %69, %71 : vector<16x128xf32>
    %c2 = arith.constant 2 : index
    %c0_30 = arith.constant 0 : index
    %c0_31 = arith.constant 0 : index
    %73 = vector.load %arg4[%c2, %c0_30, %c0_31] : memref<4x64x16xbf16, #tpu.memory_space<vmem>>, vector<1x64x16xbf16>
    %74 = vector.shape_cast %73 : vector<1x64x16xbf16> to vector<64x16xbf16>
    %75 = arith.truncf %72 : vector<16x128xf32> to vector<16x128xbf16>
    %cst_32 = arith.constant dense<0.000000e+00> : vector<64x128xf32>
    %76 = tpu.matmul %74, %75, %cst_32 {dimension_numbers = #tpu.dot_dimension_numbers<[1], [0], [0], [1], [0, 0, 1, 1], [], []>} : vector<64x16xbf16>, vector<16x128xbf16>, vector<64x128xf32> -> vector<64x128xf32>
    %77 = arith.addf %53, %76 : vector<64x128xf32>
    %78 = vector.extract_strided_slice %25 {offsets = [48, 0], sizes = [16, 128], strides = [1, 1]} : vector<64x128xf32> to vector<16x128xf32>
    %c2_33 = arith.constant 2 : index
    %c0_34 = arith.constant 0 : index
    %c0_35 = arith.constant 0 : index
    %79 = vector.load %arg8[%c2_33, %c0_34, %c0_35] : memref<3x16x3xf32, #tpu.memory_space<vmem>>, vector<1x16x3xf32>
    %80 = vector.shape_cast %79 : vector<1x16x3xf32> to vector<16x3xf32>
    %81 = arith.addf %78, %72 : vector<16x128xf32>
    %c2_36 = arith.constant 2 : index
    %c0_37 = arith.constant 0 : index
    %c0_38 = arith.constant 0 : index
    %82 = vector.load %arg3[%c2_36, %c0_37, %c0_38] : memref<3x16x16xbf16, #tpu.memory_space<vmem>>, vector<1x16x16xbf16>
    %83 = vector.shape_cast %82 : vector<1x16x16xbf16> to vector<16x16xbf16>
    %84 = arith.truncf %81 : vector<16x128xf32> to vector<16x128xbf16>
    %cst_39 = arith.constant dense<0.000000e+00> : vector<16x128xf32>
    %85 = tpu.matmul %83, %84, %cst_39 {dimension_numbers = #tpu.dot_dimension_numbers<[1], [0], [0], [1], [0, 0, 1, 1], [], []>} : vector<16x16xbf16>, vector<16x128xbf16>, vector<16x128xf32> -> vector<16x128xf32>
    %86 = vector.extract_strided_slice %80 {offsets = [0, 0], sizes = [16, 1], strides = [1, 1]} : vector<16x3xf32> to vector<16x1xf32>
    %87 = vector.broadcast %86 : vector<16x1xf32> to vector<16x128xf32>
    %88 = arith.addf %85, %87 : vector<16x128xf32>
    %cst_40 = arith.constant 0.000000e+00 : f32
    %89 = vector.broadcast %cst_40 : f32 to vector<16x128xf32>
    %90 = arith.maximumf %88, %89 : vector<16x128xf32>
    %91 = vector.extract_strided_slice %80 {offsets = [0, 1], sizes = [16, 1], strides = [1, 1]} : vector<16x3xf32> to vector<16x1xf32>
    %92 = vector.broadcast %91 : vector<16x1xf32> to vector<16x128xf32>
    %93 = arith.mulf %90, %92 : vector<16x128xf32>
    %94 = vector.extract_strided_slice %80 {offsets = [0, 2], sizes = [16, 1], strides = [1, 1]} : vector<16x3xf32> to vector<16x1xf32>
    %95 = vector.broadcast %94 : vector<16x1xf32> to vector<16x128xf32>
    %96 = arith.addf %93, %95 : vector<16x128xf32>
    %c3 = arith.constant 3 : index
    %c0_41 = arith.constant 0 : index
    %c0_42 = arith.constant 0 : index
    %97 = vector.load %arg4[%c3, %c0_41, %c0_42] : memref<4x64x16xbf16, #tpu.memory_space<vmem>>, vector<1x64x16xbf16>
    %98 = vector.shape_cast %97 : vector<1x64x16xbf16> to vector<64x16xbf16>
    %99 = arith.truncf %96 : vector<16x128xf32> to vector<16x128xbf16>
    %cst_43 = arith.constant dense<0.000000e+00> : vector<64x128xf32>
    %100 = tpu.matmul %98, %99, %cst_43 {dimension_numbers = #tpu.dot_dimension_numbers<[1], [0], [0], [1], [0, 0, 1, 1], [], []>} : vector<64x16xbf16>, vector<16x128xbf16>, vector<64x128xf32> -> vector<64x128xf32>
    %101 = arith.addf %77, %100 : vector<64x128xf32>
    %102 = vector.broadcast %7 : vector<64x1xf32> to vector<64x128xf32>
    %103 = arith.addf %101, %102 : vector<64x128xf32>
    %cst_44 = arith.constant 0.000000e+00 : f32
    %104 = vector.broadcast %cst_44 : f32 to vector<64x128xf32>
    %105 = arith.maximumf %103, %104 : vector<64x128xf32>
    %106 = vector.broadcast %8 : vector<64x1xf32> to vector<64x128xf32>
    %107 = arith.mulf %105, %106 : vector<64x128xf32>
    %108 = vector.broadcast %9 : vector<64x1xf32> to vector<64x128xf32>
    %109 = arith.addf %107, %108 : vector<64x128xf32>
    %cst_45 = arith.constant dense<0.000000e+00> : vector<64xf32>
    %110 = vector.multi_reduction <add>, %109, %cst_45 [1] : vector<64x128xf32> to vector<64xf32>
    %111 = vector.shape_cast %110 : vector<64xf32> to vector<64x1xf32>
    %cst_46 = arith.constant 7.812500e-03 : f32
    %112 = vector.broadcast %cst_46 : f32 to vector<64x1xf32>
    %113 = arith.mulf %111, %112 : vector<64x1xf32>
    %c0_47 = arith.constant 0 : index
    %c0_48 = arith.constant 0 : index
    %114 = vector.load %arg5[%c0_47, %c0_48] : memref<16x64xbf16, #tpu.memory_space<vmem>>, vector<16x64xbf16>
    %115 = arith.truncf %113 : vector<64x1xf32> to vector<64x1xbf16>
    %cst_49 = arith.constant dense<0.000000e+00> : vector<16x1xf32>
    %116 = tpu.matmul %114, %115, %cst_49 {dimension_numbers = #tpu.dot_dimension_numbers<[1], [0], [0], [1], [0, 0, 1, 1], [], []>} : vector<16x64xbf16>, vector<64x1xbf16>, vector<16x1xf32> -> vector<16x1xf32>
    %117 = arith.addf %116, %11 : vector<16x1xf32>
    %cst_50 = arith.constant 0.000000e+00 : f32
    %118 = vector.broadcast %cst_50 : f32 to vector<16x1xf32>
    %119 = arith.maximumf %117, %118 : vector<16x1xf32>
    %c0_51 = arith.constant 0 : index
    %c0_52 = arith.constant 0 : index
    %120 = vector.load %arg6[%c0_51, %c0_52] : memref<64x16xbf16, #tpu.memory_space<vmem>>, vector<64x16xbf16>
    %121 = arith.truncf %119 : vector<16x1xf32> to vector<16x1xbf16>
    %cst_53 = arith.constant dense<0.000000e+00> : vector<64x1xf32>
    %122 = tpu.matmul %120, %121, %cst_53 {dimension_numbers = #tpu.dot_dimension_numbers<[1], [0], [0], [1], [0, 0, 1, 1], [], []>} : vector<64x16xbf16>, vector<16x1xbf16>, vector<64x1xf32> -> vector<64x1xf32>
    %123 = arith.addf %122, %10 : vector<64x1xf32>
    %124 = arith.negf %123 : vector<64x1xf32>
    %125 = math.exp %124 : vector<64x1xf32>
    %cst_54 = arith.constant 1.000000e+00 : f32
    %126 = vector.broadcast %cst_54 : f32 to vector<64x1xf32>
    %127 = arith.addf %126, %125 : vector<64x1xf32>
    %128 = arith.divf %126, %127 : vector<64x1xf32>
    %129 = vector.broadcast %128 : vector<64x1xf32> to vector<64x128xf32>
    %130 = arith.mulf %129, %109 : vector<64x128xf32>
    %131 = arith.addf %130, %19 : vector<64x128xf32>
    %c0_55 = arith.constant 0 : index
    %c0_56 = arith.constant 0 : index
    %c0_57 = arith.constant 0 : index
    %132 = vector.load %arg9[%c0_55, %c0_56, %c0_57] : memref<1x64x128xf32, #tpu.memory_space<vmem>>, vector<1x64x128xf32>
    %133 = vector.shape_cast %132 : vector<1x64x128xf32> to vector<64x128xf32>
    %134 = vector.shape_cast %131 : vector<64x128xf32> to vector<1x64x128xf32>
    tpu.vector_store %arg9[%c0_55, %c0_56, %c0_57], %134 {strides = array<i32>} : memref<1x64x128xf32, #tpu.memory_space<vmem>>, vector<1x64x128xf32>,
    return
  }
  func.func @transform_0(%arg0: i32) -> (i32, i32, i32) {
    %c0_i32 = arith.constant 0 : i32
    %c0_i32_0 = arith.constant 0 : i32
    %c0_i32_1 = arith.constant 0 : i32
    return %arg0, %c0_i32, %c0_i32_0 : i32, i32, i32
  }
  func.func @transform_1(%arg0: i32) -> (i32, i32) {
    %c0_i32 = arith.constant 0 : i32
    %c0_i32_0 = arith.constant 0 : i32
    %c0_i32_1 = arith.constant 0 : i32
    return %c0_i32, %c0_i32_0 : i32, i32
  }
  func.func @transform_2(%arg0: i32) -> (i32, i32, i32) {
    %c0_i32 = arith.constant 0 : i32
    %c0_i32_0 = arith.constant 0 : i32
    %c0_i32_1 = arith.constant 0 : i32
    %c0_i32_2 = arith.constant 0 : i32
    return %c0_i32, %c0_i32_0, %c0_i32_1 : i32, i32, i32
  }
  func.func @transform_3(%arg0: i32) -> (i32, i32, i32) {
    %c0_i32 = arith.constant 0 : i32
    %c0_i32_0 = arith.constant 0 : i32
    %c0_i32_1 = arith.constant 0 : i32
    %c0_i32_2 = arith.constant 0 : i32
    return %c0_i32, %c0_i32_0, %c0_i32_1 : i32, i32, i32
  }
  func.func @transform_4(%arg0: i32) -> (i32, i32) {
    %c0_i32 = arith.constant 0 : i32
    %c0_i32_0 = arith.constant 0 : i32
    %c0_i32_1 = arith.constant 0 : i32
    return %c0_i32, %c0_i32_0 : i32, i32
  }
  func.func @transform_5(%arg0: i32) -> (i32, i32) {
    %c0_i32 = arith.constant 0 : i32
    %c0_i32_0 = arith.constant 0 : i32
    %c0_i32_1 = arith.constant 0 : i32
    return %c0_i32, %c0_i32_0 : i32, i32
  }
  func.func @transform_6(%arg0: i32) -> (i32, i32) {
    %c0_i32 = arith.constant 0 : i32
    %c0_i32_0 = arith.constant 0 : i32
    %c0_i32_1 = arith.constant 0 : i32
    return %c0_i32, %c0_i32_0 : i32, i32
  }
  func.func @transform_7(%arg0: i32) -> (i32, i32, i32) {
    %c0_i32 = arith.constant 0 : i32
    %c0_i32_0 = arith.constant 0 : i32
    %c0_i32_1 = arith.constant 0 : i32
    %c0_i32_2 = arith.constant 0 : i32
    return %c0_i32, %c0_i32_0, %c0_i32_1 : i32, i32, i32
  }
  func.func @transform_8(%arg0: i32) -> (i32, i32, i32) {
    %c0_i32 = arith.constant 0 : i32
    %c0_i32_0 = arith.constant 0 : i32
    %c0_i32_1 = arith.constant 0 : i32
    return %arg0, %c0_i32, %c0_i32_0 : i32, i32, i32
  }
}

module attributes {stable_mosaic.version = 11 : i64} {
  func.func @_se_res2net_kernel(%arg0: i32, %arg1: memref<1x32x128xbf16, #tpu.memory_space<vmem>>, %arg2: memref<128x32xbf16, #tpu.memory_space<vmem>>, %arg3: memref<3x16x16xbf16, #tpu.memory_space<vmem>>, %arg4: memref<4x64x16xbf16, #tpu.memory_space<vmem>>, %arg5: memref<16x64xbf16, #tpu.memory_space<vmem>>, %arg6: memref<64x16xbf16, #tpu.memory_space<vmem>>, %arg7: memref<64x9xf32, #tpu.memory_space<vmem>>, %arg8: memref<3x16x3xf32, #tpu.memory_space<vmem>>, %arg9: memref<1x64x128xf32, #tpu.memory_space<vmem>>) attributes {dimension_semantics = [#tpu.dimension_semantics<parallel>], iteration_bounds = array<i64: 2>, scalar_prefetch = 0 : i64, scratch_operands = 0 : i64, tpu.core_type = #tpu.core_type<tc>, window_params = [{transform_indices = @transform_0, window_bounds = array<i64: 1, 32, 128>}, {pipeline_mode = #tpu.pipeline_mode<synchronous>, transform_indices = @transform_1, window_bounds = array<i64: 128, 32>}, {pipeline_mode = #tpu.pipeline_mode<synchronous>, transform_indices = @transform_2, window_bounds = array<i64: 3, 16, 16>}, {pipeline_mode = #tpu.pipeline_mode<synchronous>, transform_indices = @transform_3, window_bounds = array<i64: 4, 64, 16>}, {pipeline_mode = #tpu.pipeline_mode<synchronous>, transform_indices = @transform_4, window_bounds = array<i64: 16, 64>}, {pipeline_mode = #tpu.pipeline_mode<synchronous>, transform_indices = @transform_5, window_bounds = array<i64: 64, 16>}, {pipeline_mode = #tpu.pipeline_mode<synchronous>, transform_indices = @transform_6, window_bounds = array<i64: 64, 9>}, {pipeline_mode = #tpu.pipeline_mode<synchronous>, transform_indices = @transform_7, window_bounds = array<i64: 3, 16, 3>}, {transform_indices = @transform_8, window_bounds = array<i64: 1, 64, 128>}]} {
    %c0 = arith.constant 0 : index
    %c0_0 = arith.constant 0 : index
    %c0_1 = arith.constant 0 : index
    %0 = vector.load %arg1[%c0, %c0_0, %c0_1] : memref<1x32x128xbf16, #tpu.memory_space<vmem>>, vector<1x32x128xbf16>
    %1 = vector.shape_cast %0 : vector<1x32x128xbf16> to vector<32x128xbf16>
    %c0_2 = arith.constant 0 : index
    %c0_3 = arith.constant 0 : index
    %2 = vector.load %arg7[%c0_2, %c0_3] : memref<64x9xf32, #tpu.memory_space<vmem>>, vector<64x9xf32>
    %3 = vector.extract_strided_slice %2 {offsets = [0, 0], sizes = [64, 1], strides = [1, 1]} : vector<64x9xf32> to vector<64x1xf32>
    %4 = vector.extract_strided_slice %2 {offsets = [0, 1], sizes = [64, 1], strides = [1, 1]} : vector<64x9xf32> to vector<64x1xf32>
    %5 = vector.extract_strided_slice %2 {offsets = [0, 2], sizes = [64, 1], strides = [1, 1]} : vector<64x9xf32> to vector<64x1xf32>
    %6 = vector.extract_strided_slice %2 {offsets = [0, 3], sizes = [64, 1], strides = [1, 1]} : vector<64x9xf32> to vector<64x1xf32>
    %7 = vector.extract_strided_slice %2 {offsets = [0, 4], sizes = [64, 1], strides = [1, 1]} : vector<64x9xf32> to vector<64x1xf32>
    %8 = vector.extract_strided_slice %2 {offsets = [0, 5], sizes = [64, 1], strides = [1, 1]} : vector<64x9xf32> to vector<64x1xf32>
    %9 = vector.extract_strided_slice %2 {offsets = [0, 6], sizes = [64, 1], strides = [1, 1]} : vector<64x9xf32> to vector<64x1xf32>
    %10 = vector.extract_strided_slice %2 {offsets = [0, 7], sizes = [64, 1], strides = [1, 1]} : vector<64x9xf32> to vector<64x1xf32>
    %11 = vector.extract_strided_slice %2 {offsets = [0, 8], sizes = [16, 1], strides = [1, 1]} : vector<64x9xf32> to vector<16x1xf32>
    %c0_4 = arith.constant 0 : index
    %c0_5 = arith.constant 0 : index
    %12 = vector.load %arg2[%c0_4, %c0_5] : memref<128x32xbf16, #tpu.memory_space<vmem>>, vector<128x32xbf16>
    %cst = arith.constant dense<0.000000e+00> : vector<128x128xf32>
    %13 = tpu.matmul %12, %1, %cst {dimension_numbers = #tpu.dot_dimension_numbers<[1], [0], [0], [1], [0, 0, 1, 1], [], []>} : vector<128x32xbf16>, vector<32x128xbf16>, vector<128x128xf32> -> vector<128x128xf32>
    %14 = vector.extract_strided_slice %13 {offsets = [0, 0], sizes = [64, 128], strides = [1, 1]} : vector<128x128xf32> to vector<64x128xf32>
    %15 = vector.broadcast %3 : vector<64x1xf32> to vector<64x128xf32>
    %16 = arith.addf %14, %15 : vector<64x128xf32>
    %17 = vector.extract_strided_slice %13 {offsets = [64, 0], sizes = [64, 128], strides = [1, 1]} : vector<128x128xf32> to vector<64x128xf32>
    %18 = vector.broadcast %4 : vector<64x1xf32> to vector<64x128xf32>
    %19 = arith.addf %17, %18 : vector<64x128xf32>
    %cst_6 = arith.constant 0.000000e+00 : f32
    %20 = vector.broadcast %cst_6 : f32 to vector<64x128xf32>
    %21 = arith.maximumf %16, %20 : vector<64x128xf32>
    %22 = vector.broadcast %5 : vector<64x1xf32> to vector<64x128xf32>
    %23 = arith.mulf %21, %22 : vector<64x128xf32>
    %24 = vector.broadcast %6 : vector<64x1xf32> to vector<64x128xf32>
    %25 = arith.addf %23, %24 : vector<64x128xf32>
    %26 = vector.extract_strided_slice %25 {offsets = [0, 0], sizes = [16, 128], strides = [1, 1]} : vector<64x128xf32> to vector<16x128xf32>
    %c0_7 = arith.constant 0 : index
    %c0_8 = arith.constant 0 : index
    %c0_9 = arith.constant 0 : index
    %27 = vector.load %arg4[%c0_7, %c0_8, %c0_9] : memref<4x64x16xbf16, #tpu.memory_space<vmem>>, vector<1x64x16xbf16>
    %28 = vector.shape_cast %27 : vector<1x64x16xbf16> to vector<64x16xbf16>
    %29 = arith.truncf %26 : vector<16x128xf32> to vector<16x128xbf16>
    %cst_10 = arith.constant dense<0.000000e+00> : vector<64x128xf32>
    %30 = tpu.matmul %28, %29, %cst_10 {dimension_numbers = #tpu.dot_dimension_numbers<[1], [0], [0], [1], [0, 0, 1, 1], [], []>} : vector<64x16xbf16>, vector<16x128xbf16>, vector<64x128xf32> -> vector<64x128xf32>
    %31 = vector.extract_strided_slice %25 {offsets = [16, 0], sizes = [16, 128], strides = [1, 1]} : vector<64x128xf32> to vector<16x128xf32>
    %c0_11 = arith.constant 0 : index
    %c0_12 = arith.constant 0 : index
    %c0_13 = arith.constant 0 : index
    %32 = vector.load %arg8[%c0_11, %c0_12, %c0_13] : memref<3x16x3xf32, #tpu.memory_space<vmem>>, vector<1x16x3xf32>
    %33 = vector.shape_cast %32 : vector<1x16x3xf32> to vector<16x3xf32>
    %c0_14 = arith.constant 0 : index
    %c0_15 = arith.constant 0 : index
    %c0_16 = arith.constant 0 : index
    %34 = vector.load %arg3[%c0_14, %c0_15, %c0_16] : memref<3x16x16xbf16, #tpu.memory_space<vmem>>, vector<1x16x16xbf16>
    %35 = vector.shape_cast %34 : vector<1x16x16xbf16> to vector<16x16xbf16>
    %36 = arith.truncf %31 : vector<16x128xf32> to vector<16x128xbf16>
    %cst_17 = arith.constant dense<0.000000e+00> : vector<16x128xf32>
    %37 = tpu.matmul %35, %36, %cst_17 {dimension_numbers = #tpu.dot_dimension_numbers<[1], [0], [0], [1], [0, 0, 1, 1], [], []>} : vector<16x16xbf16>, vector<16x128xbf16>, vector<16x128xf32> -> vector<16x128xf32>
    %38 = vector.extract_strided_slice %33 {offsets = [0, 0], sizes = [16, 1], strides = [1, 1]} : vector<16x3xf32> to vector<16x1xf32>
    %39 = vector.broadcast %38 : vector<16x1xf32> to vector<16x128xf32>
    %40 = arith.addf %37, %39 : vector<16x128xf32>
    %cst_18 = arith.constant 0.000000e+00 : f32
    %41 = vector.broadcast %cst_18 : f32 to vector<16x128xf32>
    %42 = arith.maximumf %40, %41 : vector<16x128xf32>
    %43 = vector.extract_strided_slice %33 {offsets = [0, 1], sizes = [16, 1], strides = [1, 1]} : vector<16x3xf32> to vector<16x1xf32>
    %44 = vector.broadcast %43 : vector<16x1xf32> to vector<16x128xf32>
    %45 = arith.mulf %42, %44 : vector<16x128xf32>
    %46 = vector.extract_strided_slice %33 {offsets = [0, 2], sizes = [16, 1], strides = [1, 1]} : vector<16x3xf32> to vector<16x1xf32>
    %47 = vector.broadcast %46 : vector<16x1xf32> to vector<16x128xf32>
    %48 = arith.addf %45, %47 : vector<16x128xf32>
    %c1 = arith.constant 1 : index
    %c0_19 = arith.constant 0 : index
    %c0_20 = arith.constant 0 : index
    %49 = vector.load %arg4[%c1, %c0_19, %c0_20] : memref<4x64x16xbf16, #tpu.memory_space<vmem>>, vector<1x64x16xbf16>
    %50 = vector.shape_cast %49 : vector<1x64x16xbf16> to vector<64x16xbf16>
    %51 = arith.truncf %48 : vector<16x128xf32> to vector<16x128xbf16>
    %cst_21 = arith.constant dense<0.000000e+00> : vector<64x128xf32>
    %52 = tpu.matmul %50, %51, %cst_21 {dimension_numbers = #tpu.dot_dimension_numbers<[1], [0], [0], [1], [0, 0, 1, 1], [], []>} : vector<64x16xbf16>, vector<16x128xbf16>, vector<64x128xf32> -> vector<64x128xf32>
    %53 = arith.addf %30, %52 : vector<64x128xf32>
    %54 = vector.extract_strided_slice %25 {offsets = [32, 0], sizes = [16, 128], strides = [1, 1]} : vector<64x128xf32> to vector<16x128xf32>
    %c1_22 = arith.constant 1 : index
    %c0_23 = arith.constant 0 : index
    %c0_24 = arith.constant 0 : index
    %55 = vector.load %arg8[%c1_22, %c0_23, %c0_24] : memref<3x16x3xf32, #tpu.memory_space<vmem>>, vector<1x16x3xf32>
    %56 = vector.shape_cast %55 : vector<1x16x3xf32> to vector<16x3xf32>
    %57 = arith.addf %54, %48 : vector<16x128xf32>
    %c1_25 = arith.constant 1 : index
    %c0_26 = arith.constant 0 : index
    %c0_27 = arith.constant 0 : index
    %58 = vector.load %arg3[%c1_25, %c0_26, %c0_27] : memref<3x16x16xbf16, #tpu.memory_space<vmem>>, vector<1x16x16xbf16>
    %59 = vector.shape_cast %58 : vector<1x16x16xbf16> to vector<16x16xbf16>
    %60 = arith.truncf %57 : vector<16x128xf32> to vector<16x128xbf16>
    %cst_28 = arith.constant dense<0.000000e+00> : vector<16x128xf32>
    %61 = tpu.matmul %59, %60, %cst_28 {dimension_numbers = #tpu.dot_dimension_numbers<[1], [0], [0], [1], [0, 0, 1, 1], [], []>} : vector<16x16xbf16>, vector<16x128xbf16>, vector<16x128xf32> -> vector<16x128xf32>
    %62 = vector.extract_strided_slice %56 {offsets = [0, 0], sizes = [16, 1], strides = [1, 1]} : vector<16x3xf32> to vector<16x1xf32>
    %63 = vector.broadcast %62 : vector<16x1xf32> to vector<16x128xf32>
    %64 = arith.addf %61, %63 : vector<16x128xf32>
    %cst_29 = arith.constant 0.000000e+00 : f32
    %65 = vector.broadcast %cst_29 : f32 to vector<16x128xf32>
    %66 = arith.maximumf %64, %65 : vector<16x128xf32>
    %67 = vector.extract_strided_slice %56 {offsets = [0, 1], sizes = [16, 1], strides = [1, 1]} : vector<16x3xf32> to vector<16x1xf32>
    %68 = vector.broadcast %67 : vector<16x1xf32> to vector<16x128xf32>
    %69 = arith.mulf %66, %68 : vector<16x128xf32>
    %70 = vector.extract_strided_slice %56 {offsets = [0, 2], sizes = [16, 1], strides = [1, 1]} : vector<16x3xf32> to vector<16x1xf32>
    %71 = vector.broadcast %70 : vector<16x1xf32> to vector<16x128xf32>
    %72 = arith.addf %69, %71 : vector<16x128xf32>
    %c2 = arith.constant 2 : index
    %c0_30 = arith.constant 0 : index
    %c0_31 = arith.constant 0 : index
    %73 = vector.load %arg4[%c2, %c0_30, %c0_31] : memref<4x64x16xbf16, #tpu.memory_space<vmem>>, vector<1x64x16xbf16>
    %74 = vector.shape_cast %73 : vector<1x64x16xbf16> to vector<64x16xbf16>
    %75 = arith.truncf %72 : vector<16x128xf32> to vector<16x128xbf16>
    %cst_32 = arith.constant dense<0.000000e+00> : vector<64x128xf32>
    %76 = tpu.matmul %74, %75, %cst_32 {dimension_numbers = #tpu.dot_dimension_numbers<[1], [0], [0], [1], [0, 0, 1, 1], [], []>} : vector<64x16xbf16>, vector<16x128xbf16>, vector<64x128xf32> -> vector<64x128xf32>
    %77 = arith.addf %53, %76 : vector<64x128xf32>
    %78 = vector.extract_strided_slice %25 {offsets = [48, 0], sizes = [16, 128], strides = [1, 1]} : vector<64x128xf32> to vector<16x128xf32>
    %c2_33 = arith.constant 2 : index
    %c0_34 = arith.constant 0 : index
    %c0_35 = arith.constant 0 : index
    %79 = vector.load %arg8[%c2_33, %c0_34, %c0_35] : memref<3x16x3xf32, #tpu.memory_space<vmem>>, vector<1x16x3xf32>
    %80 = vector.shape_cast %79 : vector<1x16x3xf32> to vector<16x3xf32>
    %81 = arith.addf %78, %72 : vector<16x128xf32>
    %c2_36 = arith.constant 2 : index
    %c0_37 = arith.constant 0 : index
    %c0_38 = arith.constant 0 : index
    %82 = vector.load %arg3[%c2_36, %c0_37, %c0_38] : memref<3x16x16xbf16, #tpu.memory_space<vmem>>, vector<1x16x16xbf16>
    %83 = vector.shape_cast %82 : vector<1x16x16xbf16> to vector<16x16xbf16>
    %84 = arith.truncf %81 : vector<16x128xf32> to vector<16x128xbf16>
    %cst_39 = arith.constant dense<0.000000e+00> : vector<16x128xf32>
    %85 = tpu.matmul %83, %84, %cst_39 {dimension_numbers = #tpu.dot_dimension_numbers<[1], [0], [0], [1], [0, 0, 1, 1], [], []>} : vector<16x16xbf16>, vector<16x128xbf16>, vector<16x128xf32> -> vector<16x128xf32>
    %86 = vector.extract_strided_slice %80 {offsets = [0, 0], sizes = [16, 1], strides = [1, 1]} : vector<16x3xf32> to vector<16x1xf32>
    %87 = vector.broadcast %86 : vector<16x1xf32> to vector<16x128xf32>
    %88 = arith.addf %85, %87 : vector<16x128xf32>
    %cst_40 = arith.constant 0.000000e+00 : f32
    %89 = vector.broadcast %cst_40 : f32 to vector<16x128xf32>
    %90 = arith.maximumf %88, %89 : vector<16x128xf32>
    %91 = vector.extract_strided_slice %80 {offsets = [0, 1], sizes = [16, 1], strides = [1, 1]} : vector<16x3xf32> to vector<16x1xf32>
    %92 = vector.broadcast %91 : vector<16x1xf32> to vector<16x128xf32>
    %93 = arith.mulf %90, %92 : vector<16x128xf32>
    %94 = vector.extract_strided_slice %80 {offsets = [0, 2], sizes = [16, 1], strides = [1, 1]} : vector<16x3xf32> to vector<16x1xf32>
    %95 = vector.broadcast %94 : vector<16x1xf32> to vector<16x128xf32>
    %96 = arith.addf %93, %95 : vector<16x128xf32>
    %c3 = arith.constant 3 : index
    %c0_41 = arith.constant 0 : index
    %c0_42 = arith.constant 0 : index
    %97 = vector.load %arg4[%c3, %c0_41, %c0_42] : memref<4x64x16xbf16, #tpu.memory_space<vmem>>, vector<1x64x16xbf16>
    %98 = vector.shape_cast %97 : vector<1x64x16xbf16> to vector<64x16xbf16>
    %99 = arith.truncf %96 : vector<16x128xf32> to vector<16x128xbf16>
    %cst_43 = arith.constant dense<0.000000e+00> : vector<64x128xf32>
    %100 = tpu.matmul %98, %99, %cst_43 {dimension_numbers = #tpu.dot_dimension_numbers<[1], [0], [0], [1], [0, 0, 1, 1], [], []>} : vector<64x16xbf16>, vector<16x128xbf16>, vector<64x128xf32> -> vector<64x128xf32>
    %101 = arith.addf %77, %100 : vector<64x128xf32>
    %102 = vector.broadcast %7 : vector<64x1xf32> to vector<64x128xf32>
    %103 = arith.addf %101, %102 : vector<64x128xf32>
    %cst_44 = arith.constant 0.000000e+00 : f32
    %104 = vector.broadcast %cst_44 : f32 to vector<64x128xf32>
    %105 = arith.maximumf %103, %104 : vector<64x128xf32>
    %106 = vector.broadcast %8 : vector<64x1xf32> to vector<64x128xf32>
    %107 = arith.mulf %105, %106 : vector<64x128xf32>
    %108 = vector.broadcast %9 : vector<64x1xf32> to vector<64x128xf32>
    %109 = arith.addf %107, %108 : vector<64x128xf32>
    %cst_45 = arith.constant dense<0.000000e+00> : vector<64xf32>
    %110 = vector.multi_reduction <add>, %109, %cst_45 [1] : vector<64x128xf32> to vector<64xf32>
    %111 = vector.shape_cast %110 : vector<64xf32> to vector<64x1xf32>
    %cst_46 = arith.constant 7.812500e-03 : f32
    %112 = vector.broadcast %cst_46 : f32 to vector<64x1xf32>
    %113 = arith.mulf %111, %112 : vector<64x1xf32>
    %c0_47 = arith.constant 0 : index
    %c0_48 = arith.constant 0 : index
    %114 = vector.load %arg5[%c0_47, %c0_48] : memref<16x64xbf16, #tpu.memory_space<vmem>>, vector<16x64xbf16>
    %115 = arith.truncf %113 : vector<64x1xf32> to vector<64x1xbf16>
    %cst_49 = arith.constant dense<0.000000e+00> : vector<16x1xf32>
    %116 = tpu.matmul %114, %115, %cst_49 {dimension_numbers = #tpu.dot_dimension_numbers<[1], [0], [0], [1], [0, 0, 1, 1], [], []>} : vector<16x64xbf16>, vector<64x1xbf16>, vector<16x1xf32> -> vector<16x1xf32>
    %117 = arith.addf %116, %11 : vector<16x1xf32>
    %cst_50 = arith.constant 0.000000e+00 : f32
    %118 = vector.broadcast %cst_50 : f32 to vector<16x1xf32>
    %119 = arith.maximumf %117, %118 : vector<16x1xf32>
    %c0_51 = arith.constant 0 : index
    %c0_52 = arith.constant 0 : index
    %120 = vector.load %arg6[%c0_51, %c0_52] : memref<64x16xbf16, #tpu.memory_space<vmem>>, vector<64x16xbf16>
    %121 = arith.truncf %119 : vector<16x1xf32> to vector<16x1xbf16>
    %cst_53 = arith.constant dense<0.000000e+00> : vector<64x1xf32>
    %122 = tpu.matmul %120, %121, %cst_53 {dimension_numbers = #tpu.dot_dimension_numbers<[1], [0], [0], [1], [0, 0, 1, 1], [], []>} : vector<64x16xbf16>, vector<16x1xbf16>, vector<64x1xf32> -> vector<64x1xf32>
    %123 = arith.addf %122, %10 : vector<64x1xf32>
    %124 = arith.negf %123 : vector<64x1xf32>
    %125 = math.exp %124 : vector<64x1xf32>
    %cst_54 = arith.constant 1.000000e+00 : f32
    %126 = vector.broadcast %cst_54 : f32 to vector<64x1xf32>
    %127 = arith.addf %126, %125 : vector<64x1xf32>
    %128 = arith.divf %126, %127 : vector<64x1xf32>
    %129 = vector.broadcast %128 : vector<64x1xf32> to vector<64x128xf32>
    %130 = arith.mulf %129, %109 : vector<64x128xf32>
    %131 = arith.addf %130, %19 : vector<64x128xf32>
    %c0_55 = arith.constant 0 : index
    %c0_56 = arith.constant 0 : index
    %c0_57 = arith.constant 0 : index
    %132 = vector.load %arg9[%c0_55, %c0_56, %c0_57] : memref<1x64x128xf32, #tpu.memory_space<vmem>>, vector<1x64x128xf32>
    %133 = vector.shape_cast %132 : vector<1x64x128xf32> to vector<64x128xf32>
    %134 = vector.shape_cast %131 : vector<64x128xf32> to vector<1x64x128xf32>
    tpu.vector_store %arg9[%c0_55, %c0_56, %c0_57], %134 {strides = array<i32>} : memref<1x64x128xf32, #tpu.memory_space<vmem>>, vector<1x64x128xf32>,
    return
  }
  func.func @transform_0(%arg0: i32) -> (i32, i32, i32) {
    %c0_i32 = arith.constant 0 : i32
    %c0_i32_0 = arith.constant 0 : i32
    %c0_i32_1 = arith.constant 0 : i32
    return %arg0, %c0_i32, %c0_i32_0 : i32, i32, i32
  }
  func.func @transform_1(%arg0: i32) -> (i32, i32) {
    %c0_i32 = arith.constant 0 : i32
    %c0_i32_0 = arith.constant 0 : i32
    %c0_i32_1 = arith.constant 0 : i32
    return %c0_i32, %c0_i32_0 : i32, i32
  }
  func.func @transform_2(%arg0: i32) -> (i32, i32, i32) {
    %c0_i32 = arith.constant 0 : i32
    %c0_i32_0 = arith.constant 0 : i32
    %c0_i32_1 = arith.constant 0 : i32
    %c0_i32_2 = arith.constant 0 : i32
    return %c0_i32, %c0_i32_0, %c0_i32_1 : i32, i32, i32
  }
  func.func @transform_3(%arg0: i32) -> (i32, i32, i32) {
    %c0_i32 = arith.constant 0 : i32
    %c0_i32_0 = arith.constant 0 : i32
    %c0_i32_1 = arith.constant 0 : i32
    %c0_i32_2 = arith.constant 0 : i32
    return %c0_i32, %c0_i32_0, %c0_i32_1 : i32, i32, i32
  }
  func.func @transform_4(%arg0: i32) -> (i32, i32) {
    %c0_i32 = arith.constant 0 : i32
    %c0_i32_0 = arith.constant 0 : i32
    %c0_i32_1 = arith.constant 0 : i32
    return %c0_i32, %c0_i32_0 : i32, i32
  }
  func.func @transform_5(%arg0: i32) -> (i32, i32) {
    %c0_i32 = arith.constant 0 : i32
    %c0_i32_0 = arith.constant 0 : i32
    %c0_i32_1 = arith.constant 0 : i32
    return %c0_i32, %c0_i32_0 : i32, i32
  }
  func.func @transform_6(%arg0: i32) -> (i32, i32) {
    %c0_i32 = arith.constant 0 : i32
    %c0_i32_0 = arith.constant 0 : i32
    %c0_i32_1 = arith.constant 0 : i32
    return %c0_i32, %c0_i32_0 : i32, i32
  }
  func.func @transform_7(%arg0: i32) -> (i32, i32, i32) {
    %c0_i32 = arith.constant 0 : i32
    %c0_i32_0 = arith.constant 0 : i32
    %c0_i32_1 = arith.constant 0 : i32
    %c0_i32_2 = arith.constant 0 : i32
    return %c0_i32, %c0_i32_0, %c0_i32_1 : i32, i32, i32
  }
  func.func @transform_8(%arg0: i32) -> (i32, i32, i32) {
    %c0_i32 = arith.constant 0 : i32
    %c0_i32_0 = arith.constant 0 : i32
    %c0_i32_1 = arith.constant 0 : i32
    return %arg0, %c0_i32, %c0_i32_0 : i32, i32, i32
  }
}

</mosaic_0001>

<llo_original>
// kernel: tpu_custom_call.1
$region0: #{tpu_custom_call.1}
  #allocation0 [shape = 'u32[]', space=smem, size = 0x4, offset = 0x4, fixed_abs, tag = 'smem constant byte address 0x4 - core index']
  #allocation1 [shape = 'u32[144,128]{1,0:T(1,128)}', space=vmem, size = 0x12000, scoped, tag = 'internal scratch']
  %s0 = inlined_call_operand.hbm [shape: bf16[2,32,128], index: 0, kind: input, shape index: {}]
  %s1 = inlined_call_operand.hbm [shape: bf16[128,32], index: 1, kind: input, shape index: {}]
  %s2 = inlined_call_operand.hbm [shape: bf16[3,16,16], index: 2, kind: input, shape index: {}]
  %s3 = inlined_call_operand.hbm [shape: bf16[4,64,16], index: 3, kind: input, shape index: {}]
  %s4 = inlined_call_operand.hbm [shape: bf16[16,64], index: 4, kind: input, shape index: {}]
  %s5 = inlined_call_operand.hbm [shape: bf16[64,16], index: 5, kind: input, shape index: {}]
  %s6 = inlined_call_operand.hbm [shape: f32[64,9], index: 6, kind: input, shape index: {}]
  %s7 = inlined_call_operand.hbm [shape: f32[3,16,3], index: 7, kind: input, shape index: {}]
  %s8 = inlined_call_operand.hbm [shape: f32[2,64,128], index: 8, kind: output, shape index: {}]
  %s9 = sld [smem:[#allocation0]]
  $region97: #{tpu_custom_call.1} parent=0
    _
  %s11 = ssub.s32 1, %s9
  %s12 = scalar_select 0, %s11, %s9
  $region1: #{tpu_custom_call.1} parent=0
    #allocation2 [shape = 'u8[16384]{0}', space=vmem, size = 0x4000, scoped, tag = 'input window, operand 0']
    #allocation3 [shape = 's32[2]{0}', space=sflag, size = 0x8, scoped, tag = 'scoped memory for tpu_custom_call.1']
    #allocation4 [shape = 's32[2]{0}', space=sflag, size = 0x8, scoped, tag = 'scoped memory for tpu_custom_call.1']
    #allocation5 [shape = 'u8[32768]{0}', space=vmem, size = 0x8000, scoped, tag = 'input window, operand 1, single buffered']
    #allocation6 [shape = 's32[1]{0}', space=sflag, size = 0x4, scoped, tag = 'scoped memory for tpu_custom_call.1']
    #allocation7 [shape = 'u8[12288]{0}', space=vmem, size = 0x3000, scoped, tag = 'input window, operand 2, single buffered']
    #allocation8 [shape = 'u8[65536]{0}', space=vmem, size = 0x10000, scoped, tag = 'input window, operand 3, single buffered']
    #allocation9 [shape = 's32[1]{0}', space=sflag, size = 0x4, scoped, tag = 'scoped memory for tpu_custom_call.1']
    #allocation10 [shape = 'u8[4096]{0}', space=vmem, size = 0x1000, scoped, tag = 'input window, operand 4, single buffered']
    #allocation11 [shape = 'u8[16384]{0}', space=vmem, size = 0x4000, scoped, tag = 'input window, operand 5, single buffered']
    #allocation12 [shape = 's32[1]{0}', space=sflag, size = 0x4, scoped, tag = 'scoped memory for tpu_custom_call.1']
    #allocation13 [shape = 'u8[32768]{0}', space=vmem, size = 0x8000, scoped, tag = 'input window, operand 6, single buffered']
    #allocation14 [shape = 'u8[24576]{0}', space=vmem, size = 0x6000, scoped, tag = 'input window, operand 7, single buffered']
    #allocation15 [shape = 's32[1]{0}', space=sflag, size = 0x4, scoped, tag = 'scoped memory for tpu_custom_call.1']
    #allocation16 [shape = 'u8[65536]{0}', space=vmem, size = 0x10000, scoped, tag = 'output window, operand 0']
    %13 = vsyncpa [#allocation3], 0
    %s14 = scalar_lea.sflag [#allocation3], 1
    %15 = vsyncpa %s14, 0
    %16 = vsyncpa [#allocation6], 0
    %17 = vsyncpa [#allocation9], 0
    %18 = vsyncpa [#allocation12], 0
    %19 = vsyncpa [#allocation15], 0
    %20 = vsyncpa [#allocation4], 0
    %s21 = scalar_lea.sflag [#allocation4], 1
    %22 = vsyncpa %s21, 0
    loop: start=0, step=1, limit=4
    $region2: #{tpu_custom_call.1} parent=1 // loop_pre_header
      _
    $region3: #{tpu_custom_call.1} parent=1 // loop_header
      %s24 = sphi 0, %s28
      %p25 = scmp.ge.s32.totalorder %s24, 4
      %s34 = sphi 0, %s36
      %s37 = sphi 0, %s34
      %s38 = sphi 0, %s37
      %s54 = sphi 0, %s38
      %s58 = sphi 0, %s58
      %s60 = sphi 0, %s58
      %s61 = sphi 0, %s60
      %s75 = sphi 0, %s61
      %s79 = sphi 0, %s79
      %s81 = sphi 0, %s79
      %s82 = sphi 0, %s81
      %s96 = sphi 0, %s82
      %s100 = sphi 0, %s100
      %s102 = sphi 0, %s100
      %s103 = sphi 0, %s102
      %s117 = sphi 0, %s103
      %s121 = sphi 0, %s121
      %s123 = sphi 0, %s121
      %s124 = sphi 0, %s123
      %s138 = sphi 0, %s124
      %s142 = sphi 0, %s142
      %s144 = sphi 0, %s142
      %s145 = sphi 0, %s144
      %s159 = sphi 0, %s145
      %s163 = sphi 0, %s163
      %s165 = sphi 0, %s163
      %s166 = sphi 0, %s165
      %s180 = sphi 0, %s166
      %s184 = sphi 0, %s184
      %s186 = sphi 0, %s184
      %s187 = sphi 0, %s186
      %s201 = sphi 0, %s187
      %s207 = sphi 0, %s209
      %s210 = sphi 0, %s207
      %s211 = sphi 0, %s210
      %s227 = sphi 0, %s211
    $region4: #{tpu_custom_call.1} parent=1 // loop_header_branch
      %27 = sbr.rel (%p25) target = $region8
    $region5: #{tpu_custom_call.1} parent=1 // loop_body
      %s29 = ssub.s32 %s24, 1
      %s30 = ssub.s32 %s24, 2
      %s31 = sadd.s32 %s24, 1
      %s32 = ssub.s32 %s24, %s31
      %p33 = scmp.eq.s32.totalorder %s32, 0
      %s35 = sadd.s32 %s34, 1
      %s36 = scalar_select %p33, %s34, %s35
      %p39 = pneg %p33
      %p40 = scmp.eq.s32.totalorder %s24, 1
      %p41 = por %p39, %p40
      %p42 = scmp.ne.s32.totalorder %s34, %s37
      %p43 = scmp.eq.s32.totalorder %s24, 0
      %p44 = por %p42, %p43
      %p45 = scmp.ne.s32.totalorder %s34, %s37
      %p46 = scmp.eq.s32.totalorder %s29, 1
      %p47 = por %p45, %p46
      %p48 = scmp.ne.s32.totalorder %s37, %s38
      %p49 = scmp.eq.s32.totalorder %s29, 0
      %p50 = por %p48, %p49
      %p51 = scmp.ne.s32.totalorder %s37, %s38
      %p52 = scmp.eq.s32.totalorder %s30, 1
      %p53 = por %p51, %p52
      %p55 = scmp.ne.s32.totalorder %s38, %s54
      %p56 = scmp.eq.s32.totalorder %s30, 0
      %p57 = por %p55, %p56
      %s59 = sadd.s32 %s58, 1
      %p62 = scmp.eq.s32.totalorder %s24, 1
      %p63 = scmp.ne.s32.totalorder %s58, %s60
      %p64 = scmp.eq.s32.totalorder %s24, 0
      %p65 = por %p63, %p64
      %p66 = scmp.ne.s32.totalorder %s58, %s60
      %p67 = scmp.eq.s32.totalorder %s29, 1
      %p68 = por %p66, %p67
      %p69 = scmp.ne.s32.totalorder %s60, %s61
      %p70 = scmp.eq.s32.totalorder %s29, 0
      %p71 = por %p69, %p70
      %p72 = scmp.ne.s32.totalorder %s60, %s61
      %p73 = scmp.eq.s32.totalorder %s30, 1
      %p74 = por %p72, %p73
      %p76 = scmp.ne.s32.totalorder %s61, %s75
      %p77 = scmp.eq.s32.totalorder %s30, 0
      %p78 = por %p76, %p77
      %s80 = sadd.s32 %s79, 1
      %p83 = scmp.eq.s32.totalorder %s24, 1
      %p84 = scmp.ne.s32.totalorder %s79, %s81
      %p85 = scmp.eq.s32.totalorder %s24, 0
      %p86 = por %p84, %p85
      %p87 = scmp.ne.s32.totalorder %s79, %s81
      %p88 = scmp.eq.s32.totalorder %s29, 1
      %p89 = por %p87, %p88
      %p90 = scmp.ne.s32.totalorder %s81, %s82
      %p91 = scmp.eq.s32.totalorder %s29, 0
      %p92 = por %p90, %p91
      %p93 = scmp.ne.s32.totalorder %s81, %s82
      %p94 = scmp.eq.s32.totalorder %s30, 1
      %p95 = por %p93, %p94
      %p97 = scmp.ne.s32.totalorder %s82, %s96
      %p98 = scmp.eq.s32.totalorder %s30, 0
      %p99 = por %p97, %p98
      %s101 = sadd.s32 %s100, 1
      %p104 = scmp.eq.s32.totalorder %s24, 1
      %p105 = scmp.ne.s32.totalorder %s100, %s102
      %p106 = scmp.eq.s32.totalorder %s24, 0
      %p107 = por %p105, %p106
      %p108 = scmp.ne.s32.totalorder %s100, %s102
      %p109 = scmp.eq.s32.totalorder %s29, 1
      %p110 = por %p108, %p109
      %p111 = scmp.ne.s32.totalorder %s102, %s103
      %p112 = scmp.eq.s32.totalorder %s29, 0
      %p113 = por %p111, %p112
      %p114 = scmp.ne.s32.totalorder %s102, %s103
      %p115 = scmp.eq.s32.totalorder %s30, 1
      %p116 = por %p114, %p115
      %p118 = scmp.ne.s32.totalorder %s103, %s117
      %p119 = scmp.eq.s32.totalorder %s30, 0
      %p120 = por %p118, %p119
      %s122 = sadd.s32 %s121, 1
      %p125 = scmp.eq.s32.totalorder %s24, 1
      %p126 = scmp.ne.s32.totalorder %s121, %s123
      %p127 = scmp.eq.s32.totalorder %s24, 0
      %p128 = por %p126, %p127
      %p129 = scmp.ne.s32.totalorder %s121, %s123
      %p130 = scmp.eq.s32.totalorder %s29, 1
      %p131 = por %p129, %p130
      %p132 = scmp.ne.s32.totalorder %s123, %s124
      %p133 = scmp.eq.s32.totalorder %s29, 0
      %p134 = por %p132, %p133
      %p135 = scmp.ne.s32.totalorder %s123, %s124
      %p136 = scmp.eq.s32.totalorder %s30, 1
      %p137 = por %p135, %p136
      %p139 = scmp.ne.s32.totalorder %s124, %s138
      %p140 = scmp.eq.s32.totalorder %s30, 0
      %p141 = por %p139, %p140
      %s143 = sadd.s32 %s142, 1
      %p146 = scmp.eq.s32.totalorder %s24, 1
      %p147 = scmp.ne.s32.totalorder %s142, %s144
      %p148 = scmp.eq.s32.totalorder %s24, 0
      %p149 = por %p147, %p148
      %p150 = scmp.ne.s32.totalorder %s142, %s144
      %p151 = scmp.eq.s32.totalorder %s29, 1
      %p152 = por %p150, %p151
      %p153 = scmp.ne.s32.totalorder %s144, %s145
      %p154 = scmp.eq.s32.totalorder %s29, 0
      %p155 = por %p153, %p154
      %p156 = scmp.ne.s32.totalorder %s144, %s145
      %p157 = scmp.eq.s32.totalorder %s30, 1
      %p158 = por %p156, %p157
      %p160 = scmp.ne.s32.totalorder %s145, %s159
      %p161 = scmp.eq.s32.totalorder %s30, 0
      %p162 = por %p160, %p161
      %s164 = sadd.s32 %s163, 1
      %p167 = scmp.eq.s32.totalorder %s24, 1
      %p168 = scmp.ne.s32.totalorder %s163, %s165
      %p169 = scmp.eq.s32.totalorder %s24, 0
      %p170 = por %p168, %p169
      %p171 = scmp.ne.s32.totalorder %s163, %s165
      %p172 = scmp.eq.s32.totalorder %s29, 1
      %p173 = por %p171, %p172
      %p174 = scmp.ne.s32.totalorder %s165, %s166
      %p175 = scmp.eq.s32.totalorder %s29, 0
      %p176 = por %p174, %p175
      %p177 = scmp.ne.s32.totalorder %s165, %s166
      %p178 = scmp.eq.s32.totalorder %s30, 1
      %p179 = por %p177, %p178
      %p181 = scmp.ne.s32.totalorder %s166, %s180
      %p182 = scmp.eq.s32.totalorder %s30, 0
      %p183 = por %p181, %p182
      %s185 = sadd.s32 %s184, 1
      %p188 = scmp.eq.s32.totalorder %s24, 1
      %p189 = scmp.ne.s32.totalorder %s184, %s186
      %p190 = scmp.eq.s32.totalorder %s24, 0
      %p191 = por %p189, %p190
      %p192 = scmp.ne.s32.totalorder %s184, %s186
      %p193 = scmp.eq.s32.totalorder %s29, 1
      %p194 = por %p192, %p193
      %p195 = scmp.ne.s32.totalorder %s186, %s187
      %p196 = scmp.eq.s32.totalorder %s29, 0
      %p197 = por %p195, %p196
      %p198 = scmp.ne.s32.totalorder %s186, %s187
      %p199 = scmp.eq.s32.totalorder %s30, 1
      %p200 = por %p198, %p199
      %p202 = scmp.ne.s32.totalorder %s187, %s201
      %p203 = scmp.eq.s32.totalorder %s30, 0
      %p204 = por %p202, %p203
      %s205 = ssub.s32 %s24, %s31
      %p206 = scmp.eq.s32.totalorder %s205, 0
      %s208 = sadd.s32 %s207, 1
      %s209 = scalar_select %p206, %s207, %s208
      %p212 = pneg %p206
      %p213 = scmp.eq.s32.totalorder %s24, 1
      %p214 = por %p212, %p213
      %p215 = scmp.ne.s32.totalorder %s207, %s210
      %p216 = scmp.eq.s32.totalorder %s24, 0
      %p217 = por %p215, %p216
      %p218 = scmp.ne.s32.totalorder %s207, %s210
      %p219 = scmp.eq.s32.totalorder %s29, 1
      %p220 = por %p218, %p219
      %p221 = scmp.ne.s32.totalorder %s210, %s211
      %p222 = scmp.eq.s32.totalorder %s29, 0
      %p223 = por %p221, %p222
      %p224 = scmp.ne.s32.totalorder %s210, %s211
      %p225 = scmp.eq.s32.totalorder %s30, 1
      %p226 = por %p224, %p225
      %p228 = scmp.ne.s32.totalorder %s211, %s227
      %p229 = scmp.eq.s32.totalorder %s30, 0
      %p230 = por %p228, %p229
      %p231 = scmp.le.s32.totalorder 1, %s24
      %p232 = scmp.lt.s32.totalorder %s24, 3
      %p233 = pnand %p231, %p232
      %p234 = pneg %p233
      // Predicated region
      $region9: #{tpu_custom_call.1} parent=5 // pred_check
        _
      $region10: #{tpu_custom_call.1} parent=5 // pred_check_branch
        %236 = sbr.rel (%p233) target = $region12
      $region11: #{tpu_custom_call.1} parent=5 // pred_region
        %s237 = ssub.s32 %s24, 1
        // Predicated region
        $region13: #{tpu_custom_call.1} parent=11 // pred_check
          %p238 = pneg %p71
        $region14: #{tpu_custom_call.1} parent=11 // pred_check_branch
          %240 = sbr.rel (%p238) target = $region16
        $region15: #{tpu_custom_call.1} parent=11 // pred_region
          %s242 = ssub.s32 1024, 1024
          %243 = vsyncadd [#allocation6], %s242
          %s244 = sshll.u32 [#allocation5], 4
          %s245 = int_to_ptr.vmem [resolvable:$true] %s244
          %250 = dma.hbm_to_vmem [thread:$0]  %s1, 1024, %s245, [#allocation6], 64, 64, 4
        $region16: #{tpu_custom_call.1} parent=11 // pred_fallthru
          _
        // Predicated region
        $region17: #{tpu_custom_call.1} parent=11 // pred_check
          %p251 = pneg %p92
        $region18: #{tpu_custom_call.1} parent=11 // pred_check_branch
          %253 = sbr.rel (%p251) target = $region20
        $region19: #{tpu_custom_call.1} parent=11 // pred_region
          %s255 = ssub.s32 384, 384
          %256 = vsyncadd [#allocation6], %s255
          %s257 = sshll.u32 [#allocation7], 4
          %s258 = int_to_ptr.vmem [resolvable:$true] %s257
          %263 = dma.hbm_to_vmem [thread:$0]  %s2, 384, %s258, [#allocation6], 64, 64, 4
        $region20: #{tpu_custom_call.1} parent=11 // pred_fallthru
          _
        // Predicated region
        $region21: #{tpu_custom_call.1} parent=11 // pred_check
          %p264 = pneg %p113
        $region22: #{tpu_custom_call.1} parent=11 // pred_check_branch
          %266 = sbr.rel (%p264) target = $region24
        $region23: #{tpu_custom_call.1} parent=11 // pred_region
          %s268 = ssub.s32 2048, 2048
          %269 = vsyncadd [#allocation9], %s268
          %s270 = sshll.u32 [#allocation8], 4
          %s271 = int_to_ptr.vmem [resolvable:$true] %s270
          %276 = dma.hbm_to_vmem [thread:$0]  %s3, 2048, %s271, [#allocation9], 64, 64, 4
        $region24: #{tpu_custom_call.1} parent=11 // pred_fallthru
          _
        // Predicated region
        $region25: #{tpu_custom_call.1} parent=11 // pred_check
          %p277 = pneg %p134
        $region26: #{tpu_custom_call.1} parent=11 // pred_check_branch
          %279 = sbr.rel (%p277) target = $region28
        $region27: #{tpu_custom_call.1} parent=11 // pred_region
          %s281 = ssub.s32 128, 128
          %282 = vsyncadd [#allocation9], %s281
          %s283 = sshll.u32 [#allocation10], 4
          %s284 = int_to_ptr.vmem [resolvable:$true] %s283
          %289 = dma.hbm_to_vmem [thread:$0]  %s4, 128, %s284, [#allocation9], 64, 64, 4
        $region28: #{tpu_custom_call.1} parent=11 // pred_fallthru
          _
        // Predicated region
        $region29: #{tpu_custom_call.1} parent=11 // pred_check
          %p290 = pneg %p155
        $region30: #{tpu_custom_call.1} parent=11 // pred_check_branch
          %292 = sbr.rel (%p290) target = $region32
        $region31: #{tpu_custom_call.1} parent=11 // pred_region
          %s294 = ssub.s32 512, 512
          %295 = vsyncadd [#allocation12], %s294
          %s296 = sshll.u32 [#allocation11], 4
          %s297 = int_to_ptr.vmem [resolvable:$true] %s296
          %302 = dma.hbm_to_vmem [thread:$0]  %s5, 512, %s297, [#allocation12], 64, 64, 4
        $region32: #{tpu_custom_call.1} parent=11 // pred_fallthru
          _
        // Predicated region
        $region33: #{tpu_custom_call.1} parent=11 // pred_check
          %p303 = pneg %p176
        $region34: #{tpu_custom_call.1} parent=11 // pred_check_branch
          %305 = sbr.rel (%p303) target = $region36
        $region35: #{tpu_custom_call.1} parent=11 // pred_region
          %s307 = ssub.s32 1024, 1024
          %308 = vsyncadd [#allocation12], %s307
          %s309 = sshll.u32 [#allocation13], 4
          %s310 = int_to_ptr.vmem [resolvable:$true] %s309
          %315 = dma.hbm_to_vmem [thread:$0]  %s6, 1024, %s310, [#allocation12], 128, 128, 8
        $region36: #{tpu_custom_call.1} parent=11 // pred_fallthru
          _
        // Predicated region
        $region37: #{tpu_custom_call.1} parent=11 // pred_check
          %p316 = pneg %p197
        $region38: #{tpu_custom_call.1} parent=11 // pred_check_branch
          %318 = sbr.rel (%p316) target = $region40
        $region39: #{tpu_custom_call.1} parent=11 // pred_region
          %s320 = ssub.s32 768, 768
          %321 = vsyncadd [#allocation15], %s320
          %s322 = sshll.u32 [#allocation14], 4
          %s323 = int_to_ptr.vmem [resolvable:$true] %s322
          %328 = dma.hbm_to_vmem [thread:$0]  %s7, 768, %s323, [#allocation15], 128, 128, 8
        $region40: #{tpu_custom_call.1} parent=11 // pred_fallthru
          _
      $region12: #{tpu_custom_call.1} parent=5 // pred_fallthru
        _
      %p329 = scmp.lt.s32.totalorder %s24, 2
      // Predicated region
      $region41: #{tpu_custom_call.1} parent=5 // pred_check
        %p330 = pneg %p329
      $region42: #{tpu_custom_call.1} parent=5 // pred_check_branch
        %332 = sbr.rel (%p330) target = $region44
      $region43: #{tpu_custom_call.1} parent=5 // pred_region
        // Predicated region
        $region45: #{tpu_custom_call.1} parent=43 // pred_check
          %p333 = pneg %p44
        $region46: #{tpu_custom_call.1} parent=43 // pred_check_branch
          %335 = sbr.rel (%p333) target = $region48
        $region47: #{tpu_custom_call.1} parent=43 // pred_region
          %s336 = sand.u32 %s34, 1
          %s337 = scalar_lea.sflag [#allocation3], %s336
          %s338 = sand.u32 %s34, 1
          %s339 = smul.addr %s338, 16
          %s340 = scalar_lea.vmem [#allocation2], %s339
          %s342 = ssub.s32 256, 256
          %343 = vsyncadd %s337, %s342
          %s344 = smul.addr %s24, 4
          %s345 = smul.addr %s344, 64
          %s346 = scalar_lea.hbm %s0, %s345
          %s347 = sshll.u32 %s340, 4
          %s348 = int_to_ptr.vmem [resolvable:$true] %s347
          %353 = dma.hbm_to_vmem [thread:$0]  %s346, 256, %s348, %s337, 64, 64, 4
        $region48: #{tpu_custom_call.1} parent=43 // pred_fallthru
          _
      $region44: #{tpu_custom_call.1} parent=5 // pred_fallthru
        _
      %p354 = scmp.le.s32.totalorder 1, %s24
      %p355 = scmp.lt.s32.totalorder %s24, 3
      %p356 = pnand %p354, %p355
      %p357 = pneg %p356
      // Predicated region
      $region49: #{tpu_custom_call.1} parent=5 // pred_check
        _
      $region50: #{tpu_custom_call.1} parent=5 // pred_check_branch
        %359 = sbr.rel (%p356) target = $region52
      $region51: #{tpu_custom_call.1} parent=5 // pred_region
        %s360 = ssub.s32 %s24, 1
        %s361 = sand.u32 %s37, 1
        %s362 = scalar_lea.sflag [#allocation3], %s361
        %s363 = sand.u32 %s37, 1
        %s364 = smul.addr %s363, 16
        %s365 = scalar_lea.vmem [#allocation2], %s364
        // Predicated region
        $region53: #{tpu_custom_call.1} parent=51 // pred_check
          %p366 = pneg %p50
        $region54: #{tpu_custom_call.1} parent=51 // pred_check_branch
          %368 = sbr.rel (%p366) target = $region56
        $region55: #{tpu_custom_call.1} parent=51 // pred_region
          %369 = dma.done %s362, 256
        $region56: #{tpu_custom_call.1} parent=51 // pred_fallthru
          _
        // Predicated region
        $region57: #{tpu_custom_call.1} parent=51 // pred_check
          %p370 = pneg %p71
        $region58: #{tpu_custom_call.1} parent=51 // pred_check_branch
          %372 = sbr.rel (%p370) target = $region60
        $region59: #{tpu_custom_call.1} parent=51 // pred_region
          %373 = dma.done [#allocation6], 1024
        $region60: #{tpu_custom_call.1} parent=51 // pred_fallthru
          _
        // Predicated region
        $region61: #{tpu_custom_call.1} parent=51 // pred_check
          %p374 = pneg %p92
        $region62: #{tpu_custom_call.1} parent=51 // pred_check_branch
          %376 = sbr.rel (%p374) target = $region64
        $region63: #{tpu_custom_call.1} parent=51 // pred_region
          %377 = dma.done [#allocation6], 384
        $region64: #{tpu_custom_call.1} parent=51 // pred_fallthru
          _
        // Predicated region
        $region65: #{tpu_custom_call.1} parent=51 // pred_check
          %p378 = pneg %p113
        $region66: #{tpu_custom_call.1} parent=51 // pred_check_branch
          %380 = sbr.rel (%p378) target = $region68
        $region67: #{tpu_custom_call.1} parent=51 // pred_region
          %381 = dma.done [#allocation9], 2048
        $region68: #{tpu_custom_call.1} parent=51 // pred_fallthru
          _
        // Predicated region
        $region69: #{tpu_custom_call.1} parent=51 // pred_check
          %p382 = pneg %p134
        $region70: #{tpu_custom_call.1} parent=51 // pred_check_branch
          %384 = sbr.rel (%p382) target = $region72
        $region71: #{tpu_custom_call.1} parent=51 // pred_region
          %385 = dma.done [#allocation9], 128
        $region72: #{tpu_custom_call.1} parent=51 // pred_fallthru
          _
        // Predicated region
        $region73: #{tpu_custom_call.1} parent=51 // pred_check
          %p386 = pneg %p155
        $region74: #{tpu_custom_call.1} parent=51 // pred_check_branch
          %388 = sbr.rel (%p386) target = $region76
        $region75: #{tpu_custom_call.1} parent=51 // pred_region
          %389 = dma.done [#allocation12], 512
        $region76: #{tpu_custom_call.1} parent=51 // pred_fallthru
          _
        // Predicated region
        $region77: #{tpu_custom_call.1} parent=51 // pred_check
          %p390 = pneg %p176
        $region78: #{tpu_custom_call.1} parent=51 // pred_check_branch
          %392 = sbr.rel (%p390) target = $region80
        $region79: #{tpu_custom_call.1} parent=51 // pred_region
          %393 = dma.done [#allocation12], 1024
        $region80: #{tpu_custom_call.1} parent=51 // pred_fallthru
          _
        // Predicated region
        $region81: #{tpu_custom_call.1} parent=51 // pred_check
          %p394 = pneg %p197
        $region82: #{tpu_custom_call.1} parent=51 // pred_check_branch
          %396 = sbr.rel (%p394) target = $region84
        $region83: #{tpu_custom_call.1} parent=51 // pred_region
          %397 = dma.done [#allocation15], 768
        $region84: #{tpu_custom_call.1} parent=51 // pred_fallthru
          _
        %s398 = sand.u32 %s37, 1
        %s399 = scalar_lea.sflag [#allocation3], %s398
        %s400 = sand.u32 %s37, 1
        %s401 = smul.addr %s400, 16
        %s402 = scalar_lea.vmem [#allocation2], %s401
        %p403 = pneg %p50
        %p404 = pneg %p47
        %p405 = pneg %p71
        %p406 = pneg %p68
        %p407 = pneg %p92
        %p408 = pneg %p89
        %p409 = pneg %p113
        %p410 = pneg %p110
        %p411 = pneg %p134
        %p412 = pneg %p131
        %p413 = pneg %p155
        %p414 = pneg %p152
        %p415 = pneg %p176
        %p416 = pneg %p173
        %p417 = pneg %p197
        %p418 = pneg %p194
        %p419 = pneg %p223
        %p420 = pneg %p220
        %s421 = sand.u32 %s210, 1
        %s422 = scalar_lea.sflag [#allocation4], %s421
        %s423 = sand.u32 %s210, 1
        %s424 = smul.addr %s423, 64
        %s425 = scalar_lea.vmem [#allocation16], %s424
        %v427 = vld [vmem:[%s365] sm:$0xf]
        %v428 = vld [vmem:[%s365 + $0x4] sm:$0xf]
        %v429 = vld [vmem:[%s365 + $0x8] sm:$0xf]
        %v430 = vld [vmem:[%s365 + $0xc] sm:$0xf]
        %v431 = vld [vmem:[#allocation13] sm:$0xff]
        %v432 = vld [vmem:[#allocation13 + $0x8] sm:$0xff]
        %v433 = vld [vmem:[#allocation13 + $0x10] sm:$0xff]
        %v434 = vld [vmem:[#allocation13 + $0x18] sm:$0xff]
        %v435 = vld [vmem:[#allocation13 + $0x20] sm:$0xff]
        %v436 = vld [vmem:[#allocation13 + $0x28] sm:$0xff]
        %v437 = vld [vmem:[#allocation13 + $0x30] sm:$0xff]
        %v438 = vld [vmem:[#allocation13 + $0x38] sm:$0xff]
        %v439 = vld [vmem:[#allocation5] sm:$0xf]
        %v440 = vld [vmem:[#allocation5 + $0x4] sm:$0xf]
        %v441 = vld [vmem:[#allocation5 + $0x8] sm:$0xf]
        %v442 = vld [vmem:[#allocation5 + $0xc] sm:$0xf]
        %v443 = vld [vmem:[#allocation5 + $0x10] sm:$0xf]
        %v444 = vld [vmem:[#allocation5 + $0x14] sm:$0xf]
        %v445 = vld [vmem:[#allocation5 + $0x18] sm:$0xf]
        %v446 = vld [vmem:[#allocation5 + $0x1c] sm:$0xf]
        %v447 = vld [vmem:[#allocation5 + $0x20] sm:$0xf]
        %v448 = vld [vmem:[#allocation5 + $0x24] sm:$0xf]
        %v449 = vld [vmem:[#allocation5 + $0x28] sm:$0xf]
        %v450 = vld [vmem:[#allocation5 + $0x2c] sm:$0xf]
        %v451 = vld [vmem:[#allocation5 + $0x30] sm:$0xf]
        %v452 = vld [vmem:[#allocation5 + $0x34] sm:$0xf]
        %v453 = vld [vmem:[#allocation5 + $0x38] sm:$0xf]
        %v454 = vld [vmem:[#allocation5 + $0x3c] sm:$0xf]
        %v471 = vunpack.c.l.b16 %v439
        %v472 = vunpack.c.l.b16 %v440
        %v473 = vunpack.c.l.b16 %v441
        %v474 = vunpack.c.l.b16 %v442
        %v475 = vunpack.c.l.b16 %v443
        %v476 = vunpack.c.l.b16 %v444
        %v477 = vunpack.c.l.b16 %v445
        %v478 = vunpack.c.l.b16 %v446
        %v479 = vunpack.c.l.b16 %v447
        %v480 = vunpack.c.l.b16 %v448
        %v481 = vunpack.c.l.b16 %v449
        %v482 = vunpack.c.l.b16 %v450
        %v483 = vunpack.c.l.b16 %v451
        %v484 = vunpack.c.l.b16 %v452
        %v485 = vunpack.c.l.b16 %v453
        %v486 = vunpack.c.l.b16 %v454
        %v487 = vpack.c.b16 %v472, %v471
        %v488 = vpack.c.b16 %v474, %v473
        %v489 = vpack.c.b16 %v476, %v475
        %v490 = vpack.c.b16 %v478, %v477
        %v491 = vpack.c.b16 %v480, %v479
        %v492 = vpack.c.b16 %v482, %v481
        %v493 = vpack.c.b16 %v484, %v483
        %v494 = vpack.c.b16 %v486, %v485
        %v499 = vunpack.c.l.b16 %v427
        %v500 = vunpack.c.l.b16 %v428
        %v501 = vunpack.c.l.b16 %v429
        %v502 = vunpack.c.l.b16 %v430
        %v503 = vpack.c.b16 %v500, %v499
        %v504 = vpack.c.b16 %v502, %v501
        %vm507 = vcmask 261120
        %v509 = vsel %vm507, %v487, 0
        %v512 = vsel %vm507, %v488, 0
        %v515 = vsel %vm507, %v489, 0
        %v518 = vsel %vm507, %v490, 0
        %v521 = vsel %vm507, %v491, 0
        %v524 = vsel %vm507, %v492, 0
        %v527 = vsel %vm507, %v493, 0
        %v530 = vsel %vm507, %v494, 0
        %532 = vmatprep.subr.bf16.mxu0 0
        %533 = vmatpush1.bf16.msra.mxu0 %v503
        %534 = vmatprep.subr.bf16.mxu0 0
        %535 = vmatpush1.bf16.msra.mxu0 %v504
        %536 = vmatprep.subr.bf16.mxu0 0
        %537 = vmatpush1.bf16.msra.mxu0 0
        %538 = vmatprep.subr.bf16.mxu0 0
        %539 = vmatpush1.bf16.msra.mxu0 0
        %540 = vmatprep.subr.bf16.mxu0 0
        %541 = vmatpush1.bf16.msra.mxu0 0
        %542 = vmatprep.subr.bf16.mxu0 0
        %543 = vmatpush1.bf16.msra.mxu0 0
        %544 = vmatprep.subr.bf16.mxu0 0
        %545 = vmatpush1.bf16.msra.mxu0 0
        %546 = vmatprep.subr.bf16.mxu0 0
        %547 = vmatpush1.bf16.msra.mxu0 0
        %548 = vmatprep.subr.bf16.mxu0 0
        %549 = vmatpush1.bf16.msra.mxu0 0
        %550 = vmatprep.subr.bf16.mxu0 0
        %551 = vmatpush1.bf16.msra.mxu0 0
        %552 = vmatprep.subr.bf16.mxu0 0
        %553 = vmatpush1.bf16.msra.mxu0 0
        %554 = vmatprep.subr.bf16.mxu0 0
        %555 = vmatpush1.bf16.msra.mxu0 0
        %556 = vmatprep.subr.bf16.mxu0 0
        %557 = vmatpush1.bf16.msra.mxu0 0
        %558 = vmatprep.subr.bf16.mxu0 0
        %559 = vmatpush1.bf16.msra.mxu0 0
        %560 = vmatprep.subr.bf16.mxu0 0
        %561 = vmatpush1.bf16.msra.mxu0 0
        %562 = vmatprep.subr.bf16.mxu0 0
        %563 = vmatpush1.bf16.msra.mxu0 0
        %564 = vmatprep.mubr.bf16.mxu0 0
        %565 = vmatmul.mubr.bf16.gmra.mrb[0].mxu0 %v509
        %v566 = vpop.f32.mrb[0].mxu0
        %v567 = vadd.f32 0.0, %v566
        %v568 = vpop.f32.mrb[0].mxu0
        %v569 = vpop.f32.mrb[0].mxu0
        %v570 = vadd.f32 0.0, %v569
        %v571 = vpop.f32.mrb[0].mxu0
        %572 = vmatprep.mubr.bf16.mxu0 0
        %573 = vmatmul.mubr.bf16.gmra.mrb[0].mxu0 %v512
        %v574 = vpop.f32.mrb[0].mxu0
        %v575 = vadd.f32 0.0, %v574
        %v576 = vpop.f32.mrb[0].mxu0
        %v577 = vpop.f32.mrb[0].mxu0
        %v578 = vadd.f32 0.0, %v577
        %v579 = vpop.f32.mrb[0].mxu0
        %580 = vmatprep.mubr.bf16.mxu0 0
        %581 = vmatmul.mubr.bf16.gmra.mrb[0].mxu0 %v515
        %v582 = vpop.f32.mrb[0].mxu0
        %v583 = vadd.f32 0.0, %v582
        %v584 = vpop.f32.mrb[0].mxu0
        %v585 = vpop.f32.mrb[0].mxu0
        %v586 = vadd.f32 0.0, %v585
        %v587 = vpop.f32.mrb[0].mxu0
        %588 = vmatprep.mubr.bf16.mxu0 0
        %589 = vmatmul.mubr.bf16.gmra.mrb[0].mxu0 %v518
        %v590 = vpop.f32.mrb[0].mxu0
        %v591 = vadd.f32 0.0, %v590
        %v592 = vpop.f32.mrb[0].mxu0
        %v593 = vpop.f32.mrb[0].mxu0
        %v594 = vadd.f32 0.0, %v593
        %v595 = vpop.f32.mrb[0].mxu0
        %596 = vmatprep.mubr.bf16.mxu0 0
        %597 = vmatmul.mubr.bf16.gmra.mrb[0].mxu0 %v521
        %v598 = vpop.f32.mrb[0].mxu0
        %v599 = vadd.f32 0.0, %v598
        %v600 = vpop.f32.mrb[0].mxu0
        %v601 = vpop.f32.mrb[0].mxu0
        %v602 = vadd.f32 0.0, %v601
        %v603 = vpop.f32.mrb[0].mxu0
        %604 = vmatprep.mubr.bf16.mxu0 0
        %605 = vmatmul.mubr.bf16.gmra.mrb[0].mxu0 %v524
        %v606 = vpop.f32.mrb[0].mxu0
        %v607 = vadd.f32 0.0, %v606
        %v608 = vpop.f32.mrb[0].mxu0
        %v609 = vpop.f32.mrb[0].mxu0
        %v610 = vadd.f32 0.0, %v609
        %v611 = vpop.f32.mrb[0].mxu0
        %612 = vmatprep.mubr.bf16.mxu0 0
        %613 = vmatmul.mubr.bf16.gmra.mrb[0].mxu0 %v527
        %v614 = vpop.f32.mrb[0].mxu0
        %v615 = vadd.f32 0.0, %v614
        %v616 = vpop.f32.mrb[0].mxu0
        %v617 = vpop.f32.mrb[0].mxu0
        %v618 = vadd.f32 0.0, %v617
        %v619 = vpop.f32.mrb[0].mxu0
        %620 = vmatprep.mubr.bf16.mxu0 0
        %621 = vmatmul.mubr.bf16.gmra.mrb[0].mxu0 %v530
        %v622 = vpop.f32.mrb[0].mxu0
        %v623 = vadd.f32 0.0, %v622
        %v624 = vpop.f32.mrb[0].mxu0
        %v625 = vpop.f32.mrb[0].mxu0
        %v626 = vadd.f32 0.0, %v625
        %v627 = vpop.f32.mrb[0].mxu0
        %628 = vdwg.mxu0
        %630 = vset.pattern.permute.xlu0 0
        %631 = vperm.xlu0 %630, %v431
        %v632 = vpop.permute.xlu0 %631
        %635 = vset.pattern.permute.xlu0 0
        %636 = vperm.xlu0 %635, %v432
        %v637 = vpop.permute.xlu0 %636
        %640 = vset.pattern.permute.xlu0 0
        %641 = vperm.xlu0 %640, %v433
        %v642 = vpop.permute.xlu0 %641
        %645 = vset.pattern.permute.xlu0 0
        %646 = vperm.xlu0 %645, %v434
        %v647 = vpop.permute.xlu0 %646
        %650 = vset.pattern.permute.xlu0 0
        %651 = vperm.xlu0 %650, %v435
        %v652 = vpop.permute.xlu0 %651
        %655 = vset.pattern.permute.xlu0 0
        %656 = vperm.xlu0 %655, %v436
        %v657 = vpop.permute.xlu0 %656
        %660 = vset.pattern.permute.xlu0 0
        %661 = vperm.xlu0 %660, %v437
        %v662 = vpop.permute.xlu0 %661
        %665 = vset.pattern.permute.xlu0 0
        %666 = vperm.xlu0 %665, %v438
        %v667 = vpop.permute.xlu0 %666
        %v669 = vadd.f32 %v567, %v632
        %v670 = vadd.f32 %v570, %v637
        %v671 = vadd.f32 %v575, %v642
        %v672 = vadd.f32 %v578, %v647
        %v673 = vadd.f32 %v583, %v652
        %v674 = vadd.f32 %v586, %v657
        %v675 = vadd.f32 %v591, %v662
        %v676 = vadd.f32 %v594, %v667
        %677 = vset.pattern.permute.xlu0 1
        %678 = vperm.xlu0 %677, %v431
        %v679 = vpop.permute.xlu0 %678
        %681 = vset.pattern.permute.xlu0 1
        %682 = vperm.xlu0 %681, %v432
        %v683 = vpop.permute.xlu0 %682
        %685 = vset.pattern.permute.xlu0 1
        %686 = vperm.xlu0 %685, %v433
        %v687 = vpop.permute.xlu0 %686
        %689 = vset.pattern.permute.xlu0 1
        %690 = vperm.xlu0 %689, %v434
        %v691 = vpop.permute.xlu0 %690
        %693 = vset.pattern.permute.xlu0 1
        %694 = vperm.xlu0 %693, %v435
        %v695 = vpop.permute.xlu0 %694
        %697 = vset.pattern.permute.xlu0 1
        %698 = vperm.xlu0 %697, %v436
        %v699 = vpop.permute.xlu0 %698
        %701 = vset.pattern.permute.xlu0 1
        %702 = vperm.xlu0 %701, %v437
        %v703 = vpop.permute.xlu0 %702
        %705 = vset.pattern.permute.xlu0 1
        %706 = vperm.xlu0 %705, %v438
        %v707 = vpop.permute.xlu0 %706
        %v709 = vadd.f32 %v599, %v679
        %v710 = vadd.f32 %v602, %v683
        %v711 = vadd.f32 %v607, %v687
        %v712 = vadd.f32 %v610, %v691
        %v713 = vadd.f32 %v615, %v695
        %v714 = vadd.f32 %v618, %v699
        %v715 = vadd.f32 %v623, %v703
        %v716 = vadd.f32 %v626, %v707
        %v717 = vmax.f32 %v669, 0.0
        %v718 = vmax.f32 %v670, 0.0
        %v719 = vmax.f32 %v671, 0.0
        %v720 = vmax.f32 %v672, 0.0
        %v721 = vmax.f32 %v673, 0.0
        %v722 = vmax.f32 %v674, 0.0
        %v723 = vmax.f32 %v675, 0.0
        %v724 = vmax.f32 %v676, 0.0
        %725 = vset.pattern.permute.xlu0 2
        %726 = vperm.xlu0 %725, %v431
        %v727 = vpop.permute.xlu0 %726
        %729 = vset.pattern.permute.xlu0 2
        %730 = vperm.xlu0 %729, %v432
        %v731 = vpop.permute.xlu0 %730
        %733 = vset.pattern.permute.xlu0 2
        %734 = vperm.xlu0 %733, %v433
        %v735 = vpop.permute.xlu0 %734
        %737 = vset.pattern.permute.xlu0 2
        %738 = vperm.xlu0 %737, %v434
        %v739 = vpop.permute.xlu0 %738
        %741 = vset.pattern.permute.xlu0 2
        %742 = vperm.xlu0 %741, %v435
        %v743 = vpop.permute.xlu0 %742
        %745 = vset.pattern.permute.xlu0 2
        %746 = vperm.xlu0 %745, %v436
        %v747 = vpop.permute.xlu0 %746
        %749 = vset.pattern.permute.xlu0 2
        %750 = vperm.xlu0 %749, %v437
        %v751 = vpop.permute.xlu0 %750
        %753 = vset.pattern.permute.xlu0 2
        %754 = vperm.xlu0 %753, %v438
        %v755 = vpop.permute.xlu0 %754
        %v757 = vmul.f32 %v717, %v727
        %v758 = vmul.f32 %v718, %v731
        %v759 = vmul.f32 %v719, %v735
        %v760 = vmul.f32 %v720, %v739
        %v761 = vmul.f32 %v721, %v743
        %v762 = vmul.f32 %v722, %v747
        %v763 = vmul.f32 %v723, %v751
        %v764 = vmul.f32 %v724, %v755
        %765 = vset.pattern.permute.xlu0 3
        %766 = vperm.xlu0 %765, %v431
        %v767 = vpop.permute.xlu0 %766
        %769 = vset.pattern.permute.xlu0 3
        %770 = vperm.xlu0 %769, %v432
        %v771 = vpop.permute.xlu0 %770
        %773 = vset.pattern.permute.xlu0 3
        %774 = vperm.xlu0 %773, %v433
        %v775 = vpop.permute.xlu0 %774
        %777 = vset.pattern.permute.xlu0 3
        %778 = vperm.xlu0 %777, %v434
        %v779 = vpop.permute.xlu0 %778
        %781 = vset.pattern.permute.xlu0 3
        %782 = vperm.xlu0 %781, %v435
        %v783 = vpop.permute.xlu0 %782
        %785 = vset.pattern.permute.xlu0 3
        %786 = vperm.xlu0 %785, %v436
        %v787 = vpop.permute.xlu0 %786
        %789 = vset.pattern.permute.xlu0 3
        %790 = vperm.xlu0 %789, %v437
        %v791 = vpop.permute.xlu0 %790
        %793 = vset.pattern.permute.xlu0 3
        %794 = vperm.xlu0 %793, %v438
        %v795 = vpop.permute.xlu0 %794
        %v797 = vadd.f32 %v757, %v767
        %v798 = vadd.f32 %v758, %v771
        %v799 = vadd.f32 %v759, %v775
        %v800 = vadd.f32 %v760, %v779
        %v801 = vadd.f32 %v761, %v783
        %v802 = vadd.f32 %v762, %v787
        %v803 = vadd.f32 %v763, %v791
        %v804 = vadd.f32 %v764, %v795
        %v805 = vld [vmem:[#allocation8] sm:$0xf]
        %v806 = vld [vmem:[#allocation8 + $0x4] sm:$0xf]
        %v807 = vld [vmem:[#allocation8 + $0x8] sm:$0xf]
        %v808 = vld [vmem:[#allocation8 + $0xc] sm:$0xf]
        %v809 = vld [vmem:[#allocation8 + $0x10] sm:$0xf]
        %v810 = vld [vmem:[#allocation8 + $0x14] sm:$0xf]
        %v811 = vld [vmem:[#allocation8 + $0x18] sm:$0xf]
        %v812 = vld [vmem:[#allocation8 + $0x1c] sm:$0xf]
        %v813 = vpack.c.bf16 %v798, %v797
        %v814 = vld [vmem:[#allocation14] sm:$0xff]
        %v815 = vld [vmem:[#allocation14 + $0x8] sm:$0xff]
        %v816 = vld [vmem:[#allocation7] sm:$0xf]
        %v817 = vld [vmem:[#allocation7 + $0x4] sm:$0xf]
        %v818 = vpack.c.bf16 %v800, %v799
        %820 = vset.pattern.permute.xlu0 0
        %821 = vperm.xlu0 %820, %v814
        %v822 = vpop.permute.xlu0 %821
        %825 = vset.pattern.permute.xlu0 0
        %826 = vperm.xlu0 %825, %v815
        %v827 = vpop.permute.xlu0 %826
        %v831 = vunpack.c.l.b16 %v816
        %v832 = vunpack.c.l.b16 %v817
        %v833 = vpack.c.b16 %v832, %v831
        %vm834 = vcmask 130048
        %v836 = vsel %vm834, %v833, 0
        %838 = vmatprep.subr.bf16.mxu0 0
        %839 = vmatpush1.bf16.msra.mxu0 %v818
        %840 = vmatprep.subr.bf16.mxu0 0
        %841 = vmatpush1.bf16.msra.mxu0 0
        %842 = vmatprep.subr.bf16.mxu0 0
        %843 = vmatpush1.bf16.msra.mxu0 0
        %844 = vmatprep.subr.bf16.mxu0 0
        %845 = vmatpush1.bf16.msra.mxu0 0
        %846 = vmatprep.subr.bf16.mxu0 0
        %847 = vmatpush1.bf16.msra.mxu0 0
        %848 = vmatprep.subr.bf16.mxu0 0
        %849 = vmatpush1.bf16.msra.mxu0 0
        %850 = vmatprep.subr.bf16.mxu0 0
        %851 = vmatpush1.bf16.msra.mxu0 0
        %852 = vmatprep.subr.bf16.mxu0 0
        %853 = vmatpush1.bf16.msra.mxu0 0
        %854 = vmatprep.subr.bf16.mxu0 0
        %855 = vmatpush1.bf16.msra.mxu0 0
        %856 = vmatprep.subr.bf16.mxu0 0
        %857 = vmatpush1.bf16.msra.mxu0 0
        %858 = vmatprep.subr.bf16.mxu0 0
        %859 = vmatpush1.bf16.msra.mxu0 0
        %860 = vmatprep.subr.bf16.mxu0 0
        %861 = vmatpush1.bf16.msra.mxu0 0
        %862 = vmatprep.subr.bf16.mxu0 0
        %863 = vmatpush1.bf16.msra.mxu0 0
        %864 = vmatprep.subr.bf16.mxu0 0
        %865 = vmatpush1.bf16.msra.mxu0 0
        %866 = vmatprep.subr.bf16.mxu0 0
        %867 = vmatpush1.bf16.msra.mxu0 0
        %868 = vmatprep.subr.bf16.mxu0 0
        %869 = vmatpush1.bf16.msra.mxu0 0
        %870 = vmatprep.mubr.bf16.mxu0 0
        %871 = vmatmul.mubr.bf16.gmra.mrb[0].mxu0 %v836
        %v872 = vpop.f32.mrb[0].mxu0
        %v873 = vadd.f32 %v822, %v872
        %v874 = vpop.f32.mrb[0].mxu0
        %v875 = vpop.f32.mrb[0].mxu0
        %v876 = vadd.f32 %v827, %v875
        %v877 = vpop.f32.mrb[0].mxu0
        %878 = vdwg.mxu0
        %v879 = vmax.f32 %v873, 0.0
        %v880 = vmax.f32 %v876, 0.0
        %881 = vset.pattern.permute.xlu0 1
        %882 = vperm.xlu0 %881, %v814
        %v883 = vpop.permute.xlu0 %882
        %885 = vset.pattern.permute.xlu0 1
        %886 = vperm.xlu0 %885, %v815
        %v887 = vpop.permute.xlu0 %886
        %v889 = vmul.f32 %v879, %v883
        %v890 = vmul.f32 %v880, %v887
        %891 = vset.pattern.permute.xlu0 2
        %892 = vperm.xlu0 %891, %v814
        %v893 = vpop.permute.xlu0 %892
        %895 = vset.pattern.permute.xlu0 2
        %896 = vperm.xlu0 %895, %v815
        %v897 = vpop.permute.xlu0 %896
        %v899 = vadd.f32 %v889, %v893
        %v900 = vadd.f32 %v890, %v897
        %s901 = scalar_lea.vmem [#allocation8], 32
        %v902 = vld [vmem:[%s901] sm:$0xf]
        %v903 = vld [vmem:[%s901 + $0x4] sm:$0xf]
        %v904 = vld [vmem:[%s901 + $0x8] sm:$0xf]
        %v905 = vld [vmem:[%s901 + $0xc] sm:$0xf]
        %v906 = vld [vmem:[%s901 + $0x10] sm:$0xf]
        %v907 = vld [vmem:[%s901 + $0x14] sm:$0xf]
        %v908 = vld [vmem:[%s901 + $0x18] sm:$0xf]
        %v909 = vld [vmem:[%s901 + $0x1c] sm:$0xf]
        %v910 = vpack.c.bf16 %v900, %v899
        %v919 = vunpack.c.l.b16 %v902
        %v920 = vunpack.c.l.b16 %v903
        %v921 = vunpack.c.l.b16 %v904
        %v922 = vunpack.c.l.b16 %v905
        %v923 = vunpack.c.l.b16 %v906
        %v924 = vunpack.c.l.b16 %v907
        %v925 = vunpack.c.l.b16 %v908
        %v926 = vunpack.c.l.b16 %v909
        %v927 = vpack.c.b16 %v920, %v919
        %v928 = vpack.c.b16 %v922, %v921
        %v929 = vpack.c.b16 %v924, %v923
        %v930 = vpack.c.b16 %v926, %v925
        %v932 = vsel %vm834, %v927, 0
        %v935 = vsel %vm834, %v928, 0
        %v938 = vsel %vm834, %v929, 0
        %v941 = vsel %vm834, %v930, 0
        %943 = vmatprep.subr.bf16.mxu0 0
        %944 = vmatpush1.bf16.msra.mxu0 %v910
        %945 = vmatprep.subr.bf16.mxu0 0
        %946 = vmatpush1.bf16.msra.mxu0 0
        %947 = vmatprep.subr.bf16.mxu0 0
        %948 = vmatpush1.bf16.msra.mxu0 0
        %949 = vmatprep.subr.bf16.mxu0 0
        %950 = vmatpush1.bf16.msra.mxu0 0
        %951 = vmatprep.subr.bf16.mxu0 0
        %952 = vmatpush1.bf16.msra.mxu0 0
        %953 = vmatprep.subr.bf16.mxu0 0
        %954 = vmatpush1.bf16.msra.mxu0 0
        %955 = vmatprep.subr.bf16.mxu0 0
        %956 = vmatpush1.bf16.msra.mxu0 0
        %957 = vmatprep.subr.bf16.mxu0 0
        %958 = vmatpush1.bf16.msra.mxu0 0
        %959 = vmatprep.subr.bf16.mxu0 0
        %960 = vmatpush1.bf16.msra.mxu0 0
        %961 = vmatprep.subr.bf16.mxu0 0
        %962 = vmatpush1.bf16.msra.mxu0 0
        %963 = vmatprep.subr.bf16.mxu0 0
        %964 = vmatpush1.bf16.msra.mxu0 0
        %965 = vmatprep.subr.bf16.mxu0 0
        %966 = vmatpush1.bf16.msra.mxu0 0
        %967 = vmatprep.subr.bf16.mxu0 0
        %968 = vmatpush1.bf16.msra.mxu0 0
        %969 = vmatprep.subr.bf16.mxu0 0
        %970 = vmatpush1.bf16.msra.mxu0 0
        %971 = vmatprep.subr.bf16.mxu0 0
        %972 = vmatpush1.bf16.msra.mxu0 0
        %973 = vmatprep.subr.bf16.mxu0 0
        %974 = vmatpush1.bf16.msra.mxu0 0
        %975 = vmatprep.mubr.bf16.mxu0 0
        %976 = vmatmul.mubr.bf16.gmra.mrb[0].mxu0 %v932
        %v977 = vpop.f32.mrb[0].mxu0
        %v978 = vadd.f32 0.0, %v977
        %v979 = vpop.f32.mrb[0].mxu0
        %v980 = vpop.f32.mrb[0].mxu0
        %v981 = vadd.f32 0.0, %v980
        %v982 = vpop.f32.mrb[0].mxu0
        %983 = vmatprep.mubr.bf16.mxu0 0
        %984 = vmatmul.mubr.bf16.gmra.mrb[0].mxu0 %v935
        %v985 = vpop.f32.mrb[0].mxu0
        %v986 = vadd.f32 0.0, %v985
        %v987 = vpop.f32.mrb[0].mxu0
        %v988 = vpop.f32.mrb[0].mxu0
        %v989 = vadd.f32 0.0, %v988
        %v990 = vpop.f32.mrb[0].mxu0
        %991 = vmatprep.mubr.bf16.mxu0 0
        %992 = vmatmul.mubr.bf16.gmra.mrb[0].mxu0 %v938
        %v993 = vpop.f32.mrb[0].mxu0
        %v994 = vadd.f32 0.0, %v993
        %v995 = vpop.f32.mrb[0].mxu0
        %v996 = vpop.f32.mrb[0].mxu0
        %v997 = vadd.f32 0.0, %v996
        %v998 = vpop.f32.mrb[0].mxu0
        %999 = vmatprep.mubr.bf16.mxu0 0
        %1000 = vmatmul.mubr.bf16.gmra.mrb[0].mxu0 %v941
        %v1001 = vpop.f32.mrb[0].mxu0
        %v1002 = vadd.f32 0.0, %v1001
        %v1003 = vpop.f32.mrb[0].mxu0
        %v1004 = vpop.f32.mrb[0].mxu0
        %v1005 = vadd.f32 0.0, %v1004
        %v1006 = vpop.f32.mrb[0].mxu0
        %1007 = vdwg.mxu0
        %v1016 = vunpack.c.l.b16 %v805
        %v1017 = vunpack.c.l.b16 %v806
        %v1018 = vunpack.c.l.b16 %v807
        %v1019 = vunpack.c.l.b16 %v808
        %v1020 = vunpack.c.l.b16 %v809
        %v1021 = vunpack.c.l.b16 %v810
        %v1022 = vunpack.c.l.b16 %v811
        %v1023 = vunpack.c.l.b16 %v812
        %v1024 = vpack.c.b16 %v1017, %v1016
        %v1025 = vpack.c.b16 %v1019, %v1018
        %v1026 = vpack.c.b16 %v1021, %v1020
        %v1027 = vpack.c.b16 %v1023, %v1022
        %v1029 = vsel %vm834, %v1024, 0
        %v1032 = vsel %vm834, %v1025, 0
        %v1035 = vsel %vm834, %v1026, 0
        %v1038 = vsel %vm834, %v1027, 0
        %1040 = vmatprep.subr.bf16.mxu0 0
        %1041 = vmatpush1.bf16.msra.mxu0 %v813
        %1042 = vmatprep.subr.bf16.mxu0 0
        %1043 = vmatpush1.bf16.msra.mxu0 0
        %1044 = vmatprep.subr.bf16.mxu0 0
        %1045 = vmatpush1.bf16.msra.mxu0 0
        %1046 = vmatprep.subr.bf16.mxu0 0
        %1047 = vmatpush1.bf16.msra.mxu0 0
        %1048 = vmatprep.subr.bf16.mxu0 0
        %1049 = vmatpush1.bf16.msra.mxu0 0
        %1050 = vmatprep.subr.bf16.mxu0 0
        %1051 = vmatpush1.bf16.msra.mxu0 0
        %1052 = vmatprep.subr.bf16.mxu0 0
        %1053 = vmatpush1.bf16.msra.mxu0 0
        %1054 = vmatprep.subr.bf16.mxu0 0
        %1055 = vmatpush1.bf16.msra.mxu0 0
        %1056 = vmatprep.subr.bf16.mxu0 0
        %1057 = vmatpush1.bf16.msra.mxu0 0
        %1058 = vmatprep.subr.bf16.mxu0 0
        %1059 = vmatpush1.bf16.msra.mxu0 0
        %1060 = vmatprep.subr.bf16.mxu0 0
        %1061 = vmatpush1.bf16.msra.mxu0 0
        %1062 = vmatprep.subr.bf16.mxu0 0
        %1063 = vmatpush1.bf16.msra.mxu0 0
        %1064 = vmatprep.subr.bf16.mxu0 0
        %1065 = vmatpush1.bf16.msra.mxu0 0
        %1066 = vmatprep.subr.bf16.mxu0 0
        %1067 = vmatpush1.bf16.msra.mxu0 0
        %1068 = vmatprep.subr.bf16.mxu0 0
        %1069 = vmatpush1.bf16.msra.mxu0 0
        %1070 = vmatprep.subr.bf16.mxu0 0
        %1071 = vmatpush1.bf16.msra.mxu0 0
        %1072 = vmatprep.mubr.bf16.mxu0 0
        %1073 = vmatmul.mubr.bf16.gmra.mrb[0].mxu0 %v1029
        %v1074 = vpop.f32.mrb[0].mxu0
        %v1075 = vadd.f32 %v978, %v1074
        %v1076 = vpop.f32.mrb[0].mxu0
        %v1077 = vpop.f32.mrb[0].mxu0
        %v1078 = vadd.f32 %v981, %v1077
        %v1079 = vpop.f32.mrb[0].mxu0
        %1080 = vmatprep.mubr.bf16.mxu0 0
        %1081 = vmatmul.mubr.bf16.gmra.mrb[0].mxu0 %v1032
        %v1082 = vpop.f32.mrb[0].mxu0
        %v1083 = vadd.f32 %v986, %v1082
        %v1084 = vpop.f32.mrb[0].mxu0
        %v1085 = vpop.f32.mrb[0].mxu0
        %v1086 = vadd.f32 %v989, %v1085
        %v1087 = vpop.f32.mrb[0].mxu0
        %1088 = vmatprep.mubr.bf16.mxu0 0
        %1089 = vmatmul.mubr.bf16.gmra.mrb[0].mxu0 %v1035
        %v1090 = vpop.f32.mrb[0].mxu0
        %v1091 = vadd.f32 %v994, %v1090
        %v1092 = vpop.f32.mrb[0].mxu0
        %v1093 = vpop.f32.mrb[0].mxu0
        %v1094 = vadd.f32 %v997, %v1093
        %v1095 = vpop.f32.mrb[0].mxu0
        %1096 = vmatprep.mubr.bf16.mxu0 0
        %1097 = vmatmul.mubr.bf16.gmra.mrb[0].mxu0 %v1038
        %v1098 = vpop.f32.mrb[0].mxu0
        %v1099 = vadd.f32 %v1002, %v1098
        %v1100 = vpop.f32.mrb[0].mxu0
        %v1101 = vpop.f32.mrb[0].mxu0
        %v1102 = vadd.f32 %v1005, %v1101
        %v1103 = vpop.f32.mrb[0].mxu0
        %1104 = vdwg.mxu0
        %s1105 = scalar_lea.vmem [#allocation14], 16
        %v1106 = vld [vmem:[%s1105] sm:$0xff]
        %v1107 = vld [vmem:[%s1105 + $0x8] sm:$0xff]
        %v1108 = vadd.f32 %v801, %v899
        %v1109 = vadd.f32 %v802, %v900
        %s1110 = scalar_lea.vmem [#allocation7], 8
        %v1111 = vld [vmem:[%s1110] sm:$0xf]
        %v1112 = vld [vmem:[%s1110 + $0x4] sm:$0xf]
        %v1113 = vpack.c.bf16 %v1109, %v1108
        %1115 = vset.pattern.permute.xlu0 0
        %1116 = vperm.xlu0 %1115, %v1106
        %v1117 = vpop.permute.xlu0 %1116
        %1120 = vset.pattern.permute.xlu0 0
        %1121 = vperm.xlu0 %1120, %v1107
        %v1122 = vpop.permute.xlu0 %1121
        %v1126 = vunpack.c.l.b16 %v1111
        %v1127 = vunpack.c.l.b16 %v1112
        %v1128 = vpack.c.b16 %v1127, %v1126
        %v1130 = vsel %vm834, %v1128, 0
        %1132 = vmatprep.subr.bf16.mxu0 0
        %1133 = vmatpush1.bf16.msra.mxu0 %v1113
        %1134 = vmatprep.subr.bf16.mxu0 0
        %1135 = vmatpush1.bf16.msra.mxu0 0
        %1136 = vmatprep.subr.bf16.mxu0 0
        %1137 = vmatpush1.bf16.msra.mxu0 0
        %1138 = vmatprep.subr.bf16.mxu0 0
        %1139 = vmatpush1.bf16.msra.mxu0 0
        %1140 = vmatprep.subr.bf16.mxu0 0
        %1141 = vmatpush1.bf16.msra.mxu0 0
        %1142 = vmatprep.subr.bf16.mxu0 0
        %1143 = vmatpush1.bf16.msra.mxu0 0
        %1144 = vmatprep.subr.bf16.mxu0 0
        %1145 = vmatpush1.bf16.msra.mxu0 0
        %1146 = vmatprep.subr.bf16.mxu0 0
        %1147 = vmatpush1.bf16.msra.mxu0 0
        %1148 = vmatprep.subr.bf16.mxu0 0
        %1149 = vmatpush1.bf16.msra.mxu0 0
        %1150 = vmatprep.subr.bf16.mxu0 0
        %1151 = vmatpush1.bf16.msra.mxu0 0
        %1152 = vmatprep.subr.bf16.mxu0 0
        %1153 = vmatpush1.bf16.msra.mxu0 0
        %1154 = vmatprep.subr.bf16.mxu0 0
        %1155 = vmatpush1.bf16.msra.mxu0 0
        %1156 = vmatprep.subr.bf16.mxu0 0
        %1157 = vmatpush1.bf16.msra.mxu0 0
        %1158 = vmatprep.subr.bf16.mxu0 0
        %1159 = vmatpush1.bf16.msra.mxu0 0
        %1160 = vmatprep.subr.bf16.mxu0 0
        %1161 = vmatpush1.bf16.msra.mxu0 0
        %1162 = vmatprep.subr.bf16.mxu0 0
        %1163 = vmatpush1.bf16.msra.mxu0 0
        %1164 = vmatprep.mubr.bf16.mxu0 0
        %1165 = vmatmul.mubr.bf16.gmra.mrb[0].mxu0 %v1130
        %v1166 = vpop.f32.mrb[0].mxu0
        %v1167 = vadd.f32 %v1117, %v1166
        %v1168 = vpop.f32.mrb[0].mxu0
        %v1169 = vpop.f32.mrb[0].mxu0
        %v1170 = vadd.f32 %v1122, %v1169
        %v1171 = vpop.f32.mrb[0].mxu0
        %1172 = vdwg.mxu0
        %v1173 = vmax.f32 %v1167, 0.0
        %v1174 = vmax.f32 %v1170, 0.0
        %1175 = vset.pattern.permute.xlu0 1
        %1176 = vperm.xlu0 %1175, %v1106
        %v1177 = vpop.permute.xlu0 %1176
        %1179 = vset.pattern.permute.xlu0 1
        %1180 = vperm.xlu0 %1179, %v1107
        %v1181 = vpop.permute.xlu0 %1180
        %v1183 = vmul.f32 %v1173, %v1177
        %v1184 = vmul.f32 %v1174, %v1181
        %1185 = vset.pattern.permute.xlu0 2
        %1186 = vperm.xlu0 %1185, %v1106
        %v1187 = vpop.permute.xlu0 %1186
        %1189 = vset.pattern.permute.xlu0 2
        %1190 = vperm.xlu0 %1189, %v1107
        %v1191 = vpop.permute.xlu0 %1190
        %v1193 = vadd.f32 %v1183, %v1187
        %v1194 = vadd.f32 %v1184, %v1191
        %s1195 = scalar_lea.vmem [#allocation8], 64
        %v1196 = vld [vmem:[%s1195] sm:$0xf]
        %v1197 = vld [vmem:[%s1195 + $0x4] sm:$0xf]
        %v1198 = vld [vmem:[%s1195 + $0x8] sm:$0xf]
        %v1199 = vld [vmem:[%s1195 + $0xc] sm:$0xf]
        %v1200 = vld [vmem:[%s1195 + $0x10] sm:$0xf]
        %v1201 = vld [vmem:[%s1195 + $0x14] sm:$0xf]
        %v1202 = vld [vmem:[%s1195 + $0x18] sm:$0xf]
        %v1203 = vld [vmem:[%s1195 + $0x1c] sm:$0xf]
        %v1204 = vpack.c.bf16 %v1194, %v1193
        %v1213 = vunpack.c.l.b16 %v1196
        %v1214 = vunpack.c.l.b16 %v1197
        %v1215 = vunpack.c.l.b16 %v1198
        %v1216 = vunpack.c.l.b16 %v1199
        %v1217 = vunpack.c.l.b16 %v1200
        %v1218 = vunpack.c.l.b16 %v1201
        %v1219 = vunpack.c.l.b16 %v1202
        %v1220 = vunpack.c.l.b16 %v1203
        %v1221 = vpack.c.b16 %v1214, %v1213
        %v1222 = vpack.c.b16 %v1216, %v1215
        %v1223 = vpack.c.b16 %v1218, %v1217
        %v1224 = vpack.c.b16 %v1220, %v1219
        %v1226 = vsel %vm834, %v1221, 0
        %v1229 = vsel %vm834, %v1222, 0
        %v1232 = vsel %vm834, %v1223, 0
        %v1235 = vsel %vm834, %v1224, 0
        %1237 = vmatprep.subr.bf16.mxu0 0
        %1238 = vmatpush1.bf16.msra.mxu0 %v1204
        %1239 = vmatprep.subr.bf16.mxu0 0
        %1240 = vmatpush1.bf16.msra.mxu0 0
        %1241 = vmatprep.subr.bf16.mxu0 0
        %1242 = vmatpush1.bf16.msra.mxu0 0
        %1243 = vmatprep.subr.bf16.mxu0 0
        %1244 = vmatpush1.bf16.msra.mxu0 0
        %1245 = vmatprep.subr.bf16.mxu0 0
        %1246 = vmatpush1.bf16.msra.mxu0 0
        %1247 = vmatprep.subr.bf16.mxu0 0
        %1248 = vmatpush1.bf16.msra.mxu0 0
        %1249 = vmatprep.subr.bf16.mxu0 0
        %1250 = vmatpush1.bf16.msra.mxu0 0
        %1251 = vmatprep.subr.bf16.mxu0 0
        %1252 = vmatpush1.bf16.msra.mxu0 0
        %1253 = vmatprep.subr.bf16.mxu0 0
        %1254 = vmatpush1.bf16.msra.mxu0 0
        %1255 = vmatprep.subr.bf16.mxu0 0
        %1256 = vmatpush1.bf16.msra.mxu0 0
        %1257 = vmatprep.subr.bf16.mxu0 0
        %1258 = vmatpush1.bf16.msra.mxu0 0
        %1259 = vmatprep.subr.bf16.mxu0 0
        %1260 = vmatpush1.bf16.msra.mxu0 0
        %1261 = vmatprep.subr.bf16.mxu0 0
        %1262 = vmatpush1.bf16.msra.mxu0 0
        %1263 = vmatprep.subr.bf16.mxu0 0
        %1264 = vmatpush1.bf16.msra.mxu0 0
        %1265 = vmatprep.subr.bf16.mxu0 0
        %1266 = vmatpush1.bf16.msra.mxu0 0
        %1267 = vmatprep.subr.bf16.mxu0 0
        %1268 = vmatpush1.bf16.msra.mxu0 0
        %1269 = vmatprep.mubr.bf16.mxu0 0
        %1270 = vmatmul.mubr.bf16.gmra.mrb[0].mxu0 %v1226
        %v1271 = vpop.f32.mrb[0].mxu0
        %v1272 = vadd.f32 0.0, %v1271
        %v1273 = vpop.f32.mrb[0].mxu0
        %v1274 = vpop.f32.mrb[0].mxu0
        %v1275 = vadd.f32 0.0, %v1274
        %v1276 = vpop.f32.mrb[0].mxu0
        %1277 = vmatprep.mubr.bf16.mxu0 0
        %1278 = vmatmul.mubr.bf16.gmra.mrb[0].mxu0 %v1229
        %v1279 = vpop.f32.mrb[0].mxu0
        %v1280 = vadd.f32 0.0, %v1279
        %v1281 = vpop.f32.mrb[0].mxu0
        %v1282 = vpop.f32.mrb[0].mxu0
        %v1283 = vadd.f32 0.0, %v1282
        %v1284 = vpop.f32.mrb[0].mxu0
        %1285 = vmatprep.mubr.bf16.mxu0 0
        %1286 = vmatmul.mubr.bf16.gmra.mrb[0].mxu0 %v1232
        %v1287 = vpop.f32.mrb[0].mxu0
        %v1288 = vadd.f32 0.0, %v1287
        %v1289 = vpop.f32.mrb[0].mxu0
        %v1290 = vpop.f32.mrb[0].mxu0
        %v1291 = vadd.f32 0.0, %v1290
        %v1292 = vpop.f32.mrb[0].mxu0
        %1293 = vmatprep.mubr.bf16.mxu0 0
        %1294 = vmatmul.mubr.bf16.gmra.mrb[0].mxu0 %v1235
        %v1295 = vpop.f32.mrb[0].mxu0
        %v1296 = vadd.f32 0.0, %v1295
        %v1297 = vpop.f32.mrb[0].mxu0
        %v1298 = vpop.f32.mrb[0].mxu0
        %v1299 = vadd.f32 0.0, %v1298
        %v1300 = vpop.f32.mrb[0].mxu0
        %1301 = vdwg.mxu0
        %v1302 = vadd.f32 %v1075, %v1272
        %v1303 = vadd.f32 %v1078, %v1275
        %v1304 = vadd.f32 %v1083, %v1280
        %v1305 = vadd.f32 %v1086, %v1283
        %v1306 = vadd.f32 %v1091, %v1288
        %v1307 = vadd.f32 %v1094, %v1291
        %v1308 = vadd.f32 %v1099, %v1296
        %v1309 = vadd.f32 %v1102, %v1299
        %s1310 = scalar_lea.vmem [#allocation14], 32
        %v1311 = vld [vmem:[%s1310] sm:$0xff]
        %v1312 = vld [vmem:[%s1310 + $0x8] sm:$0xff]
        %v1313 = vadd.f32 %v803, %v1193
        %v1314 = vadd.f32 %v804, %v1194
        %s1315 = scalar_lea.vmem [#allocation7], 16
        %v1316 = vld [vmem:[%s1315] sm:$0xf]
        %v1317 = vld [vmem:[%s1315 + $0x4] sm:$0xf]
        %v1318 = vpack.c.bf16 %v1314, %v1313
        %1320 = vset.pattern.permute.xlu0 0
        %1321 = vperm.xlu0 %1320, %v1311
        %v1322 = vpop.permute.xlu0 %1321
        %1325 = vset.pattern.permute.xlu0 0
        %1326 = vperm.xlu0 %1325, %v1312
        %v1327 = vpop.permute.xlu0 %1326
        %v1331 = vunpack.c.l.b16 %v1316
        %v1332 = vunpack.c.l.b16 %v1317
        %v1333 = vpack.c.b16 %v1332, %v1331
        %v1335 = vsel %vm834, %v1333, 0
        %1337 = vmatprep.subr.bf16.mxu0 0
        %1338 = vmatpush1.bf16.msra.mxu0 %v1318
        %1339 = vmatprep.subr.bf16.mxu0 0
        %1340 = vmatpush1.bf16.msra.mxu0 0
        %1341 = vmatprep.subr.bf16.mxu0 0
        %1342 = vmatpush1.bf16.msra.mxu0 0
        %1343 = vmatprep.subr.bf16.mxu0 0
        %1344 = vmatpush1.bf16.msra.mxu0 0
        %1345 = vmatprep.subr.bf16.mxu0 0
        %1346 = vmatpush1.bf16.msra.mxu0 0
        %1347 = vmatprep.subr.bf16.mxu0 0
        %1348 = vmatpush1.bf16.msra.mxu0 0
        %1349 = vmatprep.subr.bf16.mxu0 0
        %1350 = vmatpush1.bf16.msra.mxu0 0
        %1351 = vmatprep.subr.bf16.mxu0 0
        %1352 = vmatpush1.bf16.msra.mxu0 0
        %1353 = vmatprep.subr.bf16.mxu0 0
        %1354 = vmatpush1.bf16.msra.mxu0 0
        %1355 = vmatprep.subr.bf16.mxu0 0
        %1356 = vmatpush1.bf16.msra.mxu0 0
        %1357 = vmatprep.subr.bf16.mxu0 0
        %1358 = vmatpush1.bf16.msra.mxu0 0
        %1359 = vmatprep.subr.bf16.mxu0 0
        %1360 = vmatpush1.bf16.msra.mxu0 0
        %1361 = vmatprep.subr.bf16.mxu0 0
        %1362 = vmatpush1.bf16.msra.mxu0 0
        %1363 = vmatprep.subr.bf16.mxu0 0
        %1364 = vmatpush1.bf16.msra.mxu0 0
        %1365 = vmatprep.subr.bf16.mxu0 0
        %1366 = vmatpush1.bf16.msra.mxu0 0
        %1367 = vmatprep.subr.bf16.mxu0 0
        %1368 = vmatpush1.bf16.msra.mxu0 0
        %1369 = vmatprep.mubr.bf16.mxu0 0
        %1370 = vmatmul.mubr.bf16.gmra.mrb[0].mxu0 %v1335
        %v1371 = vpop.f32.mrb[0].mxu0
        %v1372 = vadd.f32 %v1322, %v1371
        %v1373 = vpop.f32.mrb[0].mxu0
        %v1374 = vpop.f32.mrb[0].mxu0
        %v1375 = vadd.f32 %v1327, %v1374
        %v1376 = vpop.f32.mrb[0].mxu0
        %1377 = vdwg.mxu0
        %v1378 = vmax.f32 %v1372, 0.0
        %v1379 = vmax.f32 %v1375, 0.0
        %1380 = vset.pattern.permute.xlu0 1
        %1381 = vperm.xlu0 %1380, %v1311
        %v1382 = vpop.permute.xlu0 %1381
        %1384 = vset.pattern.permute.xlu0 1
        %1385 = vperm.xlu0 %1384, %v1312
        %v1386 = vpop.permute.xlu0 %1385
        %v1388 = vmul.f32 %v1378, %v1382
        %v1389 = vmul.f32 %v1379, %v1386
        %1390 = vset.pattern.permute.xlu0 2
        %1391 = vperm.xlu0 %1390, %v1311
        %v1392 = vpop.permute.xlu0 %1391
        %1394 = vset.pattern.permute.xlu0 2
        %1395 = vperm.xlu0 %1394, %v1312
        %v1396 = vpop.permute.xlu0 %1395
        %v1398 = vadd.f32 %v1388, %v1392
        %v1399 = vadd.f32 %v1389, %v1396
        %s1400 = scalar_lea.vmem [#allocation8], 96
        %v1401 = vld [vmem:[%s1400] sm:$0xf]
        %v1402 = vld [vmem:[%s1400 + $0x4] sm:$0xf]
        %v1403 = vld [vmem:[%s1400 + $0x8] sm:$0xf]
        %v1404 = vld [vmem:[%s1400 + $0xc] sm:$0xf]
        %v1405 = vld [vmem:[%s1400 + $0x10] sm:$0xf]
        %v1406 = vld [vmem:[%s1400 + $0x14] sm:$0xf]
        %v1407 = vld [vmem:[%s1400 + $0x18] sm:$0xf]
        %v1408 = vld [vmem:[%s1400 + $0x1c] sm:$0xf]
        %v1409 = vpack.c.bf16 %v1399, %v1398
        %v1418 = vunpack.c.l.b16 %v1401
        %v1419 = vunpack.c.l.b16 %v1402
        %v1420 = vunpack.c.l.b16 %v1403
        %v1421 = vunpack.c.l.b16 %v1404
        %v1422 = vunpack.c.l.b16 %v1405
        %v1423 = vunpack.c.l.b16 %v1406
        %v1424 = vunpack.c.l.b16 %v1407
        %v1425 = vunpack.c.l.b16 %v1408
        %v1426 = vpack.c.b16 %v1419, %v1418
        %v1427 = vpack.c.b16 %v1421, %v1420
        %v1428 = vpack.c.b16 %v1423, %v1422
        %v1429 = vpack.c.b16 %v1425, %v1424
        %v1431 = vsel %vm834, %v1426, 0
        %v1434 = vsel %vm834, %v1427, 0
        %v1437 = vsel %vm834, %v1428, 0
        %v1440 = vsel %vm834, %v1429, 0
        %1442 = vmatprep.subr.bf16.mxu0 0
        %1443 = vmatpush1.bf16.msra.mxu0 %v1409
        %1444 = vmatprep.subr.bf16.mxu0 0
        %1445 = vmatpush1.bf16.msra.mxu0 0
        %1446 = vmatprep.subr.bf16.mxu0 0
        %1447 = vmatpush1.bf16.msra.mxu0 0
        %1448 = vmatprep.subr.bf16.mxu0 0
        %1449 = vmatpush1.bf16.msra.mxu0 0
        %1450 = vmatprep.subr.bf16.mxu0 0
        %1451 = vmatpush1.bf16.msra.mxu0 0
        %1452 = vmatprep.subr.bf16.mxu0 0
        %1453 = vmatpush1.bf16.msra.mxu0 0
        %1454 = vmatprep.subr.bf16.mxu0 0
        %1455 = vmatpush1.bf16.msra.mxu0 0
        %1456 = vmatprep.subr.bf16.mxu0 0
        %1457 = vmatpush1.bf16.msra.mxu0 0
        %1458 = vmatprep.subr.bf16.mxu0 0
        %1459 = vmatpush1.bf16.msra.mxu0 0
        %1460 = vmatprep.subr.bf16.mxu0 0
        %1461 = vmatpush1.bf16.msra.mxu0 0
        %1462 = vmatprep.subr.bf16.mxu0 0
        %1463 = vmatpush1.bf16.msra.mxu0 0
        %1464 = vmatprep.subr.bf16.mxu0 0
        %1465 = vmatpush1.bf16.msra.mxu0 0
        %1466 = vmatprep.subr.bf16.mxu0 0
        %1467 = vmatpush1.bf16.msra.mxu0 0
        %1468 = vmatprep.subr.bf16.mxu0 0
        %1469 = vmatpush1.bf16.msra.mxu0 0
        %1470 = vmatprep.subr.bf16.mxu0 0
        %1471 = vmatpush1.bf16.msra.mxu0 0
        %1472 = vmatprep.subr.bf16.mxu0 0
        %1473 = vmatpush1.bf16.msra.mxu0 0
        %1474 = vmatprep.mubr.bf16.mxu0 0
        %1475 = vmatmul.mubr.bf16.gmra.mrb[0].mxu0 %v1431
        %v1476 = vpop.f32.mrb[0].mxu0
        %v1477 = vadd.f32 0.0, %v1476
        %v1478 = vpop.f32.mrb[0].mxu0
        %v1479 = vpop.f32.mrb[0].mxu0
        %v1480 = vadd.f32 0.0, %v1479
        %v1481 = vpop.f32.mrb[0].mxu0
        %1482 = vmatprep.mubr.bf16.mxu0 0
        %1483 = vmatmul.mubr.bf16.gmra.mrb[0].mxu0 %v1434
        %v1484 = vpop.f32.mrb[0].mxu0
        %v1485 = vadd.f32 0.0, %v1484
        %v1486 = vpop.f32.mrb[0].mxu0
        %v1487 = vpop.f32.mrb[0].mxu0
        %v1488 = vadd.f32 0.0, %v1487
        %v1489 = vpop.f32.mrb[0].mxu0
        %1490 = vmatprep.mubr.bf16.mxu0 0
        %1491 = vmatmul.mubr.bf16.gmra.mrb[0].mxu0 %v1437
        %v1492 = vpop.f32.mrb[0].mxu0
        %v1493 = vadd.f32 0.0, %v1492
        %v1494 = vpop.f32.mrb[0].mxu0
        %v1495 = vpop.f32.mrb[0].mxu0
        %v1496 = vadd.f32 0.0, %v1495
        %v1497 = vpop.f32.mrb[0].mxu0
        %1498 = vmatprep.mubr.bf16.mxu0 0
        %1499 = vmatmul.mubr.bf16.gmra.mrb[0].mxu0 %v1440
        %v1500 = vpop.f32.mrb[0].mxu0
        %v1501 = vadd.f32 0.0, %v1500
        %v1502 = vpop.f32.mrb[0].mxu0
        %v1503 = vpop.f32.mrb[0].mxu0
        %v1504 = vadd.f32 0.0, %v1503
        %v1505 = vpop.f32.mrb[0].mxu0
        %1506 = vdwg.mxu0
        %v1507 = vadd.f32 %v1302, %v1477
        %v1508 = vadd.f32 %v1303, %v1480
        %v1509 = vadd.f32 %v1304, %v1485
        %v1510 = vadd.f32 %v1305, %v1488
        %v1511 = vadd.f32 %v1306, %v1493
        %v1512 = vadd.f32 %v1307, %v1496
        %v1513 = vadd.f32 %v1308, %v1501
        %v1514 = vadd.f32 %v1309, %v1504
        %1515 = vset.pattern.permute.xlu0 4
        %1516 = vperm.xlu0 %1515, %v431
        %v1517 = vpop.permute.xlu0 %1516
        %1519 = vset.pattern.permute.xlu0 4
        %1520 = vperm.xlu0 %1519, %v432
        %v1521 = vpop.permute.xlu0 %1520
        %1523 = vset.pattern.permute.xlu0 4
        %1524 = vperm.xlu0 %1523, %v433
        %v1525 = vpop.permute.xlu0 %1524
        %1527 = vset.pattern.permute.xlu0 4
        %1528 = vperm.xlu0 %1527, %v434
        %v1529 = vpop.permute.xlu0 %1528
        %1531 = vset.pattern.permute.xlu0 4
        %1532 = vperm.xlu0 %1531, %v435
        %v1533 = vpop.permute.xlu0 %1532
        %1535 = vset.pattern.permute.xlu0 4
        %1536 = vperm.xlu0 %1535, %v436
        %v1537 = vpop.permute.xlu0 %1536
        %1539 = vset.pattern.permute.xlu0 4
        %1540 = vperm.xlu0 %1539, %v437
        %v1541 = vpop.permute.xlu0 %1540
        %1543 = vset.pattern.permute.xlu0 4
        %1544 = vperm.xlu0 %1543, %v438
        %v1545 = vpop.permute.xlu0 %1544
        %v1547 = vadd.f32 %v1507, %v1517
        %v1548 = vadd.f32 %v1508, %v1521
        %v1549 = vadd.f32 %v1509, %v1525
        %v1550 = vadd.f32 %v1510, %v1529
        %v1551 = vadd.f32 %v1511, %v1533
        %v1552 = vadd.f32 %v1512, %v1537
        %v1553 = vadd.f32 %v1513, %v1541
        %v1554 = vadd.f32 %v1514, %v1545
        %v1555 = vmax.f32 %v1547, 0.0
        %v1556 = vmax.f32 %v1548, 0.0
        %v1557 = vmax.f32 %v1549, 0.0
        %v1558 = vmax.f32 %v1550, 0.0
        %v1559 = vmax.f32 %v1551, 0.0
        %v1560 = vmax.f32 %v1552, 0.0
        %v1561 = vmax.f32 %v1553, 0.0
        %v1562 = vmax.f32 %v1554, 0.0
        %1563 = vset.pattern.permute.xlu0 5
        %1564 = vperm.xlu0 %1563, %v431
        %v1565 = vpop.permute.xlu0 %1564
        %1567 = vset.pattern.permute.xlu0 5
        %1568 = vperm.xlu0 %1567, %v432
        %v1569 = vpop.permute.xlu0 %1568
        %1571 = vset.pattern.permute.xlu0 5
        %1572 = vperm.xlu0 %1571, %v433
        %v1573 = vpop.permute.xlu0 %1572
        %1575 = vset.pattern.permute.xlu0 5
        %1576 = vperm.xlu0 %1575, %v434
        %v1577 = vpop.permute.xlu0 %1576
        %1579 = vset.pattern.permute.xlu0 5
        %1580 = vperm.xlu0 %1579, %v435
        %v1581 = vpop.permute.xlu0 %1580
        %1583 = vset.pattern.permute.xlu0 5
        %1584 = vperm.xlu0 %1583, %v436
        %v1585 = vpop.permute.xlu0 %1584
        %1587 = vset.pattern.permute.xlu0 5
        %1588 = vperm.xlu0 %1587, %v437
        %v1589 = vpop.permute.xlu0 %1588
        %1591 = vset.pattern.permute.xlu0 5
        %1592 = vperm.xlu0 %1591, %v438
        %v1593 = vpop.permute.xlu0 %1592
        %v1595 = vmul.f32 %v1555, %v1565
        %v1596 = vmul.f32 %v1556, %v1569
        %v1597 = vmul.f32 %v1557, %v1573
        %v1598 = vmul.f32 %v1558, %v1577
        %v1599 = vmul.f32 %v1559, %v1581
        %v1600 = vmul.f32 %v1560, %v1585
        %v1601 = vmul.f32 %v1561, %v1589
        %v1602 = vmul.f32 %v1562, %v1593
        %1603 = vset.pattern.permute.xlu0 6
        %1604 = vperm.xlu0 %1603, %v431
        %v1605 = vpop.permute.xlu0 %1604
        %1607 = vset.pattern.permute.xlu0 6
        %1608 = vperm.xlu0 %1607, %v432
        %v1609 = vpop.permute.xlu0 %1608
        %1611 = vset.pattern.permute.xlu0 6
        %1612 = vperm.xlu0 %1611, %v433
        %v1613 = vpop.permute.xlu0 %1612
        %1615 = vset.pattern.permute.xlu0 6
        %1616 = vperm.xlu0 %1615, %v434
        %v1617 = vpop.permute.xlu0 %1616
        %1619 = vset.pattern.permute.xlu0 6
        %1620 = vperm.xlu0 %1619, %v435
        %v1621 = vpop.permute.xlu0 %1620
        %1623 = vset.pattern.permute.xlu0 6
        %1624 = vperm.xlu0 %1623, %v436
        %v1625 = vpop.permute.xlu0 %1624
        %1627 = vset.pattern.permute.xlu0 6
        %1628 = vperm.xlu0 %1627, %v437
        %v1629 = vpop.permute.xlu0 %1628
        %1631 = vset.pattern.permute.xlu0 6
        %1632 = vperm.xlu0 %1631, %v438
        %v1633 = vpop.permute.xlu0 %1632
        %v1635 = vadd.f32 %v1595, %v1605
        %v1636 = vadd.f32 %v1596, %v1609
        %v1637 = vadd.f32 %v1597, %v1613
        %v1638 = vadd.f32 %v1598, %v1617
        %v1639 = vadd.f32 %v1599, %v1621
        %v1640 = vadd.f32 %v1600, %v1625
        %v1641 = vadd.f32 %v1601, %v1629
        %v1642 = vadd.f32 %v1602, %v1633
        %1643 = vadd.xlane.f32.xlu0 %v1635
        %v1644 = vpop.xlane.xlu0 %1643
        %1645 = vadd.xlane.f32.xlu0 %v1636
        %v1646 = vpop.xlane.xlu0 %1645
        %1647 = vadd.xlane.f32.xlu0 %v1637
        %v1648 = vpop.xlane.xlu0 %1647
        %1649 = vadd.xlane.f32.xlu0 %v1638
        %v1650 = vpop.xlane.xlu0 %1649
        %1651 = vadd.xlane.f32.xlu0 %v1639
        %v1652 = vpop.xlane.xlu0 %1651
        %1653 = vadd.xlane.f32.xlu0 %v1640
        %v1654 = vpop.xlane.xlu0 %1653
        %1655 = vadd.xlane.f32.xlu0 %v1641
        %v1656 = vpop.xlane.xlu0 %1655
        %1657 = vadd.xlane.f32.xlu0 %v1642
        %v1658 = vpop.xlane.xlu0 %1657
        %v1659 = vmul.f32 %v1644, 0.0078125
        %v1660 = vmul.f32 %v1646, 0.0078125
        %v1661 = vmul.f32 %v1648, 0.0078125
        %v1662 = vmul.f32 %v1650, 0.0078125
        %v1663 = vmul.f32 %v1652, 0.0078125
        %v1664 = vmul.f32 %v1654, 0.0078125
        %v1665 = vmul.f32 %v1656, 0.0078125
        %v1666 = vmul.f32 %v1658, 0.0078125
        %v1667 = vld [vmem:[#allocation10] sm:$0xf]
        %v1668 = vld [vmem:[#allocation10 + $0x4] sm:$0xf]
        %v1669 = vpack.c.bf16 %v1660, %v1659
        %v1670 = vpack.c.bf16 %v1662, %v1661
        %v1671 = vpack.c.bf16 %v1664, %v1663
        %v1672 = vpack.c.bf16 %v1666, %v1665
        %v1675 = vunpack.c.l.b16 %v1667
        %v1676 = vunpack.c.l.b16 %v1668
        %v1677 = vpack.c.b16 %v1676, %v1675
        %1678 = vrot.lane.b32.xlu0 %v431, 120
        %v1679 = vpop.permute.xlu0 %1678
        %1680 = vrot.lane.b32.xlu0 %v432, 120
        %v1681 = vpop.permute.xlu0 %1680
        %vm1684 = vcmask 523264
        %v1686 = vsel %vm1684, %v1677, 0
        %1688 = vmatprep.subr.bf16.mxu0 0
        %1689 = vmatpush1.bf16.msra.mxu0 %v1669
        %1690 = vmatprep.subr.bf16.mxu0 0
        %1691 = vmatpush1.bf16.msra.mxu0 %v1670
        %1692 = vmatprep.subr.bf16.mxu0 0
        %1693 = vmatpush1.bf16.msra.mxu0 %v1671
        %1694 = vmatprep.subr.bf16.mxu0 0
        %1695 = vmatpush1.bf16.msra.mxu0 %v1672
        %1696 = vmatprep.subr.bf16.mxu0 0
        %1697 = vmatpush1.bf16.msra.mxu0 0
        %1698 = vmatprep.subr.bf16.mxu0 0
        %1699 = vmatpush1.bf16.msra.mxu0 0
        %1700 = vmatprep.subr.bf16.mxu0 0
        %1701 = vmatpush1.bf16.msra.mxu0 0
        %1702 = vmatprep.subr.bf16.mxu0 0
        %1703 = vmatpush1.bf16.msra.mxu0 0
        %1704 = vmatprep.subr.bf16.mxu0 0
        %1705 = vmatpush1.bf16.msra.mxu0 0
        %1706 = vmatprep.subr.bf16.mxu0 0
        %1707 = vmatpush1.bf16.msra.mxu0 0
        %1708 = vmatprep.subr.bf16.mxu0 0
        %1709 = vmatpush1.bf16.msra.mxu0 0
        %1710 = vmatprep.subr.bf16.mxu0 0
        %1711 = vmatpush1.bf16.msra.mxu0 0
        %1712 = vmatprep.subr.bf16.mxu0 0
        %1713 = vmatpush1.bf16.msra.mxu0 0
        %1714 = vmatprep.subr.bf16.mxu0 0
        %1715 = vmatpush1.bf16.msra.mxu0 0
        %1716 = vmatprep.subr.bf16.mxu0 0
        %1717 = vmatpush1.bf16.msra.mxu0 0
        %1718 = vmatprep.subr.bf16.mxu0 0
        %1719 = vmatpush1.bf16.msra.mxu0 0
        %1720 = vmatprep.mubr.bf16.mxu0 0
        %1721 = vmatmul.mubr.bf16.gmra.mrb[0].mxu0 %v1686
        %v1722 = vpop.f32.mrb[0].mxu0
        %v1723 = vadd.f32 %v1679, %v1722
        %v1724 = vpop.f32.mrb[0].mxu0
        %v1725 = vpop.f32.mrb[0].mxu0
        %v1726 = vadd.f32 %v1681, %v1725
        %v1727 = vpop.f32.mrb[0].mxu0
        %1728 = vdwg.mxu0
        %v1729 = vmax.f32 %v1723, 0.0
        %v1730 = vmax.f32 %v1726, 0.0
        %v1731 = vld [vmem:[#allocation11] sm:$0xf]
        %v1732 = vld [vmem:[#allocation11 + $0x4] sm:$0xf]
        %v1733 = vld [vmem:[#allocation11 + $0x8] sm:$0xf]
        %v1734 = vld [vmem:[#allocation11 + $0xc] sm:$0xf]
        %v1735 = vld [vmem:[#allocation11 + $0x10] sm:$0xf]
        %v1736 = vld [vmem:[#allocation11 + $0x14] sm:$0xf]
        %v1737 = vld [vmem:[#allocation11 + $0x18] sm:$0xf]
        %v1738 = vld [vmem:[#allocation11 + $0x1c] sm:$0xf]
        %v1739 = vpack.c.bf16 %v1730, %v1729
        %v1748 = vunpack.c.l.b16 %v1731
        %v1749 = vunpack.c.l.b16 %v1732
        %v1750 = vunpack.c.l.b16 %v1733
        %v1751 = vunpack.c.l.b16 %v1734
        %v1752 = vunpack.c.l.b16 %v1735
        %v1753 = vunpack.c.l.b16 %v1736
        %v1754 = vunpack.c.l.b16 %v1737
        %v1755 = vunpack.c.l.b16 %v1738
        %v1756 = vpack.c.b16 %v1749, %v1748
        %v1757 = vpack.c.b16 %v1751, %v1750
        %v1758 = vpack.c.b16 %v1753, %v1752
        %v1759 = vpack.c.b16 %v1755, %v1754
        %1760 = vrot.lane.b32.xlu0 %v431, 121
        %v1761 = vpop.permute.xlu0 %1760
        %1762 = vrot.lane.b32.xlu0 %v432, 121
        %v1763 = vpop.permute.xlu0 %1762
        %1764 = vrot.lane.b32.xlu0 %v433, 121
        %v1765 = vpop.permute.xlu0 %1764
        %1766 = vrot.lane.b32.xlu0 %v434, 121
        %v1767 = vpop.permute.xlu0 %1766
        %1768 = vrot.lane.b32.xlu0 %v435, 121
        %v1769 = vpop.permute.xlu0 %1768
        %1770 = vrot.lane.b32.xlu0 %v436, 121
        %v1771 = vpop.permute.xlu0 %1770
        %1772 = vrot.lane.b32.xlu0 %v437, 121
        %v1773 = vpop.permute.xlu0 %1772
        %1774 = vrot.lane.b32.xlu0 %v438, 121
        %v1775 = vpop.permute.xlu0 %1774
        %v1785 = vsel %vm834, %v1756, 0
        %v1788 = vsel %vm834, %v1757, 0
        %v1791 = vsel %vm834, %v1758, 0
        %v1794 = vsel %vm834, %v1759, 0
        %1796 = vmatprep.subr.bf16.mxu0 0
        %1797 = vmatpush1.bf16.msra.mxu0 %v1739
        %1798 = vmatprep.subr.bf16.mxu0 0
        %1799 = vmatpush1.bf16.msra.mxu0 0
        %1800 = vmatprep.subr.bf16.mxu0 0
        %1801 = vmatpush1.bf16.msra.mxu0 0
        %1802 = vmatprep.subr.bf16.mxu0 0
        %1803 = vmatpush1.bf16.msra.mxu0 0
        %1804 = vmatprep.subr.bf16.mxu0 0
        %1805 = vmatpush1.bf16.msra.mxu0 0
        %1806 = vmatprep.subr.bf16.mxu0 0
        %1807 = vmatpush1.bf16.msra.mxu0 0
        %1808 = vmatprep.subr.bf16.mxu0 0
        %1809 = vmatpush1.bf16.msra.mxu0 0
        %1810 = vmatprep.subr.bf16.mxu0 0
        %1811 = vmatpush1.bf16.msra.mxu0 0
        %1812 = vmatprep.subr.bf16.mxu0 0
        %1813 = vmatpush1.bf16.msra.mxu0 0
        %1814 = vmatprep.subr.bf16.mxu0 0
        %1815 = vmatpush1.bf16.msra.mxu0 0
        %1816 = vmatprep.subr.bf16.mxu0 0
        %1817 = vmatpush1.bf16.msra.mxu0 0
        %1818 = vmatprep.subr.bf16.mxu0 0
        %1819 = vmatpush1.bf16.msra.mxu0 0
        %1820 = vmatprep.subr.bf16.mxu0 0
        %1821 = vmatpush1.bf16.msra.mxu0 0
        %1822 = vmatprep.subr.bf16.mxu0 0
        %1823 = vmatpush1.bf16.msra.mxu0 0
        %1824 = vmatprep.subr.bf16.mxu0 0
        %1825 = vmatpush1.bf16.msra.mxu0 0
        %1826 = vmatprep.subr.bf16.mxu0 0
        %1827 = vmatpush1.bf16.msra.mxu0 0
        %1828 = vmatprep.mubr.bf16.mxu0 0
        %1829 = vmatmul.mubr.bf16.gmra.mrb[0].mxu0 %v1785
        %v1830 = vpop.f32.mrb[0].mxu0
        %v1831 = vadd.f32 %v1761, %v1830
        %v1832 = vpop.f32.mrb[0].mxu0
        %v1833 = vpop.f32.mrb[0].mxu0
        %v1834 = vadd.f32 %v1763, %v1833
        %v1835 = vpop.f32.mrb[0].mxu0
        %1836 = vmatprep.mubr.bf16.mxu0 0
        %1837 = vmatmul.mubr.bf16.gmra.mrb[0].mxu0 %v1788
        %v1838 = vpop.f32.mrb[0].mxu0
        %v1839 = vadd.f32 %v1765, %v1838
        %v1840 = vpop.f32.mrb[0].mxu0
        %v1841 = vpop.f32.mrb[0].mxu0
        %v1842 = vadd.f32 %v1767, %v1841
        %v1843 = vpop.f32.mrb[0].mxu0
        %1844 = vmatprep.mubr.bf16.mxu0 0
        %1845 = vmatmul.mubr.bf16.gmra.mrb[0].mxu0 %v1791
        %v1846 = vpop.f32.mrb[0].mxu0
        %v1847 = vadd.f32 %v1769, %v1846
        %v1848 = vpop.f32.mrb[0].mxu0
        %v1849 = vpop.f32.mrb[0].mxu0
        %v1850 = vadd.f32 %v1771, %v1849
        %v1851 = vpop.f32.mrb[0].mxu0
        %1852 = vmatprep.mubr.bf16.mxu0 0
        %1853 = vmatmul.mubr.bf16.gmra.mrb[0].mxu0 %v1794
        %v1854 = vpop.f32.mrb[0].mxu0
        %v1855 = vadd.f32 %v1773, %v1854
        %v1856 = vpop.f32.mrb[0].mxu0
        %v1857 = vpop.f32.mrb[0].mxu0
        %v1858 = vadd.f32 %v1775, %v1857
        %v1859 = vpop.f32.mrb[0].mxu0
        %1860 = vdwg.mxu0
        %v1861 = vxor.u32 %v1831, 2147483648
        %v1862 = vxor.u32 %v1834, 2147483648
        %v1863 = vxor.u32 %v1839, 2147483648
        %v1864 = vxor.u32 %v1842, 2147483648
        %v1865 = vxor.u32 %v1847, 2147483648
        %v1866 = vxor.u32 %v1850, 2147483648
        %v1867 = vxor.u32 %v1855, 2147483648
        %v1868 = vxor.u32 %v1858, 2147483648
        %v1869 = vmul.f32 %v1861, 1.442695
        %v1870 = vpow.pop %v1869
        %v1871 = vmul.f32 %v1862, 1.442695
        %v1872 = vpow.pop %v1871
        %v1873 = vmul.f32 %v1863, 1.442695
        %v1874 = vpow.pop %v1873
        %v1875 = vmul.f32 %v1864, 1.442695
        %v1876 = vpow.pop %v1875
        %v1877 = vmul.f32 %v1865, 1.442695
        %v1878 = vpow.pop %v1877
        %v1879 = vmul.f32 %v1866, 1.442695
        %v1880 = vpow.pop %v1879
        %v1881 = vmul.f32 %v1867, 1.442695
        %v1882 = vpow.pop %v1881
        %v1883 = vmul.f32 %v1868, 1.442695
        %v1884 = vpow.pop %v1883
        %v1885 = vadd.f32 %v1870, 1.0
        %v1886 = vadd.f32 %v1872, 1.0
        %v1887 = vadd.f32 %v1874, 1.0
        %v1888 = vadd.f32 %v1876, 1.0
        %v1889 = vadd.f32 %v1878, 1.0
        %v1890 = vadd.f32 %v1880, 1.0
        %v1891 = vadd.f32 %v1882, 1.0
        %v1892 = vadd.f32 %v1884, 1.0
        %v1893 = vrcp.pop %v1885
        %v1894 = vmul.f32 1.0, %v1893
        %v1895 = vrcp.pop %v1886
        %v1896 = vmul.f32 1.0, %v1895
        %v1897 = vrcp.pop %v1887
        %v1898 = vmul.f32 1.0, %v1897
        %v1899 = vrcp.pop %v1888
        %v1900 = vmul.f32 1.0, %v1899
        %v1901 = vrcp.pop %v1889
        %v1902 = vmul.f32 1.0, %v1901
        %v1903 = vrcp.pop %v1890
        %v1904 = vmul.f32 1.0, %v1903
        %v1905 = vrcp.pop %v1891
        %v1906 = vmul.f32 1.0, %v1905
        %v1907 = vrcp.pop %v1892
        %v1908 = vmul.f32 1.0, %v1907
        %1910 = vset.pattern.permute.xlu0 0
        %1911 = vperm.xlu0 %1910, %v1894
        %v1912 = vpop.permute.xlu0 %1911
        %1915 = vset.pattern.permute.xlu0 0
        %1916 = vperm.xlu0 %1915, %v1896
        %v1917 = vpop.permute.xlu0 %1916
        %1920 = vset.pattern.permute.xlu0 0
        %1921 = vperm.xlu0 %1920, %v1898
        %v1922 = vpop.permute.xlu0 %1921
        %1925 = vset.pattern.permute.xlu0 0
        %1926 = vperm.xlu0 %1925, %v1900
        %v1927 = vpop.permute.xlu0 %1926
        %1930 = vset.pattern.permute.xlu0 0
        %1931 = vperm.xlu0 %1930, %v1902
        %v1932 = vpop.permute.xlu0 %1931
        %1935 = vset.pattern.permute.xlu0 0
        %1936 = vperm.xlu0 %1935, %v1904
        %v1937 = vpop.permute.xlu0 %1936
        %1940 = vset.pattern.permute.xlu0 0
        %1941 = vperm.xlu0 %1940, %v1906
        %v1942 = vpop.permute.xlu0 %1941
        %1945 = vset.pattern.permute.xlu0 0
        %1946 = vperm.xlu0 %1945, %v1908
        %v1947 = vpop.permute.xlu0 %1946
        %v1949 = vmul.f32 %v1912, %v1635
        %v1950 = vmul.f32 %v1917, %v1636
        %v1951 = vmul.f32 %v1922, %v1637
        %v1952 = vmul.f32 %v1927, %v1638
        %v1953 = vmul.f32 %v1932, %v1639
        %v1954 = vmul.f32 %v1937, %v1640
        %v1955 = vmul.f32 %v1942, %v1641
        %v1956 = vmul.f32 %v1947, %v1642
        %v1957 = vadd.f32 %v1949, %v709
        %v1958 = vadd.f32 %v1950, %v710
        %v1959 = vadd.f32 %v1951, %v711
        %v1960 = vadd.f32 %v1952, %v712
        %v1961 = vadd.f32 %v1953, %v713
        %v1962 = vadd.f32 %v1954, %v714
        %v1963 = vadd.f32 %v1955, %v715
        %v1964 = vadd.f32 %v1956, %v716
        %1965 = vst [vmem:[%s425] sm:$0xff] %v1957
        %1966 = vst [vmem:[%s425 + $0x8] sm:$0xff] %v1958
        %1967 = vst [vmem:[%s425 + $0x10] sm:$0xff] %v1959
        %1968 = vst [vmem:[%s425 + $0x18] sm:$0xff] %v1960
        %1969 = vst [vmem:[%s425 + $0x20] sm:$0xff] %v1961
        %1970 = vst [vmem:[%s425 + $0x28] sm:$0xff] %v1962
        %1971 = vst [vmem:[%s425 + $0x30] sm:$0xff] %v1963
        %1972 = vst [vmem:[%s425 + $0x38] sm:$0xff] %v1964
        %s1973 = sand.u32 %s210, 1
        %s1974 = scalar_lea.sflag [#allocation4], %s1973
        %s1975 = sand.u32 %s210, 1
        %s1976 = smul.addr %s1975, 64
        %s1977 = scalar_lea.vmem [#allocation16], %s1976
        // Predicated region
        $region85: #{tpu_custom_call.1} parent=51 // pred_check
          %p1978 = pneg %p220
        $region86: #{tpu_custom_call.1} parent=51 // pred_check_branch
          %1980 = sbr.rel (%p1978) target = $region88
        $region87: #{tpu_custom_call.1} parent=51 // pred_region
          %s1982 = ssub.s32 1024, 1024
          %1983 = vsyncadd %s1974, %s1982
          %s1984 = smul.addr %s29, 8
          %s1985 = smul.addr %s1984, 128
          %s1986 = scalar_lea.hbm %s8, %s1985
          %s1987 = sshll.u32 %s1977, 4
          %s1988 = int_to_ptr.vmem [resolvable:$true] %s1987
          %1993 = dma.vmem_to_hbm [thread:$0]  %s1988, 1024, %s1986, %s1974, 128, 128, 8
        $region88: #{tpu_custom_call.1} parent=51 // pred_fallthru
          _
      $region52: #{tpu_custom_call.1} parent=5 // pred_fallthru
        _
      %p1994 = scmp.le.s32.totalorder 2, %s24
      // Predicated region
      $region89: #{tpu_custom_call.1} parent=5 // pred_check
        %p1995 = pneg %p1994
      $region90: #{tpu_custom_call.1} parent=5 // pred_check_branch
        %1997 = sbr.rel (%p1995) target = $region92
      $region91: #{tpu_custom_call.1} parent=5 // pred_region
        %s1998 = ssub.s32 %s24, 2
        // Predicated region
        $region93: #{tpu_custom_call.1} parent=91 // pred_check
          %p1999 = pneg %p226
        $region94: #{tpu_custom_call.1} parent=91 // pred_check_branch
          %2001 = sbr.rel (%p1999) target = $region96
        $region95: #{tpu_custom_call.1} parent=91 // pred_region
          %s2002 = sand.u32 %s211, 1
          %s2003 = scalar_lea.sflag [#allocation4], %s2002
          %s2004 = sand.u32 %s211, 1
          %s2005 = smul.addr %s2004, 64
          %s2006 = scalar_lea.vmem [#allocation16], %s2005
          %2007 = dma.done %s2003, 1024
        $region96: #{tpu_custom_call.1} parent=91 // pred_fallthru
          _
      $region92: #{tpu_custom_call.1} parent=5 // pred_fallthru
        _
    $region6: #{tpu_custom_call.1} parent=1 // loop_footer
      %s28 = sadd.s32 1, %s24
    $region7: #{tpu_custom_call.1} parent=1 // loop_footer_branch
      %23 = sbr.rel target = $region3
    $region8: #{tpu_custom_call.1} parent=1 // loop_exit
      _
    %2008 = vsyncpa [#allocation3], 1
    %s2009 = scalar_lea.sflag [#allocation3], 1
    %2010 = vsyncpa %s2009, 1
    %2011 = vsyncpa [#allocation6], 1
    %2012 = vsyncpa [#allocation9], 1
    %2013 = vsyncpa [#allocation12], 1
    %2014 = vsyncpa [#allocation15], 1
    %2015 = vsyncpa [#allocation4], 1
    %s2016 = scalar_lea.sflag [#allocation4], 1
    %2017 = vsyncpa %s2016, 1

// kernel: tpu_custom_call.1
$region0: #{tpu_custom_call.1}
  #allocation0 [shape = 'u32[]', space=smem, size = 0x4, offset = 0x4, fixed_abs, tag = 'smem constant byte address 0x4 - core index']
  #allocation1 [shape = 'u32[144,128]{1,0:T(1,128)}', space=vmem, size = 0x12000, scoped, tag = 'internal scratch']
  %s0 = inlined_call_operand.hbm [shape: bf16[2,32,128], index: 0, kind: input, shape index: {}]
  %s1 = inlined_call_operand.hbm [shape: bf16[128,32], index: 1, kind: input, shape index: {}]
  %s2 = inlined_call_operand.hbm [shape: bf16[3,16,16], index: 2, kind: input, shape index: {}]
  %s3 = inlined_call_operand.hbm [shape: bf16[4,64,16], index: 3, kind: input, shape index: {}]
  %s4 = inlined_call_operand.hbm [shape: bf16[16,64], index: 4, kind: input, shape index: {}]
  %s5 = inlined_call_operand.hbm [shape: bf16[64,16], index: 5, kind: input, shape index: {}]
  %s6 = inlined_call_operand.hbm [shape: f32[64,9], index: 6, kind: input, shape index: {}]
  %s7 = inlined_call_operand.hbm [shape: f32[3,16,3], index: 7, kind: input, shape index: {}]
  %s8 = inlined_call_operand.hbm [shape: f32[2,64,128], index: 8, kind: output, shape index: {}]
  %s9 = sld [smem:[#allocation0]]
  $region97: #{tpu_custom_call.1} parent=0
    _
  %s11 = ssub.s32 1, %s9
  %s12 = scalar_select 0, %s11, %s9
  $region1: #{tpu_custom_call.1} parent=0
    #allocation2 [shape = 'u8[16384]{0}', space=vmem, size = 0x4000, scoped, tag = 'input window, operand 0']
    #allocation3 [shape = 's32[2]{0}', space=sflag, size = 0x8, scoped, tag = 'scoped memory for tpu_custom_call.1']
    #allocation4 [shape = 's32[2]{0}', space=sflag, size = 0x8, scoped, tag = 'scoped memory for tpu_custom_call.1']
    #allocation5 [shape = 'u8[32768]{0}', space=vmem, size = 0x8000, scoped, tag = 'input window, operand 1, single buffered']
    #allocation6 [shape = 's32[1]{0}', space=sflag, size = 0x4, scoped, tag = 'scoped memory for tpu_custom_call.1']
    #allocation7 [shape = 'u8[12288]{0}', space=vmem, size = 0x3000, scoped, tag = 'input window, operand 2, single buffered']
    #allocation8 [shape = 'u8[65536]{0}', space=vmem, size = 0x10000, scoped, tag = 'input window, operand 3, single buffered']
    #allocation9 [shape = 's32[1]{0}', space=sflag, size = 0x4, scoped, tag = 'scoped memory for tpu_custom_call.1']
    #allocation10 [shape = 'u8[4096]{0}', space=vmem, size = 0x1000, scoped, tag = 'input window, operand 4, single buffered']
    #allocation11 [shape = 'u8[16384]{0}', space=vmem, size = 0x4000, scoped, tag = 'input window, operand 5, single buffered']
    #allocation12 [shape = 's32[1]{0}', space=sflag, size = 0x4, scoped, tag = 'scoped memory for tpu_custom_call.1']
    #allocation13 [shape = 'u8[32768]{0}', space=vmem, size = 0x8000, scoped, tag = 'input window, operand 6, single buffered']
    #allocation14 [shape = 'u8[24576]{0}', space=vmem, size = 0x6000, scoped, tag = 'input window, operand 7, single buffered']
    #allocation15 [shape = 's32[1]{0}', space=sflag, size = 0x4, scoped, tag = 'scoped memory for tpu_custom_call.1']
    #allocation16 [shape = 'u8[65536]{0}', space=vmem, size = 0x10000, scoped, tag = 'output window, operand 0']
    %13 = vsyncpa [#allocation3], 0
    %s14 = scalar_lea.sflag [#allocation3], 1
    %15 = vsyncpa %s14, 0
    %16 = vsyncpa [#allocation6], 0
    %17 = vsyncpa [#allocation9], 0
    %18 = vsyncpa [#allocation12], 0
    %19 = vsyncpa [#allocation15], 0
    %20 = vsyncpa [#allocation4], 0
    %s21 = scalar_lea.sflag [#allocation4], 1
    %22 = vsyncpa %s21, 0
    loop: start=0, step=1, limit=4
    $region2: #{tpu_custom_call.1} parent=1 // loop_pre_header
      _
    $region3: #{tpu_custom_call.1} parent=1 // loop_header
      %s24 = sphi 0, %s28
      %p25 = scmp.ge.s32.totalorder %s24, 4
      %s34 = sphi 0, %s36
      %s37 = sphi 0, %s34
      %s38 = sphi 0, %s37
      %s54 = sphi 0, %s38
      %s58 = sphi 0, %s58
      %s60 = sphi 0, %s58
      %s61 = sphi 0, %s60
      %s75 = sphi 0, %s61
      %s79 = sphi 0, %s79
      %s81 = sphi 0, %s79
      %s82 = sphi 0, %s81
      %s96 = sphi 0, %s82
      %s100 = sphi 0, %s100
      %s102 = sphi 0, %s100
      %s103 = sphi 0, %s102
      %s117 = sphi 0, %s103
      %s121 = sphi 0, %s121
      %s123 = sphi 0, %s121
      %s124 = sphi 0, %s123
      %s138 = sphi 0, %s124
      %s142 = sphi 0, %s142
      %s144 = sphi 0, %s142
      %s145 = sphi 0, %s144
      %s159 = sphi 0, %s145
      %s163 = sphi 0, %s163
      %s165 = sphi 0, %s163
      %s166 = sphi 0, %s165
      %s180 = sphi 0, %s166
      %s184 = sphi 0, %s184
      %s186 = sphi 0, %s184
      %s187 = sphi 0, %s186
      %s201 = sphi 0, %s187
      %s207 = sphi 0, %s209
      %s210 = sphi 0, %s207
      %s211 = sphi 0, %s210
      %s227 = sphi 0, %s211
    $region4: #{tpu_custom_call.1} parent=1 // loop_header_branch
      %27 = sbr.rel (%p25) target = $region8
    $region5: #{tpu_custom_call.1} parent=1 // loop_body
      %s29 = ssub.s32 %s24, 1
      %s30 = ssub.s32 %s24, 2
      %s31 = sadd.s32 %s24, 1
      %s32 = ssub.s32 %s24, %s31
      %p33 = scmp.eq.s32.totalorder %s32, 0
      %s35 = sadd.s32 %s34, 1
      %s36 = scalar_select %p33, %s34, %s35
      %p39 = pneg %p33
      %p40 = scmp.eq.s32.totalorder %s24, 1
      %p41 = por %p39, %p40
      %p42 = scmp.ne.s32.totalorder %s34, %s37
      %p43 = scmp.eq.s32.totalorder %s24, 0
      %p44 = por %p42, %p43
      %p45 = scmp.ne.s32.totalorder %s34, %s37
      %p46 = scmp.eq.s32.totalorder %s29, 1
      %p47 = por %p45, %p46
      %p48 = scmp.ne.s32.totalorder %s37, %s38
      %p49 = scmp.eq.s32.totalorder %s29, 0
      %p50 = por %p48, %p49
      %p51 = scmp.ne.s32.totalorder %s37, %s38
      %p52 = scmp.eq.s32.totalorder %s30, 1
      %p53 = por %p51, %p52
      %p55 = scmp.ne.s32.totalorder %s38, %s54
      %p56 = scmp.eq.s32.totalorder %s30, 0
      %p57 = por %p55, %p56
      %s59 = sadd.s32 %s58, 1
      %p62 = scmp.eq.s32.totalorder %s24, 1
      %p63 = scmp.ne.s32.totalorder %s58, %s60
      %p64 = scmp.eq.s32.totalorder %s24, 0
      %p65 = por %p63, %p64
      %p66 = scmp.ne.s32.totalorder %s58, %s60
      %p67 = scmp.eq.s32.totalorder %s29, 1
      %p68 = por %p66, %p67
      %p69 = scmp.ne.s32.totalorder %s60, %s61
      %p70 = scmp.eq.s32.totalorder %s29, 0
      %p71 = por %p69, %p70
      %p72 = scmp.ne.s32.totalorder %s60, %s61
      %p73 = scmp.eq.s32.totalorder %s30, 1
      %p74 = por %p72, %p73
      %p76 = scmp.ne.s32.totalorder %s61, %s75
      %p77 = scmp.eq.s32.totalorder %s30, 0
      %p78 = por %p76, %p77
      %s80 = sadd.s32 %s79, 1
      %p83 = scmp.eq.s32.totalorder %s24, 1
      %p84 = scmp.ne.s32.totalorder %s79, %s81
      %p85 = scmp.eq.s32.totalorder %s24, 0
      %p86 = por %p84, %p85
      %p87 = scmp.ne.s32.totalorder %s79, %s81
      %p88 = scmp.eq.s32.totalorder %s29, 1
      %p89 = por %p87, %p88
      %p90 = scmp.ne.s32.totalorder %s81, %s82
      %p91 = scmp.eq.s32.totalorder %s29, 0
      %p92 = por %p90, %p91
      %p93 = scmp.ne.s32.totalorder %s81, %s82
      %p94 = scmp.eq.s32.totalorder %s30, 1
      %p95 = por %p93, %p94
      %p97 = scmp.ne.s32.totalorder %s82, %s96
      %p98 = scmp.eq.s32.totalorder %s30, 0
      %p99 = por %p97, %p98
      %s101 = sadd.s32 %s100, 1
      %p104 = scmp.eq.s32.totalorder %s24, 1
      %p105 = scmp.ne.s32.totalorder %s100, %s102
      %p106 = scmp.eq.s32.totalorder %s24, 0
      %p107 = por %p105, %p106
      %p108 = scmp.ne.s32.totalorder %s100, %s102
      %p109 = scmp.eq.s32.totalorder %s29, 1
      %p110 = por %p108, %p109
      %p111 = scmp.ne.s32.totalorder %s102, %s103
      %p112 = scmp.eq.s32.totalorder %s29, 0
      %p113 = por %p111, %p112
      %p114 = scmp.ne.s32.totalorder %s102, %s103
      %p115 = scmp.eq.s32.totalorder %s30, 1
      %p116 = por %p114, %p115
      %p118 = scmp.ne.s32.totalorder %s103, %s117
      %p119 = scmp.eq.s32.totalorder %s30, 0
      %p120 = por %p118, %p119
      %s122 = sadd.s32 %s121, 1
      %p125 = scmp.eq.s32.totalorder %s24, 1
      %p126 = scmp.ne.s32.totalorder %s121, %s123
      %p127 = scmp.eq.s32.totalorder %s24, 0
      %p128 = por %p126, %p127
      %p129 = scmp.ne.s32.totalorder %s121, %s123
      %p130 = scmp.eq.s32.totalorder %s29, 1
      %p131 = por %p129, %p130
      %p132 = scmp.ne.s32.totalorder %s123, %s124
      %p133 = scmp.eq.s32.totalorder %s29, 0
      %p134 = por %p132, %p133
      %p135 = scmp.ne.s32.totalorder %s123, %s124
      %p136 = scmp.eq.s32.totalorder %s30, 1
      %p137 = por %p135, %p136
      %p139 = scmp.ne.s32.totalorder %s124, %s138
      %p140 = scmp.eq.s32.totalorder %s30, 0
      %p141 = por %p139, %p140
      %s143 = sadd.s32 %s142, 1
      %p146 = scmp.eq.s32.totalorder %s24, 1
      %p147 = scmp.ne.s32.totalorder %s142, %s144
      %p148 = scmp.eq.s32.totalorder %s24, 0
      %p149 = por %p147, %p148
      %p150 = scmp.ne.s32.totalorder %s142, %s144
      %p151 = scmp.eq.s32.totalorder %s29, 1
      %p152 = por %p150, %p151
      %p153 = scmp.ne.s32.totalorder %s144, %s145
      %p154 = scmp.eq.s32.totalorder %s29, 0
      %p155 = por %p153, %p154
      %p156 = scmp.ne.s32.totalorder %s144, %s145
      %p157 = scmp.eq.s32.totalorder %s30, 1
      %p158 = por %p156, %p157
      %p160 = scmp.ne.s32.totalorder %s145, %s159
      %p161 = scmp.eq.s32.totalorder %s30, 0
      %p162 = por %p160, %p161
      %s164 = sadd.s32 %s163, 1
      %p167 = scmp.eq.s32.totalorder %s24, 1
      %p168 = scmp.ne.s32.totalorder %s163, %s165
      %p169 = scmp.eq.s32.totalorder %s24, 0
      %p170 = por %p168, %p169
      %p171 = scmp.ne.s32.totalorder %s163, %s165
      %p172 = scmp.eq.s32.totalorder %s29, 1
      %p173 = por %p171, %p172
      %p174 = scmp.ne.s32.totalorder %s165, %s166
      %p175 = scmp.eq.s32.totalorder %s29, 0
      %p176 = por %p174, %p175
      %p177 = scmp.ne.s32.totalorder %s165, %s166
      %p178 = scmp.eq.s32.totalorder %s30, 1
      %p179 = por %p177, %p178
      %p181 = scmp.ne.s32.totalorder %s166, %s180
      %p182 = scmp.eq.s32.totalorder %s30, 0
      %p183 = por %p181, %p182
      %s185 = sadd.s32 %s184, 1
      %p188 = scmp.eq.s32.totalorder %s24, 1
      %p189 = scmp.ne.s32.totalorder %s184, %s186
      %p190 = scmp.eq.s32.totalorder %s24, 0
      %p191 = por %p189, %p190
      %p192 = scmp.ne.s32.totalorder %s184, %s186
      %p193 = scmp.eq.s32.totalorder %s29, 1
      %p194 = por %p192, %p193
      %p195 = scmp.ne.s32.totalorder %s186, %s187
      %p196 = scmp.eq.s32.totalorder %s29, 0
      %p197 = por %p195, %p196
      %p198 = scmp.ne.s32.totalorder %s186, %s187
      %p199 = scmp.eq.s32.totalorder %s30, 1
      %p200 = por %p198, %p199
      %p202 = scmp.ne.s32.totalorder %s187, %s201
      %p203 = scmp.eq.s32.totalorder %s30, 0
      %p204 = por %p202, %p203
      %s205 = ssub.s32 %s24, %s31
      %p206 = scmp.eq.s32.totalorder %s205, 0
      %s208 = sadd.s32 %s207, 1
      %s209 = scalar_select %p206, %s207, %s208
      %p212 = pneg %p206
      %p213 = scmp.eq.s32.totalorder %s24, 1
      %p214 = por %p212, %p213
      %p215 = scmp.ne.s32.totalorder %s207, %s210
      %p216 = scmp.eq.s32.totalorder %s24, 0
      %p217 = por %p215, %p216
      %p218 = scmp.ne.s32.totalorder %s207, %s210
      %p219 = scmp.eq.s32.totalorder %s29, 1
      %p220 = por %p218, %p219
      %p221 = scmp.ne.s32.totalorder %s210, %s211
      %p222 = scmp.eq.s32.totalorder %s29, 0
      %p223 = por %p221, %p222
      %p224 = scmp.ne.s32.totalorder %s210, %s211
      %p225 = scmp.eq.s32.totalorder %s30, 1
      %p226 = por %p224, %p225
      %p228 = scmp.ne.s32.totalorder %s211, %s227
      %p229 = scmp.eq.s32.totalorder %s30, 0
      %p230 = por %p228, %p229
      %p231 = scmp.le.s32.totalorder 1, %s24
      %p232 = scmp.lt.s32.totalorder %s24, 3
      %p233 = pnand %p231, %p232
      %p234 = pneg %p233
      // Predicated region
      $region9: #{tpu_custom_call.1} parent=5 // pred_check
        _
      $region10: #{tpu_custom_call.1} parent=5 // pred_check_branch
        %236 = sbr.rel (%p233) target = $region12
      $region11: #{tpu_custom_call.1} parent=5 // pred_region
        %s237 = ssub.s32 %s24, 1
        // Predicated region
        $region13: #{tpu_custom_call.1} parent=11 // pred_check
          %p238 = pneg %p71
        $region14: #{tpu_custom_call.1} parent=11 // pred_check_branch
          %240 = sbr.rel (%p238) target = $region16
        $region15: #{tpu_custom_call.1} parent=11 // pred_region
          %s242 = ssub.s32 1024, 1024
          %243 = vsyncadd [#allocation6], %s242
          %s244 = sshll.u32 [#allocation5], 4
          %s245 = int_to_ptr.vmem [resolvable:$true] %s244
          %250 = dma.hbm_to_vmem [thread:$0]  %s1, 1024, %s245, [#allocation6], 64, 64, 4
        $region16: #{tpu_custom_call.1} parent=11 // pred_fallthru
          _
        // Predicated region
        $region17: #{tpu_custom_call.1} parent=11 // pred_check
          %p251 = pneg %p92
        $region18: #{tpu_custom_call.1} parent=11 // pred_check_branch
          %253 = sbr.rel (%p251) target = $region20
        $region19: #{tpu_custom_call.1} parent=11 // pred_region
          %s255 = ssub.s32 384, 384
          %256 = vsyncadd [#allocation6], %s255
          %s257 = sshll.u32 [#allocation7], 4
          %s258 = int_to_ptr.vmem [resolvable:$true] %s257
          %263 = dma.hbm_to_vmem [thread:$0]  %s2, 384, %s258, [#allocation6], 64, 64, 4
        $region20: #{tpu_custom_call.1} parent=11 // pred_fallthru
          _
        // Predicated region
        $region21: #{tpu_custom_call.1} parent=11 // pred_check
          %p264 = pneg %p113
        $region22: #{tpu_custom_call.1} parent=11 // pred_check_branch
          %266 = sbr.rel (%p264) target = $region24
        $region23: #{tpu_custom_call.1} parent=11 // pred_region
          %s268 = ssub.s32 2048, 2048
          %269 = vsyncadd [#allocation9], %s268
          %s270 = sshll.u32 [#allocation8], 4
          %s271 = int_to_ptr.vmem [resolvable:$true] %s270
          %276 = dma.hbm_to_vmem [thread:$0]  %s3, 2048, %s271, [#allocation9], 64, 64, 4
        $region24: #{tpu_custom_call.1} parent=11 // pred_fallthru
          _
        // Predicated region
        $region25: #{tpu_custom_call.1} parent=11 // pred_check
          %p277 = pneg %p134
        $region26: #{tpu_custom_call.1} parent=11 // pred_check_branch
          %279 = sbr.rel (%p277) target = $region28
        $region27: #{tpu_custom_call.1} parent=11 // pred_region
          %s281 = ssub.s32 128, 128
          %282 = vsyncadd [#allocation9], %s281
          %s283 = sshll.u32 [#allocation10], 4
          %s284 = int_to_ptr.vmem [resolvable:$true] %s283
          %289 = dma.hbm_to_vmem [thread:$0]  %s4, 128, %s284, [#allocation9], 64, 64, 4
        $region28: #{tpu_custom_call.1} parent=11 // pred_fallthru
          _
        // Predicated region
        $region29: #{tpu_custom_call.1} parent=11 // pred_check
          %p290 = pneg %p155
        $region30: #{tpu_custom_call.1} parent=11 // pred_check_branch
          %292 = sbr.rel (%p290) target = $region32
        $region31: #{tpu_custom_call.1} parent=11 // pred_region
          %s294 = ssub.s32 512, 512
          %295 = vsyncadd [#allocation12], %s294
          %s296 = sshll.u32 [#allocation11], 4
          %s297 = int_to_ptr.vmem [resolvable:$true] %s296
          %302 = dma.hbm_to_vmem [thread:$0]  %s5, 512, %s297, [#allocation12], 64, 64, 4
        $region32: #{tpu_custom_call.1} parent=11 // pred_fallthru
          _
        // Predicated region
        $region33: #{tpu_custom_call.1} parent=11 // pred_check
          %p303 = pneg %p176
        $region34: #{tpu_custom_call.1} parent=11 // pred_check_branch
          %305 = sbr.rel (%p303) target = $region36
        $region35: #{tpu_custom_call.1} parent=11 // pred_region
          %s307 = ssub.s32 1024, 1024
          %308 = vsyncadd [#allocation12], %s307
          %s309 = sshll.u32 [#allocation13], 4
          %s310 = int_to_ptr.vmem [resolvable:$true] %s309
          %315 = dma.hbm_to_vmem [thread:$0]  %s6, 1024, %s310, [#allocation12], 128, 128, 8
        $region36: #{tpu_custom_call.1} parent=11 // pred_fallthru
          _
        // Predicated region
        $region37: #{tpu_custom_call.1} parent=11 // pred_check
          %p316 = pneg %p197
        $region38: #{tpu_custom_call.1} parent=11 // pred_check_branch
          %318 = sbr.rel (%p316) target = $region40
        $region39: #{tpu_custom_call.1} parent=11 // pred_region
          %s320 = ssub.s32 768, 768
          %321 = vsyncadd [#allocation15], %s320
          %s322 = sshll.u32 [#allocation14], 4
          %s323 = int_to_ptr.vmem [resolvable:$true] %s322
          %328 = dma.hbm_to_vmem [thread:$0]  %s7, 768, %s323, [#allocation15], 128, 128, 8
        $region40: #{tpu_custom_call.1} parent=11 // pred_fallthru
          _
      $region12: #{tpu_custom_call.1} parent=5 // pred_fallthru
        _
      %p329 = scmp.lt.s32.totalorder %s24, 2
      // Predicated region
      $region41: #{tpu_custom_call.1} parent=5 // pred_check
        %p330 = pneg %p329
      $region42: #{tpu_custom_call.1} parent=5 // pred_check_branch
        %332 = sbr.rel (%p330) target = $region44
      $region43: #{tpu_custom_call.1} parent=5 // pred_region
        // Predicated region
        $region45: #{tpu_custom_call.1} parent=43 // pred_check
          %p333 = pneg %p44
        $region46: #{tpu_custom_call.1} parent=43 // pred_check_branch
          %335 = sbr.rel (%p333) target = $region48
        $region47: #{tpu_custom_call.1} parent=43 // pred_region
          %s336 = sand.u32 %s34, 1
          %s337 = scalar_lea.sflag [#allocation3], %s336
          %s338 = sand.u32 %s34, 1
          %s339 = smul.addr %s338, 16
          %s340 = scalar_lea.vmem [#allocation2], %s339
          %s342 = ssub.s32 256, 256
          %343 = vsyncadd %s337, %s342
          %s344 = smul.addr %s24, 4
          %s345 = smul.addr %s344, 64
          %s346 = scalar_lea.hbm %s0, %s345
          %s347 = sshll.u32 %s340, 4
          %s348 = int_to_ptr.vmem [resolvable:$true] %s347
          %353 = dma.hbm_to_vmem [thread:$0]  %s346, 256, %s348, %s337, 64, 64, 4
        $region48: #{tpu_custom_call.1} parent=43 // pred_fallthru
          _
      $region44: #{tpu_custom_call.1} parent=5 // pred_fallthru
        _
      %p354 = scmp.le.s32.totalorder 1, %s24
      %p355 = scmp.lt.s32.totalorder %s24, 3
      %p356 = pnand %p354, %p355
      %p357 = pneg %p356
      // Predicated region
      $region49: #{tpu_custom_call.1} parent=5 // pred_check
        _
      $region50: #{tpu_custom_call.1} parent=5 // pred_check_branch
        %359 = sbr.rel (%p356) target = $region52
      $region51: #{tpu_custom_call.1} parent=5 // pred_region
        %s360 = ssub.s32 %s24, 1
        %s361 = sand.u32 %s37, 1
        %s362 = scalar_lea.sflag [#allocation3], %s361
        %s363 = sand.u32 %s37, 1
        %s364 = smul.addr %s363, 16
        %s365 = scalar_lea.vmem [#allocation2], %s364
        // Predicated region
        $region53: #{tpu_custom_call.1} parent=51 // pred_check
          %p366 = pneg %p50
        $region54: #{tpu_custom_call.1} parent=51 // pred_check_branch
          %368 = sbr.rel (%p366) target = $region56
        $region55: #{tpu_custom_call.1} parent=51 // pred_region
          %369 = dma.done %s362, 256
        $region56: #{tpu_custom_call.1} parent=51 // pred_fallthru
          _
        // Predicated region
        $region57: #{tpu_custom_call.1} parent=51 // pred_check
          %p370 = pneg %p71
        $region58: #{tpu_custom_call.1} parent=51 // pred_check_branch
          %372 = sbr.rel (%p370) target = $region60
        $region59: #{tpu_custom_call.1} parent=51 // pred_region
          %373 = dma.done [#allocation6], 1024
        $region60: #{tpu_custom_call.1} parent=51 // pred_fallthru
          _
        // Predicated region
        $region61: #{tpu_custom_call.1} parent=51 // pred_check
          %p374 = pneg %p92
        $region62: #{tpu_custom_call.1} parent=51 // pred_check_branch
          %376 = sbr.rel (%p374) target = $region64
        $region63: #{tpu_custom_call.1} parent=51 // pred_region
          %377 = dma.done [#allocation6], 384
        $region64: #{tpu_custom_call.1} parent=51 // pred_fallthru
          _
        // Predicated region
        $region65: #{tpu_custom_call.1} parent=51 // pred_check
          %p378 = pneg %p113
        $region66: #{tpu_custom_call.1} parent=51 // pred_check_branch
          %380 = sbr.rel (%p378) target = $region68
        $region67: #{tpu_custom_call.1} parent=51 // pred_region
          %381 = dma.done [#allocation9], 2048
        $region68: #{tpu_custom_call.1} parent=51 // pred_fallthru
          _
        // Predicated region
        $region69: #{tpu_custom_call.1} parent=51 // pred_check
          %p382 = pneg %p134
        $region70: #{tpu_custom_call.1} parent=51 // pred_check_branch
          %384 = sbr.rel (%p382) target = $region72
        $region71: #{tpu_custom_call.1} parent=51 // pred_region
          %385 = dma.done [#allocation9], 128
        $region72: #{tpu_custom_call.1} parent=51 // pred_fallthru
          _
        // Predicated region
        $region73: #{tpu_custom_call.1} parent=51 // pred_check
          %p386 = pneg %p155
        $region74: #{tpu_custom_call.1} parent=51 // pred_check_branch
          %388 = sbr.rel (%p386) target = $region76
        $region75: #{tpu_custom_call.1} parent=51 // pred_region
          %389 = dma.done [#allocation12], 512
        $region76: #{tpu_custom_call.1} parent=51 // pred_fallthru
          _
        // Predicated region
        $region77: #{tpu_custom_call.1} parent=51 // pred_check
          %p390 = pneg %p176
        $region78: #{tpu_custom_call.1} parent=51 // pred_check_branch
          %392 = sbr.rel (%p390) target = $region80
        $region79: #{tpu_custom_call.1} parent=51 // pred_region
          %393 = dma.done [#allocation12], 1024
        $region80: #{tpu_custom_call.1} parent=51 // pred_fallthru
          _
        // Predicated region
        $region81: #{tpu_custom_call.1} parent=51 // pred_check
          %p394 = pneg %p197
        $region82: #{tpu_custom_call.1} parent=51 // pred_check_branch
          %396 = sbr.rel (%p394) target = $region84
        $region83: #{tpu_custom_call.1} parent=51 // pred_region
          %397 = dma.done [#allocation15], 768
        $region84: #{tpu_custom_call.1} parent=51 // pred_fallthru
          _
        %s398 = sand.u32 %s37, 1
        %s399 = scalar_lea.sflag [#allocation3], %s398
        %s400 = sand.u32 %s37, 1
        %s401 = smul.addr %s400, 16
        %s402 = scalar_lea.vmem [#allocation2], %s401
        %p403 = pneg %p50
        %p404 = pneg %p47
        %p405 = pneg %p71
        %p406 = pneg %p68
        %p407 = pneg %p92
        %p408 = pneg %p89
        %p409 = pneg %p113
        %p410 = pneg %p110
        %p411 = pneg %p134
        %p412 = pneg %p131
        %p413 = pneg %p155
        %p414 = pneg %p152
        %p415 = pneg %p176
        %p416 = pneg %p173
        %p417 = pneg %p197
        %p418 = pneg %p194
        %p419 = pneg %p223
        %p420 = pneg %p220
        %s421 = sand.u32 %s210, 1
        %s422 = scalar_lea.sflag [#allocation4], %s421
        %s423 = sand.u32 %s210, 1
        %s424 = smul.addr %s423, 64
        %s425 = scalar_lea.vmem [#allocation16], %s424
        %v427 = vld [vmem:[%s365] sm:$0xf]
        %v428 = vld [vmem:[%s365 + $0x4] sm:$0xf]
        %v429 = vld [vmem:[%s365 + $0x8] sm:$0xf]
        %v430 = vld [vmem:[%s365 + $0xc] sm:$0xf]
        %v431 = vld [vmem:[#allocation13] sm:$0xff]
        %v432 = vld [vmem:[#allocation13 + $0x8] sm:$0xff]
        %v433 = vld [vmem:[#allocation13 + $0x10] sm:$0xff]
        %v434 = vld [vmem:[#allocation13 + $0x18] sm:$0xff]
        %v435 = vld [vmem:[#allocation13 + $0x20] sm:$0xff]
        %v436 = vld [vmem:[#allocation13 + $0x28] sm:$0xff]
        %v437 = vld [vmem:[#allocation13 + $0x30] sm:$0xff]
        %v438 = vld [vmem:[#allocation13 + $0x38] sm:$0xff]
        %v439 = vld [vmem:[#allocation5] sm:$0xf]
        %v440 = vld [vmem:[#allocation5 + $0x4] sm:$0xf]
        %v441 = vld [vmem:[#allocation5 + $0x8] sm:$0xf]
        %v442 = vld [vmem:[#allocation5 + $0xc] sm:$0xf]
        %v443 = vld [vmem:[#allocation5 + $0x10] sm:$0xf]
        %v444 = vld [vmem:[#allocation5 + $0x14] sm:$0xf]
        %v445 = vld [vmem:[#allocation5 + $0x18] sm:$0xf]
        %v446 = vld [vmem:[#allocation5 + $0x1c] sm:$0xf]
        %v447 = vld [vmem:[#allocation5 + $0x20] sm:$0xf]
        %v448 = vld [vmem:[#allocation5 + $0x24] sm:$0xf]
        %v449 = vld [vmem:[#allocation5 + $0x28] sm:$0xf]
        %v450 = vld [vmem:[#allocation5 + $0x2c] sm:$0xf]
        %v451 = vld [vmem:[#allocation5 + $0x30] sm:$0xf]
        %v452 = vld [vmem:[#allocation5 + $0x34] sm:$0xf]
        %v453 = vld [vmem:[#allocation5 + $0x38] sm:$0xf]
        %v454 = vld [vmem:[#allocation5 + $0x3c] sm:$0xf]
        %v471 = vunpack.c.l.b16 %v439
        %v472 = vunpack.c.l.b16 %v440
        %v473 = vunpack.c.l.b16 %v441
        %v474 = vunpack.c.l.b16 %v442
        %v475 = vunpack.c.l.b16 %v443
        %v476 = vunpack.c.l.b16 %v444
        %v477 = vunpack.c.l.b16 %v445
        %v478 = vunpack.c.l.b16 %v446
        %v479 = vunpack.c.l.b16 %v447
        %v480 = vunpack.c.l.b16 %v448
        %v481 = vunpack.c.l.b16 %v449
        %v482 = vunpack.c.l.b16 %v450
        %v483 = vunpack.c.l.b16 %v451
        %v484 = vunpack.c.l.b16 %v452
        %v485 = vunpack.c.l.b16 %v453
        %v486 = vunpack.c.l.b16 %v454
        %v487 = vpack.c.b16 %v472, %v471
        %v488 = vpack.c.b16 %v474, %v473
        %v489 = vpack.c.b16 %v476, %v475
        %v490 = vpack.c.b16 %v478, %v477
        %v491 = vpack.c.b16 %v480, %v479
        %v492 = vpack.c.b16 %v482, %v481
        %v493 = vpack.c.b16 %v484, %v483
        %v494 = vpack.c.b16 %v486, %v485
        %v499 = vunpack.c.l.b16 %v427
        %v500 = vunpack.c.l.b16 %v428
        %v501 = vunpack.c.l.b16 %v429
        %v502 = vunpack.c.l.b16 %v430
        %v503 = vpack.c.b16 %v500, %v499
        %v504 = vpack.c.b16 %v502, %v501
        %vm507 = vcmask 261120
        %v509 = vsel %vm507, %v487, 0
        %v512 = vsel %vm507, %v488, 0
        %v515 = vsel %vm507, %v489, 0
        %v518 = vsel %vm507, %v490, 0
        %v521 = vsel %vm507, %v491, 0
        %v524 = vsel %vm507, %v492, 0
        %v527 = vsel %vm507, %v493, 0
        %v530 = vsel %vm507, %v494, 0
        %532 = vmatprep.subr.bf16.mxu0 0
        %533 = vmatpush1.bf16.msra.mxu0 %v503
        %534 = vmatprep.subr.bf16.mxu0 0
        %535 = vmatpush1.bf16.msra.mxu0 %v504
        %536 = vmatprep.subr.bf16.mxu0 0
        %537 = vmatpush1.bf16.msra.mxu0 0
        %538 = vmatprep.subr.bf16.mxu0 0
        %539 = vmatpush1.bf16.msra.mxu0 0
        %540 = vmatprep.subr.bf16.mxu0 0
        %541 = vmatpush1.bf16.msra.mxu0 0
        %542 = vmatprep.subr.bf16.mxu0 0
        %543 = vmatpush1.bf16.msra.mxu0 0
        %544 = vmatprep.subr.bf16.mxu0 0
        %545 = vmatpush1.bf16.msra.mxu0 0
        %546 = vmatprep.subr.bf16.mxu0 0
        %547 = vmatpush1.bf16.msra.mxu0 0
        %548 = vmatprep.subr.bf16.mxu0 0
        %549 = vmatpush1.bf16.msra.mxu0 0
        %550 = vmatprep.subr.bf16.mxu0 0
        %551 = vmatpush1.bf16.msra.mxu0 0
        %552 = vmatprep.subr.bf16.mxu0 0
        %553 = vmatpush1.bf16.msra.mxu0 0
        %554 = vmatprep.subr.bf16.mxu0 0
        %555 = vmatpush1.bf16.msra.mxu0 0
        %556 = vmatprep.subr.bf16.mxu0 0
        %557 = vmatpush1.bf16.msra.mxu0 0
        %558 = vmatprep.subr.bf16.mxu0 0
        %559 = vmatpush1.bf16.msra.mxu0 0
        %560 = vmatprep.subr.bf16.mxu0 0
        %561 = vmatpush1.bf16.msra.mxu0 0
        %562 = vmatprep.subr.bf16.mxu0 0
        %563 = vmatpush1.bf16.msra.mxu0 0
        %564 = vmatprep.mubr.bf16.mxu0 0
        %565 = vmatmul.mubr.bf16.gmra.mrb[0].mxu0 %v509
        %v566 = vpop.f32.mrb[0].mxu0
        %v567 = vadd.f32 0.0, %v566
        %v568 = vpop.f32.mrb[0].mxu0
        %v569 = vpop.f32.mrb[0].mxu0
        %v570 = vadd.f32 0.0, %v569
        %v571 = vpop.f32.mrb[0].mxu0
        %572 = vmatprep.mubr.bf16.mxu0 0
        %573 = vmatmul.mubr.bf16.gmra.mrb[0].mxu0 %v512
        %v574 = vpop.f32.mrb[0].mxu0
        %v575 = vadd.f32 0.0, %v574
        %v576 = vpop.f32.mrb[0].mxu0
        %v577 = vpop.f32.mrb[0].mxu0
        %v578 = vadd.f32 0.0, %v577
        %v579 = vpop.f32.mrb[0].mxu0
        %580 = vmatprep.mubr.bf16.mxu0 0
        %581 = vmatmul.mubr.bf16.gmra.mrb[0].mxu0 %v515
        %v582 = vpop.f32.mrb[0].mxu0
        %v583 = vadd.f32 0.0, %v582
        %v584 = vpop.f32.mrb[0].mxu0
        %v585 = vpop.f32.mrb[0].mxu0
        %v586 = vadd.f32 0.0, %v585
        %v587 = vpop.f32.mrb[0].mxu0
        %588 = vmatprep.mubr.bf16.mxu0 0
        %589 = vmatmul.mubr.bf16.gmra.mrb[0].mxu0 %v518
        %v590 = vpop.f32.mrb[0].mxu0
        %v591 = vadd.f32 0.0, %v590
        %v592 = vpop.f32.mrb[0].mxu0
        %v593 = vpop.f32.mrb[0].mxu0
        %v594 = vadd.f32 0.0, %v593
        %v595 = vpop.f32.mrb[0].mxu0
        %596 = vmatprep.mubr.bf16.mxu0 0
        %597 = vmatmul.mubr.bf16.gmra.mrb[0].mxu0 %v521
        %v598 = vpop.f32.mrb[0].mxu0
        %v599 = vadd.f32 0.0, %v598
        %v600 = vpop.f32.mrb[0].mxu0
        %v601 = vpop.f32.mrb[0].mxu0
        %v602 = vadd.f32 0.0, %v601
        %v603 = vpop.f32.mrb[0].mxu0
        %604 = vmatprep.mubr.bf16.mxu0 0
        %605 = vmatmul.mubr.bf16.gmra.mrb[0].mxu0 %v524
        %v606 = vpop.f32.mrb[0].mxu0
        %v607 = vadd.f32 0.0, %v606
        %v608 = vpop.f32.mrb[0].mxu0
        %v609 = vpop.f32.mrb[0].mxu0
        %v610 = vadd.f32 0.0, %v609
        %v611 = vpop.f32.mrb[0].mxu0
        %612 = vmatprep.mubr.bf16.mxu0 0
        %613 = vmatmul.mubr.bf16.gmra.mrb[0].mxu0 %v527
        %v614 = vpop.f32.mrb[0].mxu0
        %v615 = vadd.f32 0.0, %v614
        %v616 = vpop.f32.mrb[0].mxu0
        %v617 = vpop.f32.mrb[0].mxu0
        %v618 = vadd.f32 0.0, %v617
        %v619 = vpop.f32.mrb[0].mxu0
        %620 = vmatprep.mubr.bf16.mxu0 0
        %621 = vmatmul.mubr.bf16.gmra.mrb[0].mxu0 %v530
        %v622 = vpop.f32.mrb[0].mxu0
        %v623 = vadd.f32 0.0, %v622
        %v624 = vpop.f32.mrb[0].mxu0
        %v625 = vpop.f32.mrb[0].mxu0
        %v626 = vadd.f32 0.0, %v625
        %v627 = vpop.f32.mrb[0].mxu0
        %628 = vdwg.mxu0
        %630 = vset.pattern.permute.xlu0 0
        %631 = vperm.xlu0 %630, %v431
        %v632 = vpop.permute.xlu0 %631
        %635 = vset.pattern.permute.xlu0 0
        %636 = vperm.xlu0 %635, %v432
        %v637 = vpop.permute.xlu0 %636
        %640 = vset.pattern.permute.xlu0 0
        %641 = vperm.xlu0 %640, %v433
        %v642 = vpop.permute.xlu0 %641
        %645 = vset.pattern.permute.xlu0 0
        %646 = vperm.xlu0 %645, %v434
        %v647 = vpop.permute.xlu0 %646
        %650 = vset.pattern.permute.xlu0 0
        %651 = vperm.xlu0 %650, %v435
        %v652 = vpop.permute.xlu0 %651
        %655 = vset.pattern.permute.xlu0 0
        %656 = vperm.xlu0 %655, %v436
        %v657 = vpop.permute.xlu0 %656
        %660 = vset.pattern.permute.xlu0 0
        %661 = vperm.xlu0 %660, %v437
        %v662 = vpop.permute.xlu0 %661
        %665 = vset.pattern.permute.xlu0 0
        %666 = vperm.xlu0 %665, %v438
        %v667 = vpop.permute.xlu0 %666
        %v669 = vadd.f32 %v567, %v632
        %v670 = vadd.f32 %v570, %v637
        %v671 = vadd.f32 %v575, %v642
        %v672 = vadd.f32 %v578, %v647
        %v673 = vadd.f32 %v583, %v652
        %v674 = vadd.f32 %v586, %v657
        %v675 = vadd.f32 %v591, %v662
        %v676 = vadd.f32 %v594, %v667
        %677 = vset.pattern.permute.xlu0 1
        %678 = vperm.xlu0 %677, %v431
        %v679 = vpop.permute.xlu0 %678
        %681 = vset.pattern.permute.xlu0 1
        %682 = vperm.xlu0 %681, %v432
        %v683 = vpop.permute.xlu0 %682
        %685 = vset.pattern.permute.xlu0 1
        %686 = vperm.xlu0 %685, %v433
        %v687 = vpop.permute.xlu0 %686
        %689 = vset.pattern.permute.xlu0 1
        %690 = vperm.xlu0 %689, %v434
        %v691 = vpop.permute.xlu0 %690
        %693 = vset.pattern.permute.xlu0 1
        %694 = vperm.xlu0 %693, %v435
        %v695 = vpop.permute.xlu0 %694
        %697 = vset.pattern.permute.xlu0 1
        %698 = vperm.xlu0 %697, %v436
        %v699 = vpop.permute.xlu0 %698
        %701 = vset.pattern.permute.xlu0 1
        %702 = vperm.xlu0 %701, %v437
        %v703 = vpop.permute.xlu0 %702
        %705 = vset.pattern.permute.xlu0 1
        %706 = vperm.xlu0 %705, %v438
        %v707 = vpop.permute.xlu0 %706
        %v709 = vadd.f32 %v599, %v679
        %v710 = vadd.f32 %v602, %v683
        %v711 = vadd.f32 %v607, %v687
        %v712 = vadd.f32 %v610, %v691
        %v713 = vadd.f32 %v615, %v695
        %v714 = vadd.f32 %v618, %v699
        %v715 = vadd.f32 %v623, %v703
        %v716 = vadd.f32 %v626, %v707
        %v717 = vmax.f32 %v669, 0.0
        %v718 = vmax.f32 %v670, 0.0
        %v719 = vmax.f32 %v671, 0.0
        %v720 = vmax.f32 %v672, 0.0
        %v721 = vmax.f32 %v673, 0.0
        %v722 = vmax.f32 %v674, 0.0
        %v723 = vmax.f32 %v675, 0.0
        %v724 = vmax.f32 %v676, 0.0
        %725 = vset.pattern.permute.xlu0 2
        %726 = vperm.xlu0 %725, %v431
        %v727 = vpop.permute.xlu0 %726
        %729 = vset.pattern.permute.xlu0 2
        %730 = vperm.xlu0 %729, %v432
        %v731 = vpop.permute.xlu0 %730
        %733 = vset.pattern.permute.xlu0 2
        %734 = vperm.xlu0 %733, %v433
        %v735 = vpop.permute.xlu0 %734
        %737 = vset.pattern.permute.xlu0 2
        %738 = vperm.xlu0 %737, %v434
        %v739 = vpop.permute.xlu0 %738
        %741 = vset.pattern.permute.xlu0 2
        %742 = vperm.xlu0 %741, %v435
        %v743 = vpop.permute.xlu0 %742
        %745 = vset.pattern.permute.xlu0 2
        %746 = vperm.xlu0 %745, %v436
        %v747 = vpop.permute.xlu0 %746
        %749 = vset.pattern.permute.xlu0 2
        %750 = vperm.xlu0 %749, %v437
        %v751 = vpop.permute.xlu0 %750
        %753 = vset.pattern.permute.xlu0 2
        %754 = vperm.xlu0 %753, %v438
        %v755 = vpop.permute.xlu0 %754
        %v757 = vmul.f32 %v717, %v727
        %v758 = vmul.f32 %v718, %v731
        %v759 = vmul.f32 %v719, %v735
        %v760 = vmul.f32 %v720, %v739
        %v761 = vmul.f32 %v721, %v743
        %v762 = vmul.f32 %v722, %v747
        %v763 = vmul.f32 %v723, %v751
        %v764 = vmul.f32 %v724, %v755
        %765 = vset.pattern.permute.xlu0 3
        %766 = vperm.xlu0 %765, %v431
        %v767 = vpop.permute.xlu0 %766
        %769 = vset.pattern.permute.xlu0 3
        %770 = vperm.xlu0 %769, %v432
        %v771 = vpop.permute.xlu0 %770
        %773 = vset.pattern.permute.xlu0 3
        %774 = vperm.xlu0 %773, %v433
        %v775 = vpop.permute.xlu0 %774
        %777 = vset.pattern.permute.xlu0 3
        %778 = vperm.xlu0 %777, %v434
        %v779 = vpop.permute.xlu0 %778
        %781 = vset.pattern.permute.xlu0 3
        %782 = vperm.xlu0 %781, %v435
        %v783 = vpop.permute.xlu0 %782
        %785 = vset.pattern.permute.xlu0 3
        %786 = vperm.xlu0 %785, %v436
        %v787 = vpop.permute.xlu0 %786
        %789 = vset.pattern.permute.xlu0 3
        %790 = vperm.xlu0 %789, %v437
        %v791 = vpop.permute.xlu0 %790
        %793 = vset.pattern.permute.xlu0 3
        %794 = vperm.xlu0 %793, %v438
        %v795 = vpop.permute.xlu0 %794
        %v797 = vadd.f32 %v757, %v767
        %v798 = vadd.f32 %v758, %v771
        %v799 = vadd.f32 %v759, %v775
        %v800 = vadd.f32 %v760, %v779
        %v801 = vadd.f32 %v761, %v783
        %v802 = vadd.f32 %v762, %v787
        %v803 = vadd.f32 %v763, %v791
        %v804 = vadd.f32 %v764, %v795
        %v805 = vld [vmem:[#allocation8] sm:$0xf]
        %v806 = vld [vmem:[#allocation8 + $0x4] sm:$0xf]
        %v807 = vld [vmem:[#allocation8 + $0x8] sm:$0xf]
        %v808 = vld [vmem:[#allocation8 + $0xc] sm:$0xf]
        %v809 = vld [vmem:[#allocation8 + $0x10] sm:$0xf]
        %v810 = vld [vmem:[#allocation8 + $0x14] sm:$0xf]
        %v811 = vld [vmem:[#allocation8 + $0x18] sm:$0xf]
        %v812 = vld [vmem:[#allocation8 + $0x1c] sm:$0xf]
        %v813 = vpack.c.bf16 %v798, %v797
        %v814 = vld [vmem:[#allocation14] sm:$0xff]
        %v815 = vld [vmem:[#allocation14 + $0x8] sm:$0xff]
        %v816 = vld [vmem:[#allocation7] sm:$0xf]
        %v817 = vld [vmem:[#allocation7 + $0x4] sm:$0xf]
        %v818 = vpack.c.bf16 %v800, %v799
        %820 = vset.pattern.permute.xlu0 0
        %821 = vperm.xlu0 %820, %v814
        %v822 = vpop.permute.xlu0 %821
        %825 = vset.pattern.permute.xlu0 0
        %826 = vperm.xlu0 %825, %v815
        %v827 = vpop.permute.xlu0 %826
        %v831 = vunpack.c.l.b16 %v816
        %v832 = vunpack.c.l.b16 %v817
        %v833 = vpack.c.b16 %v832, %v831
        %vm834 = vcmask 130048
        %v836 = vsel %vm834, %v833, 0
        %838 = vmatprep.subr.bf16.mxu0 0
        %839 = vmatpush1.bf16.msra.mxu0 %v818
        %840 = vmatprep.subr.bf16.mxu0 0
        %841 = vmatpush1.bf16.msra.mxu0 0
        %842 = vmatprep.subr.bf16.mxu0 0
        %843 = vmatpush1.bf16.msra.mxu0 0
        %844 = vmatprep.subr.bf16.mxu0 0
        %845 = vmatpush1.bf16.msra.mxu0 0
        %846 = vmatprep.subr.bf16.mxu0 0
        %847 = vmatpush1.bf16.msra.mxu0 0
        %848 = vmatprep.subr.bf16.mxu0 0
        %849 = vmatpush1.bf16.msra.mxu0 0
        %850 = vmatprep.subr.bf16.mxu0 0
        %851 = vmatpush1.bf16.msra.mxu0 0
        %852 = vmatprep.subr.bf16.mxu0 0
        %853 = vmatpush1.bf16.msra.mxu0 0
        %854 = vmatprep.subr.bf16.mxu0 0
        %855 = vmatpush1.bf16.msra.mxu0 0
        %856 = vmatprep.subr.bf16.mxu0 0
        %857 = vmatpush1.bf16.msra.mxu0 0
        %858 = vmatprep.subr.bf16.mxu0 0
        %859 = vmatpush1.bf16.msra.mxu0 0
        %860 = vmatprep.subr.bf16.mxu0 0
        %861 = vmatpush1.bf16.msra.mxu0 0
        %862 = vmatprep.subr.bf16.mxu0 0
        %863 = vmatpush1.bf16.msra.mxu0 0
        %864 = vmatprep.subr.bf16.mxu0 0
        %865 = vmatpush1.bf16.msra.mxu0 0
        %866 = vmatprep.subr.bf16.mxu0 0
        %867 = vmatpush1.bf16.msra.mxu0 0
        %868 = vmatprep.subr.bf16.mxu0 0
        %869 = vmatpush1.bf16.msra.mxu0 0
        %870 = vmatprep.mubr.bf16.mxu0 0
        %871 = vmatmul.mubr.bf16.gmra.mrb[0].mxu0 %v836
        %v872 = vpop.f32.mrb[0].mxu0
        %v873 = vadd.f32 %v822, %v872
        %v874 = vpop.f32.mrb[0].mxu0
        %v875 = vpop.f32.mrb[0].mxu0
        %v876 = vadd.f32 %v827, %v875
        %v877 = vpop.f32.mrb[0].mxu0
        %878 = vdwg.mxu0
        %v879 = vmax.f32 %v873, 0.0
        %v880 = vmax.f32 %v876, 0.0
        %881 = vset.pattern.permute.xlu0 1
        %882 = vperm.xlu0 %881, %v814
        %v883 = vpop.permute.xlu0 %882
        %885 = vset.pattern.permute.xlu0 1
        %886 = vperm.xlu0 %885, %v815
        %v887 = vpop.permute.xlu0 %886
        %v889 = vmul.f32 %v879, %v883
        %v890 = vmul.f32 %v880, %v887
        %891 = vset.pattern.permute.xlu0 2
        %892 = vperm.xlu0 %891, %v814
        %v893 = vpop.permute.xlu0 %892
        %895 = vset.pattern.permute.xlu0 2
        %896 = vperm.xlu0 %895, %v815
        %v897 = vpop.permute.xlu0 %896
        %v899 = vadd.f32 %v889, %v893
        %v900 = vadd.f32 %v890, %v897
        %s901 = scalar_lea.vmem [#allocation8], 32
        %v902 = vld [vmem:[%s901] sm:$0xf]
        %v903 = vld [vmem:[%s901 + $0x4] sm:$0xf]
        %v904 = vld [vmem:[%s901 + $0x8] sm:$0xf]
        %v905 = vld [vmem:[%s901 + $0xc] sm:$0xf]
        %v906 = vld [vmem:[%s901 + $0x10] sm:$0xf]
        %v907 = vld [vmem:[%s901 + $0x14] sm:$0xf]
        %v908 = vld [vmem:[%s901 + $0x18] sm:$0xf]
        %v909 = vld [vmem:[%s901 + $0x1c] sm:$0xf]
        %v910 = vpack.c.bf16 %v900, %v899
        %v919 = vunpack.c.l.b16 %v902
        %v920 = vunpack.c.l.b16 %v903
        %v921 = vunpack.c.l.b16 %v904
        %v922 = vunpack.c.l.b16 %v905
        %v923 = vunpack.c.l.b16 %v906
        %v924 = vunpack.c.l.b16 %v907
        %v925 = vunpack.c.l.b16 %v908
        %v926 = vunpack.c.l.b16 %v909
        %v927 = vpack.c.b16 %v920, %v919
        %v928 = vpack.c.b16 %v922, %v921
        %v929 = vpack.c.b16 %v924, %v923
        %v930 = vpack.c.b16 %v926, %v925
        %v932 = vsel %vm834, %v927, 0
        %v935 = vsel %vm834, %v928, 0
        %v938 = vsel %vm834, %v929, 0
        %v941 = vsel %vm834, %v930, 0
        %943 = vmatprep.subr.bf16.mxu0 0
        %944 = vmatpush1.bf16.msra.mxu0 %v910
        %945 = vmatprep.subr.bf16.mxu0 0
        %946 = vmatpush1.bf16.msra.mxu0 0
        %947 = vmatprep.subr.bf16.mxu0 0
        %948 = vmatpush1.bf16.msra.mxu0 0
        %949 = vmatprep.subr.bf16.mxu0 0
        %950 = vmatpush1.bf16.msra.mxu0 0
        %951 = vmatprep.subr.bf16.mxu0 0
        %952 = vmatpush1.bf16.msra.mxu0 0
        %953 = vmatprep.subr.bf16.mxu0 0
        %954 = vmatpush1.bf16.msra.mxu0 0
        %955 = vmatprep.subr.bf16.mxu0 0
        %956 = vmatpush1.bf16.msra.mxu0 0
        %957 = vmatprep.subr.bf16.mxu0 0
        %958 = vmatpush1.bf16.msra.mxu0 0
        %959 = vmatprep.subr.bf16.mxu0 0
        %960 = vmatpush1.bf16.msra.mxu0 0
        %961 = vmatprep.subr.bf16.mxu0 0
        %962 = vmatpush1.bf16.msra.mxu0 0
        %963 = vmatprep.subr.bf16.mxu0 0
        %964 = vmatpush1.bf16.msra.mxu0 0
        %965 = vmatprep.subr.bf16.mxu0 0
        %966 = vmatpush1.bf16.msra.mxu0 0
        %967 = vmatprep.subr.bf16.mxu0 0
        %968 = vmatpush1.bf16.msra.mxu0 0
        %969 = vmatprep.subr.bf16.mxu0 0
        %970 = vmatpush1.bf16.msra.mxu0 0
        %971 = vmatprep.subr.bf16.mxu0 0
        %972 = vmatpush1.bf16.msra.mxu0 0
        %973 = vmatprep.subr.bf16.mxu0 0
        %974 = vmatpush1.bf16.msra.mxu0 0
        %975 = vmatprep.mubr.bf16.mxu0 0
        %976 = vmatmul.mubr.bf16.gmra.mrb[0].mxu0 %v932
        %v977 = vpop.f32.mrb[0].mxu0
        %v978 = vadd.f32 0.0, %v977
        %v979 = vpop.f32.mrb[0].mxu0
        %v980 = vpop.f32.mrb[0].mxu0
        %v981 = vadd.f32 0.0, %v980
        %v982 = vpop.f32.mrb[0].mxu0
        %983 = vmatprep.mubr.bf16.mxu0 0
        %984 = vmatmul.mubr.bf16.gmra.mrb[0].mxu0 %v935
        %v985 = vpop.f32.mrb[0].mxu0
        %v986 = vadd.f32 0.0, %v985
        %v987 = vpop.f32.mrb[0].mxu0
        %v988 = vpop.f32.mrb[0].mxu0
        %v989 = vadd.f32 0.0, %v988
        %v990 = vpop.f32.mrb[0].mxu0
        %991 = vmatprep.mubr.bf16.mxu0 0
        %992 = vmatmul.mubr.bf16.gmra.mrb[0].mxu0 %v938
        %v993 = vpop.f32.mrb[0].mxu0
        %v994 = vadd.f32 0.0, %v993
        %v995 = vpop.f32.mrb[0].mxu0
        %v996 = vpop.f32.mrb[0].mxu0
        %v997 = vadd.f32 0.0, %v996
        %v998 = vpop.f32.mrb[0].mxu0
        %999 = vmatprep.mubr.bf16.mxu0 0
        %1000 = vmatmul.mubr.bf16.gmra.mrb[0].mxu0 %v941
        %v1001 = vpop.f32.mrb[0].mxu0
        %v1002 = vadd.f32 0.0, %v1001
        %v1003 = vpop.f32.mrb[0].mxu0
        %v1004 = vpop.f32.mrb[0].mxu0
        %v1005 = vadd.f32 0.0, %v1004
        %v1006 = vpop.f32.mrb[0].mxu0
        %1007 = vdwg.mxu0
        %v1016 = vunpack.c.l.b16 %v805
        %v1017 = vunpack.c.l.b16 %v806
        %v1018 = vunpack.c.l.b16 %v807
        %v1019 = vunpack.c.l.b16 %v808
        %v1020 = vunpack.c.l.b16 %v809
        %v1021 = vunpack.c.l.b16 %v810
        %v1022 = vunpack.c.l.b16 %v811
        %v1023 = vunpack.c.l.b16 %v812
        %v1024 = vpack.c.b16 %v1017, %v1016
        %v1025 = vpack.c.b16 %v1019, %v1018
        %v1026 = vpack.c.b16 %v1021, %v1020
        %v1027 = vpack.c.b16 %v1023, %v1022
        %v1029 = vsel %vm834, %v1024, 0
        %v1032 = vsel %vm834, %v1025, 0
        %v1035 = vsel %vm834, %v1026, 0
        %v1038 = vsel %vm834, %v1027, 0
        %1040 = vmatprep.subr.bf16.mxu0 0
        %1041 = vmatpush1.bf16.msra.mxu0 %v813
        %1042 = vmatprep.subr.bf16.mxu0 0
        %1043 = vmatpush1.bf16.msra.mxu0 0
        %1044 = vmatprep.subr.bf16.mxu0 0
        %1045 = vmatpush1.bf16.msra.mxu0 0
        %1046 = vmatprep.subr.bf16.mxu0 0
        %1047 = vmatpush1.bf16.msra.mxu0 0
        %1048 = vmatprep.subr.bf16.mxu0 0
        %1049 = vmatpush1.bf16.msra.mxu0 0
        %1050 = vmatprep.subr.bf16.mxu0 0
        %1051 = vmatpush1.bf16.msra.mxu0 0
        %1052 = vmatprep.subr.bf16.mxu0 0
        %1053 = vmatpush1.bf16.msra.mxu0 0
        %1054 = vmatprep.subr.bf16.mxu0 0
        %1055 = vmatpush1.bf16.msra.mxu0 0
        %1056 = vmatprep.subr.bf16.mxu0 0
        %1057 = vmatpush1.bf16.msra.mxu0 0
        %1058 = vmatprep.subr.bf16.mxu0 0
        %1059 = vmatpush1.bf16.msra.mxu0 0
        %1060 = vmatprep.subr.bf16.mxu0 0
        %1061 = vmatpush1.bf16.msra.mxu0 0
        %1062 = vmatprep.subr.bf16.mxu0 0
        %1063 = vmatpush1.bf16.msra.mxu0 0
        %1064 = vmatprep.subr.bf16.mxu0 0
        %1065 = vmatpush1.bf16.msra.mxu0 0
        %1066 = vmatprep.subr.bf16.mxu0 0
        %1067 = vmatpush1.bf16.msra.mxu0 0
        %1068 = vmatprep.subr.bf16.mxu0 0
        %1069 = vmatpush1.bf16.msra.mxu0 0
        %1070 = vmatprep.subr.bf16.mxu0 0
        %1071 = vmatpush1.bf16.msra.mxu0 0
        %1072 = vmatprep.mubr.bf16.mxu0 0
        %1073 = vmatmul.mubr.bf16.gmra.mrb[0].mxu0 %v1029
        %v1074 = vpop.f32.mrb[0].mxu0
        %v1075 = vadd.f32 %v978, %v1074
        %v1076 = vpop.f32.mrb[0].mxu0
        %v1077 = vpop.f32.mrb[0].mxu0
        %v1078 = vadd.f32 %v981, %v1077
        %v1079 = vpop.f32.mrb[0].mxu0
        %1080 = vmatprep.mubr.bf16.mxu0 0
        %1081 = vmatmul.mubr.bf16.gmra.mrb[0].mxu0 %v1032
        %v1082 = vpop.f32.mrb[0].mxu0
        %v1083 = vadd.f32 %v986, %v1082
        %v1084 = vpop.f32.mrb[0].mxu0
        %v1085 = vpop.f32.mrb[0].mxu0
        %v1086 = vadd.f32 %v989, %v1085
        %v1087 = vpop.f32.mrb[0].mxu0
        %1088 = vmatprep.mubr.bf16.mxu0 0
        %1089 = vmatmul.mubr.bf16.gmra.mrb[0].mxu0 %v1035
        %v1090 = vpop.f32.mrb[0].mxu0
        %v1091 = vadd.f32 %v994, %v1090
        %v1092 = vpop.f32.mrb[0].mxu0
        %v1093 = vpop.f32.mrb[0].mxu0
        %v1094 = vadd.f32 %v997, %v1093
        %v1095 = vpop.f32.mrb[0].mxu0
        %1096 = vmatprep.mubr.bf16.mxu0 0
        %1097 = vmatmul.mubr.bf16.gmra.mrb[0].mxu0 %v1038
        %v1098 = vpop.f32.mrb[0].mxu0
        %v1099 = vadd.f32 %v1002, %v1098
        %v1100 = vpop.f32.mrb[0].mxu0
        %v1101 = vpop.f32.mrb[0].mxu0
        %v1102 = vadd.f32 %v1005, %v1101
        %v1103 = vpop.f32.mrb[0].mxu0
        %1104 = vdwg.mxu0
        %s1105 = scalar_lea.vmem [#allocation14], 16
        %v1106 = vld [vmem:[%s1105] sm:$0xff]
        %v1107 = vld [vmem:[%s1105 + $0x8] sm:$0xff]
        %v1108 = vadd.f32 %v801, %v899
        %v1109 = vadd.f32 %v802, %v900
        %s1110 = scalar_lea.vmem [#allocation7], 8
        %v1111 = vld [vmem:[%s1110] sm:$0xf]
        %v1112 = vld [vmem:[%s1110 + $0x4] sm:$0xf]
        %v1113 = vpack.c.bf16 %v1109, %v1108
        %1115 = vset.pattern.permute.xlu0 0
        %1116 = vperm.xlu0 %1115, %v1106
        %v1117 = vpop.permute.xlu0 %1116
        %1120 = vset.pattern.permute.xlu0 0
        %1121 = vperm.xlu0 %1120, %v1107
        %v1122 = vpop.permute.xlu0 %1121
        %v1126 = vunpack.c.l.b16 %v1111
        %v1127 = vunpack.c.l.b16 %v1112
        %v1128 = vpack.c.b16 %v1127, %v1126
        %v1130 = vsel %vm834, %v1128, 0
        %1132 = vmatprep.subr.bf16.mxu0 0
        %1133 = vmatpush1.bf16.msra.mxu0 %v1113
        %1134 = vmatprep.subr.bf16.mxu0 0
        %1135 = vmatpush1.bf16.msra.mxu0 0
        %1136 = vmatprep.subr.bf16.mxu0 0
        %1137 = vmatpush1.bf16.msra.mxu0 0
        %1138 = vmatprep.subr.bf16.mxu0 0
        %1139 = vmatpush1.bf16.msra.mxu0 0
        %1140 = vmatprep.subr.bf16.mxu0 0
        %1141 = vmatpush1.bf16.msra.mxu0 0
        %1142 = vmatprep.subr.bf16.mxu0 0
        %1143 = vmatpush1.bf16.msra.mxu0 0
        %1144 = vmatprep.subr.bf16.mxu0 0
        %1145 = vmatpush1.bf16.msra.mxu0 0
        %1146 = vmatprep.subr.bf16.mxu0 0
        %1147 = vmatpush1.bf16.msra.mxu0 0
        %1148 = vmatprep.subr.bf16.mxu0 0
        %1149 = vmatpush1.bf16.msra.mxu0 0
        %1150 = vmatprep.subr.bf16.mxu0 0
        %1151 = vmatpush1.bf16.msra.mxu0 0
        %1152 = vmatprep.subr.bf16.mxu0 0
        %1153 = vmatpush1.bf16.msra.mxu0 0
        %1154 = vmatprep.subr.bf16.mxu0 0
        %1155 = vmatpush1.bf16.msra.mxu0 0
        %1156 = vmatprep.subr.bf16.mxu0 0
        %1157 = vmatpush1.bf16.msra.mxu0 0
        %1158 = vmatprep.subr.bf16.mxu0 0
        %1159 = vmatpush1.bf16.msra.mxu0 0
        %1160 = vmatprep.subr.bf16.mxu0 0
        %1161 = vmatpush1.bf16.msra.mxu0 0
        %1162 = vmatprep.subr.bf16.mxu0 0
        %1163 = vmatpush1.bf16.msra.mxu0 0
        %1164 = vmatprep.mubr.bf16.mxu0 0
        %1165 = vmatmul.mubr.bf16.gmra.mrb[0].mxu0 %v1130
        %v1166 = vpop.f32.mrb[0].mxu0
        %v1167 = vadd.f32 %v1117, %v1166
        %v1168 = vpop.f32.mrb[0].mxu0
        %v1169 = vpop.f32.mrb[0].mxu0
        %v1170 = vadd.f32 %v1122, %v1169
        %v1171 = vpop.f32.mrb[0].mxu0
        %1172 = vdwg.mxu0
        %v1173 = vmax.f32 %v1167, 0.0
        %v1174 = vmax.f32 %v1170, 0.0
        %1175 = vset.pattern.permute.xlu0 1
        %1176 = vperm.xlu0 %1175, %v1106
        %v1177 = vpop.permute.xlu0 %1176
        %1179 = vset.pattern.permute.xlu0 1
        %1180 = vperm.xlu0 %1179, %v1107
        %v1181 = vpop.permute.xlu0 %1180
        %v1183 = vmul.f32 %v1173, %v1177
        %v1184 = vmul.f32 %v1174, %v1181
        %1185 = vset.pattern.permute.xlu0 2
        %1186 = vperm.xlu0 %1185, %v1106
        %v1187 = vpop.permute.xlu0 %1186
        %1189 = vset.pattern.permute.xlu0 2
        %1190 = vperm.xlu0 %1189, %v1107
        %v1191 = vpop.permute.xlu0 %1190
        %v1193 = vadd.f32 %v1183, %v1187
        %v1194 = vadd.f32 %v1184, %v1191
        %s1195 = scalar_lea.vmem [#allocation8], 64
        %v1196 = vld [vmem:[%s1195] sm:$0xf]
        %v1197 = vld [vmem:[%s1195 + $0x4] sm:$0xf]
        %v1198 = vld [vmem:[%s1195 + $0x8] sm:$0xf]
        %v1199 = vld [vmem:[%s1195 + $0xc] sm:$0xf]
        %v1200 = vld [vmem:[%s1195 + $0x10] sm:$0xf]
        %v1201 = vld [vmem:[%s1195 + $0x14] sm:$0xf]
        %v1202 = vld [vmem:[%s1195 + $0x18] sm:$0xf]
        %v1203 = vld [vmem:[%s1195 + $0x1c] sm:$0xf]
        %v1204 = vpack.c.bf16 %v1194, %v1193
        %v1213 = vunpack.c.l.b16 %v1196
        %v1214 = vunpack.c.l.b16 %v1197
        %v1215 = vunpack.c.l.b16 %v1198
        %v1216 = vunpack.c.l.b16 %v1199
        %v1217 = vunpack.c.l.b16 %v1200
        %v1218 = vunpack.c.l.b16 %v1201
        %v1219 = vunpack.c.l.b16 %v1202
        %v1220 = vunpack.c.l.b16 %v1203
        %v1221 = vpack.c.b16 %v1214, %v1213
        %v1222 = vpack.c.b16 %v1216, %v1215
        %v1223 = vpack.c.b16 %v1218, %v1217
        %v1224 = vpack.c.b16 %v1220, %v1219
        %v1226 = vsel %vm834, %v1221, 0
        %v1229 = vsel %vm834, %v1222, 0
        %v1232 = vsel %vm834, %v1223, 0
        %v1235 = vsel %vm834, %v1224, 0
        %1237 = vmatprep.subr.bf16.mxu0 0
        %1238 = vmatpush1.bf16.msra.mxu0 %v1204
        %1239 = vmatprep.subr.bf16.mxu0 0
        %1240 = vmatpush1.bf16.msra.mxu0 0
        %1241 = vmatprep.subr.bf16.mxu0 0
        %1242 = vmatpush1.bf16.msra.mxu0 0
        %1243 = vmatprep.subr.bf16.mxu0 0
        %1244 = vmatpush1.bf16.msra.mxu0 0
        %1245 = vmatprep.subr.bf16.mxu0 0
        %1246 = vmatpush1.bf16.msra.mxu0 0
        %1247 = vmatprep.subr.bf16.mxu0 0
        %1248 = vmatpush1.bf16.msra.mxu0 0
        %1249 = vmatprep.subr.bf16.mxu0 0
        %1250 = vmatpush1.bf16.msra.mxu0 0
        %1251 = vmatprep.subr.bf16.mxu0 0
        %1252 = vmatpush1.bf16.msra.mxu0 0
        %1253 = vmatprep.subr.bf16.mxu0 0
        %1254 = vmatpush1.bf16.msra.mxu0 0
        %1255 = vmatprep.subr.bf16.mxu0 0
        %1256 = vmatpush1.bf16.msra.mxu0 0
        %1257 = vmatprep.subr.bf16.mxu0 0
        %1258 = vmatpush1.bf16.msra.mxu0 0
        %1259 = vmatprep.subr.bf16.mxu0 0
        %1260 = vmatpush1.bf16.msra.mxu0 0
        %1261 = vmatprep.subr.bf16.mxu0 0
        %1262 = vmatpush1.bf16.msra.mxu0 0
        %1263 = vmatprep.subr.bf16.mxu0 0
        %1264 = vmatpush1.bf16.msra.mxu0 0
        %1265 = vmatprep.subr.bf16.mxu0 0
        %1266 = vmatpush1.bf16.msra.mxu0 0
        %1267 = vmatprep.subr.bf16.mxu0 0
        %1268 = vmatpush1.bf16.msra.mxu0 0
        %1269 = vmatprep.mubr.bf16.mxu0 0
        %1270 = vmatmul.mubr.bf16.gmra.mrb[0].mxu0 %v1226
        %v1271 = vpop.f32.mrb[0].mxu0
        %v1272 = vadd.f32 0.0, %v1271
        %v1273 = vpop.f32.mrb[0].mxu0
        %v1274 = vpop.f32.mrb[0].mxu0
        %v1275 = vadd.f32 0.0, %v1274
        %v1276 = vpop.f32.mrb[0].mxu0
        %1277 = vmatprep.mubr.bf16.mxu0 0
        %1278 = vmatmul.mubr.bf16.gmra.mrb[0].mxu0 %v1229
        %v1279 = vpop.f32.mrb[0].mxu0
        %v1280 = vadd.f32 0.0, %v1279
        %v1281 = vpop.f32.mrb[0].mxu0
        %v1282 = vpop.f32.mrb[0].mxu0
        %v1283 = vadd.f32 0.0, %v1282
        %v1284 = vpop.f32.mrb[0].mxu0
        %1285 = vmatprep.mubr.bf16.mxu0 0
        %1286 = vmatmul.mubr.bf16.gmra.mrb[0].mxu0 %v1232
        %v1287 = vpop.f32.mrb[0].mxu0
        %v1288 = vadd.f32 0.0, %v1287
        %v1289 = vpop.f32.mrb[0].mxu0
        %v1290 = vpop.f32.mrb[0].mxu0
        %v1291 = vadd.f32 0.0, %v1290
        %v1292 = vpop.f32.mrb[0].mxu0
        %1293 = vmatprep.mubr.bf16.mxu0 0
        %1294 = vmatmul.mubr.bf16.gmra.mrb[0].mxu0 %v1235
        %v1295 = vpop.f32.mrb[0].mxu0
        %v1296 = vadd.f32 0.0, %v1295
        %v1297 = vpop.f32.mrb[0].mxu0
        %v1298 = vpop.f32.mrb[0].mxu0
        %v1299 = vadd.f32 0.0, %v1298
        %v1300 = vpop.f32.mrb[0].mxu0
        %1301 = vdwg.mxu0
        %v1302 = vadd.f32 %v1075, %v1272
        %v1303 = vadd.f32 %v1078, %v1275
        %v1304 = vadd.f32 %v1083, %v1280
        %v1305 = vadd.f32 %v1086, %v1283
        %v1306 = vadd.f32 %v1091, %v1288
        %v1307 = vadd.f32 %v1094, %v1291
        %v1308 = vadd.f32 %v1099, %v1296
        %v1309 = vadd.f32 %v1102, %v1299
        %s1310 = scalar_lea.vmem [#allocation14], 32
        %v1311 = vld [vmem:[%s1310] sm:$0xff]
        %v1312 = vld [vmem:[%s1310 + $0x8] sm:$0xff]
        %v1313 = vadd.f32 %v803, %v1193
        %v1314 = vadd.f32 %v804, %v1194
        %s1315 = scalar_lea.vmem [#allocation7], 16
        %v1316 = vld [vmem:[%s1315] sm:$0xf]
        %v1317 = vld [vmem:[%s1315 + $0x4] sm:$0xf]
        %v1318 = vpack.c.bf16 %v1314, %v1313
        %1320 = vset.pattern.permute.xlu0 0
        %1321 = vperm.xlu0 %1320, %v1311
        %v1322 = vpop.permute.xlu0 %1321
        %1325 = vset.pattern.permute.xlu0 0
        %1326 = vperm.xlu0 %1325, %v1312
        %v1327 = vpop.permute.xlu0 %1326
        %v1331 = vunpack.c.l.b16 %v1316
        %v1332 = vunpack.c.l.b16 %v1317
        %v1333 = vpack.c.b16 %v1332, %v1331
        %v1335 = vsel %vm834, %v1333, 0
        %1337 = vmatprep.subr.bf16.mxu0 0
        %1338 = vmatpush1.bf16.msra.mxu0 %v1318
        %1339 = vmatprep.subr.bf16.mxu0 0
        %1340 = vmatpush1.bf16.msra.mxu0 0
        %1341 = vmatprep.subr.bf16.mxu0 0
        %1342 = vmatpush1.bf16.msra.mxu0 0
        %1343 = vmatprep.subr.bf16.mxu0 0
        %1344 = vmatpush1.bf16.msra.mxu0 0
        %1345 = vmatprep.subr.bf16.mxu0 0
        %1346 = vmatpush1.bf16.msra.mxu0 0
        %1347 = vmatprep.subr.bf16.mxu0 0
        %1348 = vmatpush1.bf16.msra.mxu0 0
        %1349 = vmatprep.subr.bf16.mxu0 0
        %1350 = vmatpush1.bf16.msra.mxu0 0
        %1351 = vmatprep.subr.bf16.mxu0 0
        %1352 = vmatpush1.bf16.msra.mxu0 0
        %1353 = vmatprep.subr.bf16.mxu0 0
        %1354 = vmatpush1.bf16.msra.mxu0 0
        %1355 = vmatprep.subr.bf16.mxu0 0
        %1356 = vmatpush1.bf16.msra.mxu0 0
        %1357 = vmatprep.subr.bf16.mxu0 0
        %1358 = vmatpush1.bf16.msra.mxu0 0
        %1359 = vmatprep.subr.bf16.mxu0 0
        %1360 = vmatpush1.bf16.msra.mxu0 0
        %1361 = vmatprep.subr.bf16.mxu0 0
        %1362 = vmatpush1.bf16.msra.mxu0 0
        %1363 = vmatprep.subr.bf16.mxu0 0
        %1364 = vmatpush1.bf16.msra.mxu0 0
        %1365 = vmatprep.subr.bf16.mxu0 0
        %1366 = vmatpush1.bf16.msra.mxu0 0
        %1367 = vmatprep.subr.bf16.mxu0 0
        %1368 = vmatpush1.bf16.msra.mxu0 0
        %1369 = vmatprep.mubr.bf16.mxu0 0
        %1370 = vmatmul.mubr.bf16.gmra.mrb[0].mxu0 %v1335
        %v1371 = vpop.f32.mrb[0].mxu0
        %v1372 = vadd.f32 %v1322, %v1371
        %v1373 = vpop.f32.mrb[0].mxu0
        %v1374 = vpop.f32.mrb[0].mxu0
        %v1375 = vadd.f32 %v1327, %v1374
        %v1376 = vpop.f32.mrb[0].mxu0
        %1377 = vdwg.mxu0
        %v1378 = vmax.f32 %v1372, 0.0
        %v1379 = vmax.f32 %v1375, 0.0
        %1380 = vset.pattern.permute.xlu0 1
        %1381 = vperm.xlu0 %1380, %v1311
        %v1382 = vpop.permute.xlu0 %1381
        %1384 = vset.pattern.permute.xlu0 1
        %1385 = vperm.xlu0 %1384, %v1312
        %v1386 = vpop.permute.xlu0 %1385
        %v1388 = vmul.f32 %v1378, %v1382
        %v1389 = vmul.f32 %v1379, %v1386
        %1390 = vset.pattern.permute.xlu0 2
        %1391 = vperm.xlu0 %1390, %v1311
        %v1392 = vpop.permute.xlu0 %1391
        %1394 = vset.pattern.permute.xlu0 2
        %1395 = vperm.xlu0 %1394, %v1312
        %v1396 = vpop.permute.xlu0 %1395
        %v1398 = vadd.f32 %v1388, %v1392
        %v1399 = vadd.f32 %v1389, %v1396
        %s1400 = scalar_lea.vmem [#allocation8], 96
        %v1401 = vld [vmem:[%s1400] sm:$0xf]
        %v1402 = vld [vmem:[%s1400 + $0x4] sm:$0xf]
        %v1403 = vld [vmem:[%s1400 + $0x8] sm:$0xf]
        %v1404 = vld [vmem:[%s1400 + $0xc] sm:$0xf]
        %v1405 = vld [vmem:[%s1400 + $0x10] sm:$0xf]
        %v1406 = vld [vmem:[%s1400 + $0x14] sm:$0xf]
        %v1407 = vld [vmem:[%s1400 + $0x18] sm:$0xf]
        %v1408 = vld [vmem:[%s1400 + $0x1c] sm:$0xf]
        %v1409 = vpack.c.bf16 %v1399, %v1398
        %v1418 = vunpack.c.l.b16 %v1401
        %v1419 = vunpack.c.l.b16 %v1402
        %v1420 = vunpack.c.l.b16 %v1403
        %v1421 = vunpack.c.l.b16 %v1404
        %v1422 = vunpack.c.l.b16 %v1405
        %v1423 = vunpack.c.l.b16 %v1406
        %v1424 = vunpack.c.l.b16 %v1407
        %v1425 = vunpack.c.l.b16 %v1408
        %v1426 = vpack.c.b16 %v1419, %v1418
        %v1427 = vpack.c.b16 %v1421, %v1420
        %v1428 = vpack.c.b16 %v1423, %v1422
        %v1429 = vpack.c.b16 %v1425, %v1424
        %v1431 = vsel %vm834, %v1426, 0
        %v1434 = vsel %vm834, %v1427, 0
        %v1437 = vsel %vm834, %v1428, 0
        %v1440 = vsel %vm834, %v1429, 0
        %1442 = vmatprep.subr.bf16.mxu0 0
        %1443 = vmatpush1.bf16.msra.mxu0 %v1409
        %1444 = vmatprep.subr.bf16.mxu0 0
        %1445 = vmatpush1.bf16.msra.mxu0 0
        %1446 = vmatprep.subr.bf16.mxu0 0
        %1447 = vmatpush1.bf16.msra.mxu0 0
        %1448 = vmatprep.subr.bf16.mxu0 0
        %1449 = vmatpush1.bf16.msra.mxu0 0
        %1450 = vmatprep.subr.bf16.mxu0 0
        %1451 = vmatpush1.bf16.msra.mxu0 0
        %1452 = vmatprep.subr.bf16.mxu0 0
        %1453 = vmatpush1.bf16.msra.mxu0 0
        %1454 = vmatprep.subr.bf16.mxu0 0
        %1455 = vmatpush1.bf16.msra.mxu0 0
        %1456 = vmatprep.subr.bf16.mxu0 0
        %1457 = vmatpush1.bf16.msra.mxu0 0
        %1458 = vmatprep.subr.bf16.mxu0 0
        %1459 = vmatpush1.bf16.msra.mxu0 0
        %1460 = vmatprep.subr.bf16.mxu0 0
        %1461 = vmatpush1.bf16.msra.mxu0 0
        %1462 = vmatprep.subr.bf16.mxu0 0
        %1463 = vmatpush1.bf16.msra.mxu0 0
        %1464 = vmatprep.subr.bf16.mxu0 0
        %1465 = vmatpush1.bf16.msra.mxu0 0
        %1466 = vmatprep.subr.bf16.mxu0 0
        %1467 = vmatpush1.bf16.msra.mxu0 0
        %1468 = vmatprep.subr.bf16.mxu0 0
        %1469 = vmatpush1.bf16.msra.mxu0 0
        %1470 = vmatprep.subr.bf16.mxu0 0
        %1471 = vmatpush1.bf16.msra.mxu0 0
        %1472 = vmatprep.subr.bf16.mxu0 0
        %1473 = vmatpush1.bf16.msra.mxu0 0
        %1474 = vmatprep.mubr.bf16.mxu0 0
        %1475 = vmatmul.mubr.bf16.gmra.mrb[0].mxu0 %v1431
        %v1476 = vpop.f32.mrb[0].mxu0
        %v1477 = vadd.f32 0.0, %v1476
        %v1478 = vpop.f32.mrb[0].mxu0
        %v1479 = vpop.f32.mrb[0].mxu0
        %v1480 = vadd.f32 0.0, %v1479
        %v1481 = vpop.f32.mrb[0].mxu0
        %1482 = vmatprep.mubr.bf16.mxu0 0
        %1483 = vmatmul.mubr.bf16.gmra.mrb[0].mxu0 %v1434
        %v1484 = vpop.f32.mrb[0].mxu0
        %v1485 = vadd.f32 0.0, %v1484
        %v1486 = vpop.f32.mrb[0].mxu0
        %v1487 = vpop.f32.mrb[0].mxu0
        %v1488 = vadd.f32 0.0, %v1487
        %v1489 = vpop.f32.mrb[0].mxu0
        %1490 = vmatprep.mubr.bf16.mxu0 0
        %1491 = vmatmul.mubr.bf16.gmra.mrb[0].mxu0 %v1437
        %v1492 = vpop.f32.mrb[0].mxu0
        %v1493 = vadd.f32 0.0, %v1492
        %v1494 = vpop.f32.mrb[0].mxu0
        %v1495 = vpop.f32.mrb[0].mxu0
        %v1496 = vadd.f32 0.0, %v1495
        %v1497 = vpop.f32.mrb[0].mxu0
        %1498 = vmatprep.mubr.bf16.mxu0 0
        %1499 = vmatmul.mubr.bf16.gmra.mrb[0].mxu0 %v1440
        %v1500 = vpop.f32.mrb[0].mxu0
        %v1501 = vadd.f32 0.0, %v1500
        %v1502 = vpop.f32.mrb[0].mxu0
        %v1503 = vpop.f32.mrb[0].mxu0
        %v1504 = vadd.f32 0.0, %v1503
        %v1505 = vpop.f32.mrb[0].mxu0
        %1506 = vdwg.mxu0
        %v1507 = vadd.f32 %v1302, %v1477
        %v1508 = vadd.f32 %v1303, %v1480
        %v1509 = vadd.f32 %v1304, %v1485
        %v1510 = vadd.f32 %v1305, %v1488
        %v1511 = vadd.f32 %v1306, %v1493
        %v1512 = vadd.f32 %v1307, %v1496
        %v1513 = vadd.f32 %v1308, %v1501
        %v1514 = vadd.f32 %v1309, %v1504
        %1515 = vset.pattern.permute.xlu0 4
        %1516 = vperm.xlu0 %1515, %v431
        %v1517 = vpop.permute.xlu0 %1516
        %1519 = vset.pattern.permute.xlu0 4
        %1520 = vperm.xlu0 %1519, %v432
        %v1521 = vpop.permute.xlu0 %1520
        %1523 = vset.pattern.permute.xlu0 4
        %1524 = vperm.xlu0 %1523, %v433
        %v1525 = vpop.permute.xlu0 %1524
        %1527 = vset.pattern.permute.xlu0 4
        %1528 = vperm.xlu0 %1527, %v434
        %v1529 = vpop.permute.xlu0 %1528
        %1531 = vset.pattern.permute.xlu0 4
        %1532 = vperm.xlu0 %1531, %v435
        %v1533 = vpop.permute.xlu0 %1532
        %1535 = vset.pattern.permute.xlu0 4
        %1536 = vperm.xlu0 %1535, %v436
        %v1537 = vpop.permute.xlu0 %1536
        %1539 = vset.pattern.permute.xlu0 4
        %1540 = vperm.xlu0 %1539, %v437
        %v1541 = vpop.permute.xlu0 %1540
        %1543 = vset.pattern.permute.xlu0 4
        %1544 = vperm.xlu0 %1543, %v438
        %v1545 = vpop.permute.xlu0 %1544
        %v1547 = vadd.f32 %v1507, %v1517
        %v1548 = vadd.f32 %v1508, %v1521
        %v1549 = vadd.f32 %v1509, %v1525
        %v1550 = vadd.f32 %v1510, %v1529
        %v1551 = vadd.f32 %v1511, %v1533
        %v1552 = vadd.f32 %v1512, %v1537
        %v1553 = vadd.f32 %v1513, %v1541
        %v1554 = vadd.f32 %v1514, %v1545
        %v1555 = vmax.f32 %v1547, 0.0
        %v1556 = vmax.f32 %v1548, 0.0
        %v1557 = vmax.f32 %v1549, 0.0
        %v1558 = vmax.f32 %v1550, 0.0
        %v1559 = vmax.f32 %v1551, 0.0
        %v1560 = vmax.f32 %v1552, 0.0
        %v1561 = vmax.f32 %v1553, 0.0
        %v1562 = vmax.f32 %v1554, 0.0
        %1563 = vset.pattern.permute.xlu0 5
        %1564 = vperm.xlu0 %1563, %v431
        %v1565 = vpop.permute.xlu0 %1564
        %1567 = vset.pattern.permute.xlu0 5
        %1568 = vperm.xlu0 %1567, %v432
        %v1569 = vpop.permute.xlu0 %1568
        %1571 = vset.pattern.permute.xlu0 5
        %1572 = vperm.xlu0 %1571, %v433
        %v1573 = vpop.permute.xlu0 %1572
        %1575 = vset.pattern.permute.xlu0 5
        %1576 = vperm.xlu0 %1575, %v434
        %v1577 = vpop.permute.xlu0 %1576
        %1579 = vset.pattern.permute.xlu0 5
        %1580 = vperm.xlu0 %1579, %v435
        %v1581 = vpop.permute.xlu0 %1580
        %1583 = vset.pattern.permute.xlu0 5
        %1584 = vperm.xlu0 %1583, %v436
        %v1585 = vpop.permute.xlu0 %1584
        %1587 = vset.pattern.permute.xlu0 5
        %1588 = vperm.xlu0 %1587, %v437
        %v1589 = vpop.permute.xlu0 %1588
        %1591 = vset.pattern.permute.xlu0 5
        %1592 = vperm.xlu0 %1591, %v438
        %v1593 = vpop.permute.xlu0 %1592
        %v1595 = vmul.f32 %v1555, %v1565
        %v1596 = vmul.f32 %v1556, %v1569
        %v1597 = vmul.f32 %v1557, %v1573
        %v1598 = vmul.f32 %v1558, %v1577
        %v1599 = vmul.f32 %v1559, %v1581
        %v1600 = vmul.f32 %v1560, %v1585
        %v1601 = vmul.f32 %v1561, %v1589
        %v1602 = vmul.f32 %v1562, %v1593
        %1603 = vset.pattern.permute.xlu0 6
        %1604 = vperm.xlu0 %1603, %v431
        %v1605 = vpop.permute.xlu0 %1604
        %1607 = vset.pattern.permute.xlu0 6
        %1608 = vperm.xlu0 %1607, %v432
        %v1609 = vpop.permute.xlu0 %1608
        %1611 = vset.pattern.permute.xlu0 6
        %1612 = vperm.xlu0 %1611, %v433
        %v1613 = vpop.permute.xlu0 %1612
        %1615 = vset.pattern.permute.xlu0 6
        %1616 = vperm.xlu0 %1615, %v434
        %v1617 = vpop.permute.xlu0 %1616
        %1619 = vset.pattern.permute.xlu0 6
        %1620 = vperm.xlu0 %1619, %v435
        %v1621 = vpop.permute.xlu0 %1620
        %1623 = vset.pattern.permute.xlu0 6
        %1624 = vperm.xlu0 %1623, %v436
        %v1625 = vpop.permute.xlu0 %1624
        %1627 = vset.pattern.permute.xlu0 6
        %1628 = vperm.xlu0 %1627, %v437
        %v1629 = vpop.permute.xlu0 %1628
        %1631 = vset.pattern.permute.xlu0 6
        %1632 = vperm.xlu0 %1631, %v438
        %v1633 = vpop.permute.xlu0 %1632
        %v1635 = vadd.f32 %v1595, %v1605
        %v1636 = vadd.f32 %v1596, %v1609
        %v1637 = vadd.f32 %v1597, %v1613
        %v1638 = vadd.f32 %v1598, %v1617
        %v1639 = vadd.f32 %v1599, %v1621
        %v1640 = vadd.f32 %v1600, %v1625
        %v1641 = vadd.f32 %v1601, %v1629
        %v1642 = vadd.f32 %v1602, %v1633
        %1643 = vadd.xlane.f32.xlu0 %v1635
        %v1644 = vpop.xlane.xlu0 %1643
        %1645 = vadd.xlane.f32.xlu0 %v1636
        %v1646 = vpop.xlane.xlu0 %1645
        %1647 = vadd.xlane.f32.xlu0 %v1637
        %v1648 = vpop.xlane.xlu0 %1647
        %1649 = vadd.xlane.f32.xlu0 %v1638
        %v1650 = vpop.xlane.xlu0 %1649
        %1651 = vadd.xlane.f32.xlu0 %v1639
        %v1652 = vpop.xlane.xlu0 %1651
        %1653 = vadd.xlane.f32.xlu0 %v1640
        %v1654 = vpop.xlane.xlu0 %1653
        %1655 = vadd.xlane.f32.xlu0 %v1641
        %v1656 = vpop.xlane.xlu0 %1655
        %1657 = vadd.xlane.f32.xlu0 %v1642
        %v1658 = vpop.xlane.xlu0 %1657
        %v1659 = vmul.f32 %v1644, 0.0078125
        %v1660 = vmul.f32 %v1646, 0.0078125
        %v1661 = vmul.f32 %v1648, 0.0078125
        %v1662 = vmul.f32 %v1650, 0.0078125
        %v1663 = vmul.f32 %v1652, 0.0078125
        %v1664 = vmul.f32 %v1654, 0.0078125
        %v1665 = vmul.f32 %v1656, 0.0078125
        %v1666 = vmul.f32 %v1658, 0.0078125
        %v1667 = vld [vmem:[#allocation10] sm:$0xf]
        %v1668 = vld [vmem:[#allocation10 + $0x4] sm:$0xf]
        %v1669 = vpack.c.bf16 %v1660, %v1659
        %v1670 = vpack.c.bf16 %v1662, %v1661
        %v1671 = vpack.c.bf16 %v1664, %v1663
        %v1672 = vpack.c.bf16 %v1666, %v1665
        %v1675 = vunpack.c.l.b16 %v1667
        %v1676 = vunpack.c.l.b16 %v1668
        %v1677 = vpack.c.b16 %v1676, %v1675
        %1678 = vrot.lane.b32.xlu0 %v431, 120
        %v1679 = vpop.permute.xlu0 %1678
        %1680 = vrot.lane.b32.xlu0 %v432, 120
        %v1681 = vpop.permute.xlu0 %1680
        %vm1684 = vcmask 523264
        %v1686 = vsel %vm1684, %v1677, 0
        %1688 = vmatprep.subr.bf16.mxu0 0
        %1689 = vmatpush1.bf16.msra.mxu0 %v1669
        %1690 = vmatprep.subr.bf16.mxu0 0
        %1691 = vmatpush1.bf16.msra.mxu0 %v1670
        %1692 = vmatprep.subr.bf16.mxu0 0
        %1693 = vmatpush1.bf16.msra.mxu0 %v1671
        %1694 = vmatprep.subr.bf16.mxu0 0
        %1695 = vmatpush1.bf16.msra.mxu0 %v1672
        %1696 = vmatprep.subr.bf16.mxu0 0
        %1697 = vmatpush1.bf16.msra.mxu0 0
        %1698 = vmatprep.subr.bf16.mxu0 0
        %1699 = vmatpush1.bf16.msra.mxu0 0
        %1700 = vmatprep.subr.bf16.mxu0 0
        %1701 = vmatpush1.bf16.msra.mxu0 0
        %1702 = vmatprep.subr.bf16.mxu0 0
        %1703 = vmatpush1.bf16.msra.mxu0 0
        %1704 = vmatprep.subr.bf16.mxu0 0
        %1705 = vmatpush1.bf16.msra.mxu0 0
        %1706 = vmatprep.subr.bf16.mxu0 0
        %1707 = vmatpush1.bf16.msra.mxu0 0
        %1708 = vmatprep.subr.bf16.mxu0 0
        %1709 = vmatpush1.bf16.msra.mxu0 0
        %1710 = vmatprep.subr.bf16.mxu0 0
        %1711 = vmatpush1.bf16.msra.mxu0 0
        %1712 = vmatprep.subr.bf16.mxu0 0
        %1713 = vmatpush1.bf16.msra.mxu0 0
        %1714 = vmatprep.subr.bf16.mxu0 0
        %1715 = vmatpush1.bf16.msra.mxu0 0
        %1716 = vmatprep.subr.bf16.mxu0 0
        %1717 = vmatpush1.bf16.msra.mxu0 0
        %1718 = vmatprep.subr.bf16.mxu0 0
        %1719 = vmatpush1.bf16.msra.mxu0 0
        %1720 = vmatprep.mubr.bf16.mxu0 0
        %1721 = vmatmul.mubr.bf16.gmra.mrb[0].mxu0 %v1686
        %v1722 = vpop.f32.mrb[0].mxu0
        %v1723 = vadd.f32 %v1679, %v1722
        %v1724 = vpop.f32.mrb[0].mxu0
        %v1725 = vpop.f32.mrb[0].mxu0
        %v1726 = vadd.f32 %v1681, %v1725
        %v1727 = vpop.f32.mrb[0].mxu0
        %1728 = vdwg.mxu0
        %v1729 = vmax.f32 %v1723, 0.0
        %v1730 = vmax.f32 %v1726, 0.0
        %v1731 = vld [vmem:[#allocation11] sm:$0xf]
        %v1732 = vld [vmem:[#allocation11 + $0x4] sm:$0xf]
        %v1733 = vld [vmem:[#allocation11 + $0x8] sm:$0xf]
        %v1734 = vld [vmem:[#allocation11 + $0xc] sm:$0xf]
        %v1735 = vld [vmem:[#allocation11 + $0x10] sm:$0xf]
        %v1736 = vld [vmem:[#allocation11 + $0x14] sm:$0xf]
        %v1737 = vld [vmem:[#allocation11 + $0x18] sm:$0xf]
        %v1738 = vld [vmem:[#allocation11 + $0x1c] sm:$0xf]
        %v1739 = vpack.c.bf16 %v1730, %v1729
        %v1748 = vunpack.c.l.b16 %v1731
        %v1749 = vunpack.c.l.b16 %v1732
        %v1750 = vunpack.c.l.b16 %v1733
        %v1751 = vunpack.c.l.b16 %v1734
        %v1752 = vunpack.c.l.b16 %v1735
        %v1753 = vunpack.c.l.b16 %v1736
        %v1754 = vunpack.c.l.b16 %v1737
        %v1755 = vunpack.c.l.b16 %v1738
        %v1756 = vpack.c.b16 %v1749, %v1748
        %v1757 = vpack.c.b16 %v1751, %v1750
        %v1758 = vpack.c.b16 %v1753, %v1752
        %v1759 = vpack.c.b16 %v1755, %v1754
        %1760 = vrot.lane.b32.xlu0 %v431, 121
        %v1761 = vpop.permute.xlu0 %1760
        %1762 = vrot.lane.b32.xlu0 %v432, 121
        %v1763 = vpop.permute.xlu0 %1762
        %1764 = vrot.lane.b32.xlu0 %v433, 121
        %v1765 = vpop.permute.xlu0 %1764
        %1766 = vrot.lane.b32.xlu0 %v434, 121
        %v1767 = vpop.permute.xlu0 %1766
        %1768 = vrot.lane.b32.xlu0 %v435, 121
        %v1769 = vpop.permute.xlu0 %1768
        %1770 = vrot.lane.b32.xlu0 %v436, 121
        %v1771 = vpop.permute.xlu0 %1770
        %1772 = vrot.lane.b32.xlu0 %v437, 121
        %v1773 = vpop.permute.xlu0 %1772
        %1774 = vrot.lane.b32.xlu0 %v438, 121
        %v1775 = vpop.permute.xlu0 %1774
        %v1785 = vsel %vm834, %v1756, 0
        %v1788 = vsel %vm834, %v1757, 0
        %v1791 = vsel %vm834, %v1758, 0
        %v1794 = vsel %vm834, %v1759, 0
        %1796 = vmatprep.subr.bf16.mxu0 0
        %1797 = vmatpush1.bf16.msra.mxu0 %v1739
        %1798 = vmatprep.subr.bf16.mxu0 0
        %1799 = vmatpush1.bf16.msra.mxu0 0
        %1800 = vmatprep.subr.bf16.mxu0 0
        %1801 = vmatpush1.bf16.msra.mxu0 0
        %1802 = vmatprep.subr.bf16.mxu0 0
        %1803 = vmatpush1.bf16.msra.mxu0 0
        %1804 = vmatprep.subr.bf16.mxu0 0
        %1805 = vmatpush1.bf16.msra.mxu0 0
        %1806 = vmatprep.subr.bf16.mxu0 0
        %1807 = vmatpush1.bf16.msra.mxu0 0
        %1808 = vmatprep.subr.bf16.mxu0 0
        %1809 = vmatpush1.bf16.msra.mxu0 0
        %1810 = vmatprep.subr.bf16.mxu0 0
        %1811 = vmatpush1.bf16.msra.mxu0 0
        %1812 = vmatprep.subr.bf16.mxu0 0
        %1813 = vmatpush1.bf16.msra.mxu0 0
        %1814 = vmatprep.subr.bf16.mxu0 0
        %1815 = vmatpush1.bf16.msra.mxu0 0
        %1816 = vmatprep.subr.bf16.mxu0 0
        %1817 = vmatpush1.bf16.msra.mxu0 0
        %1818 = vmatprep.subr.bf16.mxu0 0
        %1819 = vmatpush1.bf16.msra.mxu0 0
        %1820 = vmatprep.subr.bf16.mxu0 0
        %1821 = vmatpush1.bf16.msra.mxu0 0
        %1822 = vmatprep.subr.bf16.mxu0 0
        %1823 = vmatpush1.bf16.msra.mxu0 0
        %1824 = vmatprep.subr.bf16.mxu0 0
        %1825 = vmatpush1.bf16.msra.mxu0 0
        %1826 = vmatprep.subr.bf16.mxu0 0
        %1827 = vmatpush1.bf16.msra.mxu0 0
        %1828 = vmatprep.mubr.bf16.mxu0 0
        %1829 = vmatmul.mubr.bf16.gmra.mrb[0].mxu0 %v1785
        %v1830 = vpop.f32.mrb[0].mxu0
        %v1831 = vadd.f32 %v1761, %v1830
        %v1832 = vpop.f32.mrb[0].mxu0
        %v1833 = vpop.f32.mrb[0].mxu0
        %v1834 = vadd.f32 %v1763, %v1833
        %v1835 = vpop.f32.mrb[0].mxu0
        %1836 = vmatprep.mubr.bf16.mxu0 0
        %1837 = vmatmul.mubr.bf16.gmra.mrb[0].mxu0 %v1788
        %v1838 = vpop.f32.mrb[0].mxu0
        %v1839 = vadd.f32 %v1765, %v1838
        %v1840 = vpop.f32.mrb[0].mxu0
        %v1841 = vpop.f32.mrb[0].mxu0
        %v1842 = vadd.f32 %v1767, %v1841
        %v1843 = vpop.f32.mrb[0].mxu0
        %1844 = vmatprep.mubr.bf16.mxu0 0
        %1845 = vmatmul.mubr.bf16.gmra.mrb[0].mxu0 %v1791
        %v1846 = vpop.f32.mrb[0].mxu0
        %v1847 = vadd.f32 %v1769, %v1846
        %v1848 = vpop.f32.mrb[0].mxu0
        %v1849 = vpop.f32.mrb[0].mxu0
        %v1850 = vadd.f32 %v1771, %v1849
        %v1851 = vpop.f32.mrb[0].mxu0
        %1852 = vmatprep.mubr.bf16.mxu0 0
        %1853 = vmatmul.mubr.bf16.gmra.mrb[0].mxu0 %v1794
        %v1854 = vpop.f32.mrb[0].mxu0
        %v1855 = vadd.f32 %v1773, %v1854
        %v1856 = vpop.f32.mrb[0].mxu0
        %v1857 = vpop.f32.mrb[0].mxu0
        %v1858 = vadd.f32 %v1775, %v1857
        %v1859 = vpop.f32.mrb[0].mxu0
        %1860 = vdwg.mxu0
        %v1861 = vxor.u32 %v1831, 2147483648
        %v1862 = vxor.u32 %v1834, 2147483648
        %v1863 = vxor.u32 %v1839, 2147483648
        %v1864 = vxor.u32 %v1842, 2147483648
        %v1865 = vxor.u32 %v1847, 2147483648
        %v1866 = vxor.u32 %v1850, 2147483648
        %v1867 = vxor.u32 %v1855, 2147483648
        %v1868 = vxor.u32 %v1858, 2147483648
        %v1869 = vmul.f32 %v1861, 1.442695
        %v1870 = vpow.pop %v1869
        %v1871 = vmul.f32 %v1862, 1.442695
        %v1872 = vpow.pop %v1871
        %v1873 = vmul.f32 %v1863, 1.442695
        %v1874 = vpow.pop %v1873
        %v1875 = vmul.f32 %v1864, 1.442695
        %v1876 = vpow.pop %v1875
        %v1877 = vmul.f32 %v1865, 1.442695
        %v1878 = vpow.pop %v1877
        %v1879 = vmul.f32 %v1866, 1.442695
        %v1880 = vpow.pop %v1879
        %v1881 = vmul.f32 %v1867, 1.442695
        %v1882 = vpow.pop %v1881
        %v1883 = vmul.f32 %v1868, 1.442695
        %v1884 = vpow.pop %v1883
        %v1885 = vadd.f32 %v1870, 1.0
        %v1886 = vadd.f32 %v1872, 1.0
        %v1887 = vadd.f32 %v1874, 1.0
        %v1888 = vadd.f32 %v1876, 1.0
        %v1889 = vadd.f32 %v1878, 1.0
        %v1890 = vadd.f32 %v1880, 1.0
        %v1891 = vadd.f32 %v1882, 1.0
        %v1892 = vadd.f32 %v1884, 1.0
        %v1893 = vrcp.pop %v1885
        %v1894 = vmul.f32 1.0, %v1893
        %v1895 = vrcp.pop %v1886
        %v1896 = vmul.f32 1.0, %v1895
        %v1897 = vrcp.pop %v1887
        %v1898 = vmul.f32 1.0, %v1897
        %v1899 = vrcp.pop %v1888
        %v1900 = vmul.f32 1.0, %v1899
        %v1901 = vrcp.pop %v1889
        %v1902 = vmul.f32 1.0, %v1901
        %v1903 = vrcp.pop %v1890
        %v1904 = vmul.f32 1.0, %v1903
        %v1905 = vrcp.pop %v1891
        %v1906 = vmul.f32 1.0, %v1905
        %v1907 = vrcp.pop %v1892
        %v1908 = vmul.f32 1.0, %v1907
        %1910 = vset.pattern.permute.xlu0 0
        %1911 = vperm.xlu0 %1910, %v1894
        %v1912 = vpop.permute.xlu0 %1911
        %1915 = vset.pattern.permute.xlu0 0
        %1916 = vperm.xlu0 %1915, %v1896
        %v1917 = vpop.permute.xlu0 %1916
        %1920 = vset.pattern.permute.xlu0 0
        %1921 = vperm.xlu0 %1920, %v1898
        %v1922 = vpop.permute.xlu0 %1921
        %1925 = vset.pattern.permute.xlu0 0
        %1926 = vperm.xlu0 %1925, %v1900
        %v1927 = vpop.permute.xlu0 %1926
        %1930 = vset.pattern.permute.xlu0 0
        %1931 = vperm.xlu0 %1930, %v1902
        %v1932 = vpop.permute.xlu0 %1931
        %1935 = vset.pattern.permute.xlu0 0
        %1936 = vperm.xlu0 %1935, %v1904
        %v1937 = vpop.permute.xlu0 %1936
        %1940 = vset.pattern.permute.xlu0 0
        %1941 = vperm.xlu0 %1940, %v1906
        %v1942 = vpop.permute.xlu0 %1941
        %1945 = vset.pattern.permute.xlu0 0
        %1946 = vperm.xlu0 %1945, %v1908
        %v1947 = vpop.permute.xlu0 %1946
        %v1949 = vmul.f32 %v1912, %v1635
        %v1950 = vmul.f32 %v1917, %v1636
        %v1951 = vmul.f32 %v1922, %v1637
        %v1952 = vmul.f32 %v1927, %v1638
        %v1953 = vmul.f32 %v1932, %v1639
        %v1954 = vmul.f32 %v1937, %v1640
        %v1955 = vmul.f32 %v1942, %v1641
        %v1956 = vmul.f32 %v1947, %v1642
        %v1957 = vadd.f32 %v1949, %v709
        %v1958 = vadd.f32 %v1950, %v710
        %v1959 = vadd.f32 %v1951, %v711
        %v1960 = vadd.f32 %v1952, %v712
        %v1961 = vadd.f32 %v1953, %v713
        %v1962 = vadd.f32 %v1954, %v714
        %v1963 = vadd.f32 %v1955, %v715
        %v1964 = vadd.f32 %v1956, %v716
        %1965 = vst [vmem:[%s425] sm:$0xff] %v1957
        %1966 = vst [vmem:[%s425 + $0x8] sm:$0xff] %v1958
        %1967 = vst [vmem:[%s425 + $0x10] sm:$0xff] %v1959
        %1968 = vst [vmem:[%s425 + $0x18] sm:$0xff] %v1960
        %1969 = vst [vmem:[%s425 + $0x20] sm:$0xff] %v1961
        %1970 = vst [vmem:[%s425 + $0x28] sm:$0xff] %v1962
        %1971 = vst [vmem:[%s425 + $0x30] sm:$0xff] %v1963
        %1972 = vst [vmem:[%s425 + $0x38] sm:$0xff] %v1964
        %s1973 = sand.u32 %s210, 1
        %s1974 = scalar_lea.sflag [#allocation4], %s1973
        %s1975 = sand.u32 %s210, 1
        %s1976 = smul.addr %s1975, 64
        %s1977 = scalar_lea.vmem [#allocation16], %s1976
        // Predicated region
        $region85: #{tpu_custom_call.1} parent=51 // pred_check
          %p1978 = pneg %p220
        $region86: #{tpu_custom_call.1} parent=51 // pred_check_branch
          %1980 = sbr.rel (%p1978) target = $region88
        $region87: #{tpu_custom_call.1} parent=51 // pred_region
          %s1982 = ssub.s32 1024, 1024
          %1983 = vsyncadd %s1974, %s1982
          %s1984 = smul.addr %s29, 8
          %s1985 = smul.addr %s1984, 128
          %s1986 = scalar_lea.hbm %s8, %s1985
          %s1987 = sshll.u32 %s1977, 4
          %s1988 = int_to_ptr.vmem [resolvable:$true] %s1987
          %1993 = dma.vmem_to_hbm [thread:$0]  %s1988, 1024, %s1986, %s1974, 128, 128, 8
        $region88: #{tpu_custom_call.1} parent=51 // pred_fallthru
          _
      $region52: #{tpu_custom_call.1} parent=5 // pred_fallthru
        _
      %p1994 = scmp.le.s32.totalorder 2, %s24
      // Predicated region
      $region89: #{tpu_custom_call.1} parent=5 // pred_check
        %p1995 = pneg %p1994
      $region90: #{tpu_custom_call.1} parent=5 // pred_check_branch
        %1997 = sbr.rel (%p1995) target = $region92
      $region91: #{tpu_custom_call.1} parent=5 // pred_region
        %s1998 = ssub.s32 %s24, 2
        // Predicated region
        $region93: #{tpu_custom_call.1} parent=91 // pred_check
          %p1999 = pneg %p226
        $region94: #{tpu_custom_call.1} parent=91 // pred_check_branch
          %2001 = sbr.rel (%p1999) target = $region96
        $region95: #{tpu_custom_call.1} parent=91 // pred_region
          %s2002 = sand.u32 %s211, 1
          %s2003 = scalar_lea.sflag [#allocation4], %s2002
          %s2004 = sand.u32 %s211, 1
          %s2005 = smul.addr %s2004, 64
          %s2006 = scalar_lea.vmem [#allocation16], %s2005
          %2007 = dma.done %s2003, 1024
        $region96: #{tpu_custom_call.1} parent=91 // pred_fallthru
          _
      $region92: #{tpu_custom_call.1} parent=5 // pred_fallthru
        _
    $region6: #{tpu_custom_call.1} parent=1 // loop_footer
      %s28 = sadd.s32 1, %s24
    $region7: #{tpu_custom_call.1} parent=1 // loop_footer_branch
      %23 = sbr.rel target = $region3
    $region8: #{tpu_custom_call.1} parent=1 // loop_exit
      _
    %2008 = vsyncpa [#allocation3], 1
    %s2009 = scalar_lea.sflag [#allocation3], 1
    %2010 = vsyncpa %s2009, 1
    %2011 = vsyncpa [#allocation6], 1
    %2012 = vsyncpa [#allocation9], 1
    %2013 = vsyncpa [#allocation12], 1
    %2014 = vsyncpa [#allocation15], 1
    %2015 = vsyncpa [#allocation4], 1
    %s2016 = scalar_lea.sflag [#allocation4], 1
    %2017 = vsyncpa %s2016, 1

</llo_original>
